<compile_context>
chip_gen: v7x
topology: tpu7x:2x2x1
jax: 0.10.0
libtpu: 0.0.40
codegen_flags: <defaults>
</compile_context>

<pallas_src>
import math
from functools import partial

import jax
import jax.numpy as jnp
from jax.experimental import pallas as pl
from jax.experimental.pallas import tpu as pltpu

_VMEM_LIMIT = 48 * 1024 * 1024  # within v7x's 64 MiB physical VMEM


def _pick_tile(dim, target, align):
    """Largest divisor of `dim` <= target that is a multiple of `align`;
    full dim if `dim` is already small (or has no aligned divisor)."""
    if dim <= target:
        return dim
    t = (target // align) * align
    while t >= align:
        if dim % t == 0:
            return t
        t -= align
    return dim


# ----------------------------------------------------------------------------
# Pallas kernels
# ----------------------------------------------------------------------------
def _linear_kernel(x_ref, w_ref, b_ref, o_ref, acc_ref, *, activation):
    """Tiled o = act(x @ w + b); accumulate over the k grid axis in VMEM."""
    @pl.when(pl.program_id(2) == 0)
    def _():
        acc_ref[...] = jnp.zeros_like(acc_ref)

    acc_ref[...] += jnp.dot(
        x_ref[...].astype(jnp.bfloat16),        # MXU takes bf16 inputs
        w_ref[...],                             # weights already bf16
        preferred_element_type=jnp.float32)

    @pl.when(pl.program_id(2) == pl.num_programs(2) - 1)
    def _():
        y = acc_ref[...] + b_ref[...]
        if activation == "relu":
            y = jnp.maximum(y, 0.0)
        elif activation == "softmax":
            # softmax over the full feature dim (tn == N guaranteed by wrapper)
            y = y - jnp.max(y, axis=-1, keepdims=True)
            e = jnp.exp(y)
            # exact reciprocal here so output rows sum to 1 within f32 precision
            y = e * pl.reciprocal(jnp.sum(e, axis=-1, keepdims=True), approx=False)
        o_ref[...] = y.astype(o_ref.dtype)


def pallas_linear(x2d, w_bf16, b, activation=None):
    M, K = x2d.shape
    K2, N = w_bf16.shape
    assert K == K2
    if activation == "softmax":
        tn = N                                   # softmax needs the full row
        tm = _pick_tile(M, 128, 8)               # keep acc tile small for big vocab
    else:
        tn = _pick_tile(N, 256, 128)
        tm = _pick_tile(M, 256, 8)
    tk = _pick_tile(K, 512, 128)
    grid = (M // tm, N // tn, K // tk)
    return pl.pallas_call(
        partial(_linear_kernel, activation=activation),
        out_shape=jax.ShapeDtypeStruct((M, N), jnp.float32),
        grid=grid,
        in_specs=[
            pl.BlockSpec((tm, tk), lambda i, j, k: (i, k)),
            pl.BlockSpec((tk, tn), lambda i, j, k: (k, j)),
            pl.BlockSpec((1, tn), lambda i, j, k: (0, j)),
        ],
        out_specs=pl.BlockSpec((tm, tn), lambda i, j, k: (i, j)),
        scratch_shapes=[pltpu.VMEM((tm, tn), jnp.float32)],
        compiler_params=pltpu.CompilerParams(
            dimension_semantics=("parallel", "parallel", "arbitrary"),
            vmem_limit_bytes=_VMEM_LIMIT),
    )(x2d, w_bf16, b.reshape(1, N))


def _add_layernorm_kernel(x_ref, h_ref, g_ref, b_ref, o_ref, *, eps):
    """Fused residual + LayerNorm: o = LN(x + h) (all math in f32)."""
    x = x_ref[...] + h_ref[...]
    mu = jnp.mean(x, axis=-1, keepdims=True)
    var = jnp.mean(jnp.square(x - mu), axis=-1, keepdims=True)
    y = (x - mu) * jax.lax.rsqrt(var + eps)
    o_ref[...] = (y * g_ref[...] + b_ref[...]).astype(o_ref.dtype)


def pallas_add_layernorm(x2d, h2d, gamma, beta, eps=1e-5):
    M, D = x2d.shape
    tm = _pick_tile(M, 512, 8)
    return pl.pallas_call(
        partial(_add_layernorm_kernel, eps=eps),
        out_shape=jax.ShapeDtypeStruct((M, D), jnp.float32),
        grid=(M // tm,),
        in_specs=[
            pl.BlockSpec((tm, D), lambda i: (i, 0)),
            pl.BlockSpec((tm, D), lambda i: (i, 0)),
            pl.BlockSpec((1, D), lambda i: (0, 0)),
            pl.BlockSpec((1, D), lambda i: (0, 0)),
        ],
        out_specs=pl.BlockSpec((tm, D), lambda i: (i, 0)),
        compiler_params=pltpu.CompilerParams(
            dimension_semantics=("parallel",),
            vmem_limit_bytes=_VMEM_LIMIT),
    )(x2d, h2d, gamma.reshape(1, D), beta.reshape(1, D))


def _attention_kernel(q_ref, kv_ref, *rest, num_heads, scale, has_mask):
    """Multi-head scaled dot-product attention for one (batch, q-tile) block.

    q:  (tq, D) f32    kv: (Sk, 2D) f32 (k | v fused on the lane axis)
    m:  (tq, Sk) f32 additive mask (only when has_mask)
    o:  (tq, D) lane-dense output slab
    Heads are split with static lane slices inside the kernel (no transposes).
    """
    if has_mask:
        m_ref, o_ref = rest
        mask = m_ref[0]
    else:
        (o_ref,) = rest
        mask = None

    q = q_ref[0]
    kv = kv_ref[0]
    D = q.shape[-1]
    Dh = D // num_heads
    k = kv[:, :D]
    v = kv[:, D:]

    outs = []
    for h in range(num_heads):
        qh = (q[:, h * Dh:(h + 1) * Dh] * scale).astype(jnp.bfloat16)
        kh = k[:, h * Dh:(h + 1) * Dh].astype(jnp.bfloat16)
        vh = v[:, h * Dh:(h + 1) * Dh].astype(jnp.bfloat16)
        s = jax.lax.dot_general(qh, kh, (((1,), (1,)), ((), ())),
                                preferred_element_type=jnp.float32)
        if mask is not None:
            s = s + mask
        s = s - jnp.max(s, axis=-1, keepdims=True)
        p = jnp.exp(s)
        inv = pl.reciprocal(jnp.sum(p, axis=-1, keepdims=True), approx=True)
        o_h = jnp.dot((p * inv).astype(jnp.bfloat16), vh,
                      preferred_element_type=jnp.float32)
        outs.append(o_h)

    # single lane-dense store of the whole (tq, H*Dh) slab
    o_ref[0] = jnp.concatenate(outs, axis=-1).astype(o_ref.dtype)


def pallas_attention(q, kv, mask_add, num_heads, scale):
    # q: (B, Sq, D)   kv: (B, Sk, 2D)   mask_add: (1, Sq, Sk) additive or None
    B, Sq, D = q.shape
    Sk = kv.shape[1]
    tq = _pick_tile(Sq, 256, 8)
    has_mask = mask_add is not None
    in_specs = [
        pl.BlockSpec((1, tq, D), lambda b, qi: (b, qi, 0)),
        pl.BlockSpec((1, Sk, 2 * D), lambda b, qi: (b, 0, 0)),
    ]
    operands = [q, kv]
    if has_mask:
        in_specs.append(pl.BlockSpec((1, tq, Sk), lambda b, qi: (0, qi, 0)))
        operands.append(mask_add)
    return pl.pallas_call(
        partial(_attention_kernel, num_heads=num_heads, scale=scale,
                has_mask=has_mask),
        out_shape=jax.ShapeDtypeStruct((B, Sq, D), jnp.float32),
        grid=(B, Sq // tq),
        in_specs=in_specs,
        out_specs=pl.BlockSpec((1, tq, D), lambda b, qi: (b, qi, 0)),
        compiler_params=pltpu.CompilerParams(
            dimension_semantics=("parallel", "parallel"),
            vmem_limit_bytes=_VMEM_LIMIT),
    )(*operands)


# ----------------------------------------------------------------------------
# Model glue (reshapes / parameter plumbing in plain JAX; no transposes)
# ----------------------------------------------------------------------------
def multi_head_attention(x_q, x_kv, p, mask_add, num_heads):
    B, Sq, D = x_q.shape
    Sk = x_kv.shape[1]
    Dh = D // num_heads
    q = pallas_linear(x_q.reshape(B * Sq, D), p["wq"], p["bq"]).reshape(B, Sq, D)
    # fused K|V projection: one matmul, one read of x_kv
    kv = pallas_linear(x_kv.reshape(B * Sk, D), p["wkv"], p["bkv"]).reshape(B, Sk, 2 * D)
    o = pallas_attention(q, kv, mask_add, num_heads, 1.0 / math.sqrt(Dh))
    return pallas_linear(o.reshape(B * Sq, D), p["wo"], p["bo"]).reshape(B, Sq, D)


def encoder_layer(x, p, num_heads):
    B, S, D = x.shape
    attn = multi_head_attention(x, x, p["attn"], None, num_heads)
    x = pallas_add_layernorm(x.reshape(B * S, D), attn.reshape(B * S, D),
                             p["ln1_g"], p["ln1_b"])
    h = pallas_linear(x, p["w1"], p["b1"], activation="relu")
    h = pallas_linear(h, p["w2"], p["b2"])
    x = pallas_add_layernorm(x, h, p["ln2_g"], p["ln2_b"])
    return x.reshape(B, S, D)


def decoder_layer(y, enc, p, num_heads, self_mask):
    B, S, D = y.shape
    attn = multi_head_attention(y, y, p["self_attn"], self_mask, num_heads)
    y = pallas_add_layernorm(y.reshape(B * S, D), attn.reshape(B * S, D),
                             p["ln1_g"], p["ln1_b"]).reshape(B, S, D)
    cross = multi_head_attention(y, enc, p["cross_attn"], None, num_heads)
    y = pallas_add_layernorm(y.reshape(B * S, D), cross.reshape(B * S, D),
                             p["ln2_g"], p["ln2_b"])
    h = pallas_linear(y, p["w1"], p["b1"], activation="relu")
    h = pallas_linear(h, p["w2"], p["b2"])
    y = pallas_add_layernorm(y, h, p["ln3_g"], p["ln3_b"])
    return y.reshape(B, S, D)


def sinusoidal_pe(max_seq_len, d_model):
    pos = jnp.arange(max_seq_len, dtype=jnp.float32)[:, None]
    i = jnp.arange(d_model, dtype=jnp.float32)[None, :]
    angle = pos / jnp.power(10000.0, (2.0 * jnp.floor(i / 2.0)) / d_model)
    return jnp.where((jnp.arange(d_model) % 2) == 0, jnp.sin(angle), jnp.cos(angle))


def _make_dec_mask(decoder_mask, S_out):
    if decoder_mask is None:
        return None
    m = jnp.where(decoder_mask.astype(bool), 0.0, -1e9)
    return m.astype(jnp.float32).reshape(1, S_out, S_out)


def transformer_forward(params, inputs, outputs, decoder_mask, num_heads):
    # Embedding lookup + positional encoding (glue; gather stays in XLA).
    input_emb = jnp.take(params["embedding"], inputs, axis=0)
    output_emb = jnp.take(params["embedding"], outputs, axis=0)
    pe = params["pe"]
    x = input_emb + pe[None, : inputs.shape[1], :]
    y = output_emb + pe[None, : outputs.shape[1], :]

    # only the decoder self-attention carries a real (causal) mask
    dec_mask = _make_dec_mask(decoder_mask, outputs.shape[1])

    for lp in params["encoder"]:
        x = encoder_layer(x, lp, num_heads)
    enc_out = x

    for lp in params["decoder"]:
        y = decoder_layer(y, enc_out, lp, num_heads, dec_mask)

    B, S, D = y.shape
    V = params["w_out"].shape[1]
    # Final Linear(d_model -> vocab) fused with Softmax(dim=-1) in one kernel.
    probs = pallas_linear(y.reshape(B * S, D), params["w_out"], params["b_out"],
                          activation="softmax")
    return probs.reshape(B, S, V)


# ----------------------------------------------------------------------------
# Pure-JAX reference (mirrors the kernel's bf16-at-the-MXU math) for checking
# ----------------------------------------------------------------------------
def _ref_linear(x, w, b, activation=None):
    y = jnp.dot(x.astype(jnp.bfloat16), w, preferred_element_type=jnp.float32) + b
    if activation == "relu":
        y = jnp.maximum(y, 0.0)
    elif activation == "softmax":
        y = jax.nn.softmax(y, axis=-1)
    return y


def _ref_ln(x, g, b, eps=1e-5):
    mu = jnp.mean(x, axis=-1, keepdims=True)
    var = jnp.mean(jnp.square(x - mu), axis=-1, keepdims=True)
    return (x - mu) * jax.lax.rsqrt(var + eps) * g + b


def _ref_mha(x_q, x_kv, p, mask_add, H):
    B, Sq, D = x_q.shape
    Sk = x_kv.shape[1]
    Dh = D // H
    scale = 1.0 / math.sqrt(Dh)
    q = _ref_linear(x_q, p["wq"], p["bq"])
    kv = _ref_linear(x_kv, p["wkv"], p["bkv"])
    k, v = kv[..., :D], kv[..., D:]
    qh = (q * scale).astype(jnp.bfloat16).reshape(B, Sq, H, Dh)
    kh = k.astype(jnp.bfloat16).reshape(B, Sk, H, Dh)
    vh = v.astype(jnp.bfloat16).reshape(B, Sk, H, Dh)
    s = jnp.einsum("bqhd,bkhd->bhqk", qh, kh, preferred_element_type=jnp.float32)
    if mask_add is not None:
        s = s + mask_add[:, None]
    a = jax.nn.softmax(s, axis=-1)
    o = jnp.einsum("bhqk,bkhd->bqhd", a.astype(jnp.bfloat16), vh,
                   preferred_element_type=jnp.float32).reshape(B, Sq, D)
    return _ref_linear(o, p["wo"], p["bo"])


def transformer_forward_ref(params, inputs, outputs, decoder_mask, num_heads):
    input_emb = jnp.take(params["embedding"], inputs, axis=0)
    output_emb = jnp.take(params["embedding"], outputs, axis=0)
    pe = params["pe"]
    x = input_emb + pe[None, : inputs.shape[1], :]
    y = output_emb + pe[None, : outputs.shape[1], :]
    dec_mask = _make_dec_mask(decoder_mask, outputs.shape[1])

    for lp in params["encoder"]:
        a = _ref_mha(x, x, lp["attn"], None, num_heads)
        x = _ref_ln(x + a, lp["ln1_g"], lp["ln1_b"])
        h = _ref_linear(x, lp["w1"], lp["b1"], "relu")
        h = _ref_linear(h, lp["w2"], lp["b2"])
        x = _ref_ln(x + h, lp["ln2_g"], lp["ln2_b"])
    enc_out = x

    for lp in params["decoder"]:
        a = _ref_mha(y, y, lp["self_attn"], dec_mask, num_heads)
        y = _ref_ln(y + a, lp["ln1_g"], lp["ln1_b"])
        c = _ref_mha(y, enc_out, lp["cross_attn"], None, num_heads)
        y = _ref_ln(y + c, lp["ln2_g"], lp["ln2_b"])
        h = _ref_linear(y, lp["w1"], lp["b1"], "relu")
        h = _ref_linear(h, lp["w2"], lp["b2"])
        y = _ref_ln(y + h, lp["ln3_g"], lp["ln3_b"])

    return jax.nn.softmax(
        jnp.dot(y.astype(jnp.bfloat16), params["w_out"],
                preferred_element_type=jnp.float32) + params["b_out"], axis=-1)


# ----------------------------------------------------------------------------
# Deterministic parameter init (matmul weights stored bf16 for the MXU)
# ----------------------------------------------------------------------------
def init_params(key, vocab_size, d_model, max_seq_len, num_stacks=6, d_ff=None):
    if d_ff is None:
        d_ff = 4 * d_model
    keys = iter(jax.random.split(key, 1024))

    def dense(fan_in, fan_out):
        w = jax.random.normal(next(keys), (fan_in, fan_out), jnp.float32) * 0.02
        b = jnp.zeros((fan_out,), jnp.float32)
        return w, b

    def attn_params():
        wq, bq = dense(d_model, d_model)
        wk, bk = dense(d_model, d_model)
        wv, bv = dense(d_model, d_model)
        wo, bo = dense(d_model, d_model)
        return dict(
            wq=wq.astype(jnp.bfloat16), bq=bq,
            wkv=jnp.concatenate([wk, wv], axis=1).astype(jnp.bfloat16),
            bkv=jnp.concatenate([bk, bv], axis=0),
            wo=wo.astype(jnp.bfloat16), bo=bo)

    def ffn_params():
        w1, b1 = dense(d_model, d_ff)
        w2, b2 = dense(d_ff, d_model)
        return dict(w1=w1.astype(jnp.bfloat16), b1=b1,
                    w2=w2.astype(jnp.bfloat16), b2=b2)

    def ln():
        return jnp.ones((d_model,), jnp.float32), jnp.zeros((d_model,), jnp.float32)

    def encoder_params():
        g1, b1 = ln(); g2, b2 = ln()
        return dict(attn=attn_params(), ln1_g=g1, ln1_b=b1, ln2_g=g2, ln2_b=b2,
                    **ffn_params())

    def decoder_params():
        g1, b1 = ln(); g2, b2 = ln(); g3, b3 = ln()
        return dict(self_attn=attn_params(), cross_attn=attn_params(),
                    ln1_g=g1, ln1_b=b1, ln2_g=g2, ln2_b=b2, ln3_g=g3, ln3_b=b3,
                    **ffn_params())

    emb = jax.random.normal(next(keys), (vocab_size, d_model), jnp.float32) * 0.02
    w_out, b_out = dense(d_model, vocab_size)
    return dict(
        embedding=emb,
        pe=sinusoidal_pe(max_seq_len, d_model),
        encoder=[encoder_params() for _ in range(num_stacks)],
        decoder=[decoder_params() for _ in range(num_stacks)],
        w_out=w_out.astype(jnp.bfloat16),
        b_out=b_out,
    )


# ----------------------------------------------------------------------------
if __name__ == "__main__":
    vocab_size, d_model, max_seq_len = 64, 32, 16
    batch, seq = 2, 8
    num_heads = 4

    key = jax.random.PRNGKey(0)
    pkey, ikey, okey = jax.random.split(key, 3)

    params = init_params(pkey, vocab_size, d_model, max_seq_len, num_stacks=6)
    inputs = jax.random.randint(ikey, (batch, seq), 0, vocab_size)
    outputs = jax.random.randint(okey, (batch, seq), 0, vocab_size)
    decoder_mask = jnp.tril(jnp.ones((seq, seq), jnp.int32))  # causal mask

    fwd = jax.jit(partial(transformer_forward, num_heads=num_heads))
    probs = jax.block_until_ready(fwd(params, inputs, outputs, decoder_mask))

    assert probs.shape == (batch, seq, vocab_size)
    row_sums = jnp.sum(probs, axis=-1)
    assert bool(jnp.all(jnp.abs(row_sums - 1.0) < 1e-4)), "softmax rows do not sum to 1"
    assert bool(jnp.all(jnp.isfinite(probs))), "non-finite output"

    ref = transformer_forward_ref(params, inputs, outputs, decoder_mask, num_heads)
    max_err = float(jnp.max(jnp.abs(probs - ref)))
    assert bool(jnp.allclose(probs, ref, atol=2e-3, rtol=2e-2)), (
        f"mismatch vs pure-JAX reference, max abs err {max_err}")

    print("KERNEL_OK")
</pallas_src>

<mosaic_0001>
module attributes {stable_mosaic.version = 11 : i64} {
  func.func @_attention_kernel(%arg0: i32, %arg1: i32, %arg2: memref<1x8x32xf32, #tpu.memory_space<vmem>>, %arg3: memref<1x8x64xf32, #tpu.memory_space<vmem>>, %arg4: memref<1x8x32xf32, #tpu.memory_space<vmem>>) attributes {dimension_semantics = [#tpu.dimension_semantics<parallel>, #tpu.dimension_semantics<parallel>], iteration_bounds = array<i64: 2, 1>, scalar_prefetch = 0 : i64, scratch_operands = 0 : i64, tpu.core_type = #tpu.core_type<tc>, window_params = [{transform_indices = @transform_0, window_bounds = array<i64: 1, 8, 32>}, {transform_indices = @transform_1, window_bounds = array<i64: 1, 8, 64>}, {transform_indices = @transform_2, window_bounds = array<i64: 1, 8, 32>}]} {
    %c0 = arith.constant 0 : index
    %c0_0 = arith.constant 0 : index
    %c0_1 = arith.constant 0 : index
    %0 = vector.load %arg2[%c0, %c0_0, %c0_1] : memref<1x8x32xf32, #tpu.memory_space<vmem>>, vector<1x8x32xf32>
    %1 = vector.shape_cast %0 : vector<1x8x32xf32> to vector<8x32xf32>
    %c0_2 = arith.constant 0 : index
    %c0_3 = arith.constant 0 : index
    %c0_4 = arith.constant 0 : index
    %2 = vector.load %arg3[%c0_2, %c0_3, %c0_4] : memref<1x8x64xf32, #tpu.memory_space<vmem>>, vector<1x8x64xf32>
    %3 = vector.shape_cast %2 : vector<1x8x64xf32> to vector<8x64xf32>
    %4 = vector.extract_strided_slice %3 {offsets = [0, 0], sizes = [8, 32], strides = [1, 1]} : vector<8x64xf32> to vector<8x32xf32>
    %5 = vector.extract_strided_slice %3 {offsets = [0, 32], sizes = [8, 32], strides = [1, 1]} : vector<8x64xf32> to vector<8x32xf32>
    %6 = vector.extract_strided_slice %1 {offsets = [0, 0], sizes = [8, 8], strides = [1, 1]} : vector<8x32xf32> to vector<8x8xf32>
    %cst = arith.constant 0.353553385 : f32
    %7 = vector.broadcast %cst : f32 to vector<8x8xf32>
    %8 = arith.mulf %6, %7 : vector<8x8xf32>
    %9 = arith.truncf %8 : vector<8x8xf32> to vector<8x8xbf16>
    %10 = vector.extract_strided_slice %4 {offsets = [0, 0], sizes = [8, 8], strides = [1, 1]} : vector<8x32xf32> to vector<8x8xf32>
    %11 = arith.truncf %10 : vector<8x8xf32> to vector<8x8xbf16>
    %12 = vector.extract_strided_slice %5 {offsets = [0, 0], sizes = [8, 8], strides = [1, 1]} : vector<8x32xf32> to vector<8x8xf32>
    %13 = arith.truncf %12 : vector<8x8xf32> to vector<8x8xbf16>
    %cst_5 = arith.constant dense<0.000000e+00> : vector<8x8xf32>
    %14 = tpu.matmul %9, %11, %cst_5 {dimension_numbers = #tpu.dot_dimension_numbers<[1], [1], [0], [0], [0, 0, 1, 0], [], []>} : vector<8x8xbf16>, vector<8x8xbf16>, vector<8x8xf32> -> vector<8x8xf32>
    %cst_6 = arith.constant dense<0xFF800000> : vector<8xf32>
    %15 = vector.multi_reduction <maximumf>, %14, %cst_6 [1] : vector<8x8xf32> to vector<8xf32>
    %16 = vector.shape_cast %15 : vector<8xf32> to vector<8x1xf32>
    %17 = vector.broadcast %16 : vector<8x1xf32> to vector<8x8xf32>
    %18 = arith.subf %14, %17 : vector<8x8xf32>
    %19 = math.exp %18 : vector<8x8xf32>
    %cst_7 = arith.constant dense<0.000000e+00> : vector<8xf32>
    %20 = vector.multi_reduction <add>, %19, %cst_7 [1] : vector<8x8xf32> to vector<8xf32>
    %21 = vector.shape_cast %20 : vector<8xf32> to vector<8x1xf32>
    %22 = tpu.reciprocal %21 {approx = true} : vector<8x1xf32> -> vector<8x1xf32>
    %23 = vector.broadcast %22 : vector<8x1xf32> to vector<8x8xf32>
    %24 = arith.mulf %19, %23 : vector<8x8xf32>
    %25 = arith.truncf %24 : vector<8x8xf32> to vector<8x8xbf16>
    %cst_8 = arith.constant dense<0.000000e+00> : vector<8x8xf32>
    %26 = tpu.matmul %25, %13, %cst_8 {dimension_numbers = #tpu.dot_dimension_numbers<[1], [0], [0], [1], [0, 0, 1, 1], [], []>} : vector<8x8xbf16>, vector<8x8xbf16>, vector<8x8xf32> -> vector<8x8xf32>
    %27 = vector.extract_strided_slice %1 {offsets = [0, 8], sizes = [8, 8], strides = [1, 1]} : vector<8x32xf32> to vector<8x8xf32>
    %cst_9 = arith.constant 0.353553385 : f32
    %28 = vector.broadcast %cst_9 : f32 to vector<8x8xf32>
    %29 = arith.mulf %27, %28 : vector<8x8xf32>
    %30 = arith.truncf %29 : vector<8x8xf32> to vector<8x8xbf16>
    %31 = vector.extract_strided_slice %4 {offsets = [0, 8], sizes = [8, 8], strides = [1, 1]} : vector<8x32xf32> to vector<8x8xf32>
    %32 = arith.truncf %31 : vector<8x8xf32> to vector<8x8xbf16>
    %33 = vector.extract_strided_slice %5 {offsets = [0, 8], sizes = [8, 8], strides = [1, 1]} : vector<8x32xf32> to vector<8x8xf32>
    %34 = arith.truncf %33 : vector<8x8xf32> to vector<8x8xbf16>
    %cst_10 = arith.constant dense<0.000000e+00> : vector<8x8xf32>
    %35 = tpu.matmul %30, %32, %cst_10 {dimension_numbers = #tpu.dot_dimension_numbers<[1], [1], [0], [0], [0, 0, 1, 0], [], []>} : vector<8x8xbf16>, vector<8x8xbf16>, vector<8x8xf32> -> vector<8x8xf32>
    %cst_11 = arith.constant dense<0xFF800000> : vector<8xf32>
    %36 = vector.multi_reduction <maximumf>, %35, %cst_11 [1] : vector<8x8xf32> to vector<8xf32>
    %37 = vector.shape_cast %36 : vector<8xf32> to vector<8x1xf32>
    %38 = vector.broadcast %37 : vector<8x1xf32> to vector<8x8xf32>
    %39 = arith.subf %35, %38 : vector<8x8xf32>
    %40 = math.exp %39 : vector<8x8xf32>
    %cst_12 = arith.constant dense<0.000000e+00> : vector<8xf32>
    %41 = vector.multi_reduction <add>, %40, %cst_12 [1] : vector<8x8xf32> to vector<8xf32>
    %42 = vector.shape_cast %41 : vector<8xf32> to vector<8x1xf32>
    %43 = tpu.reciprocal %42 {approx = true} : vector<8x1xf32> -> vector<8x1xf32>
    %44 = vector.broadcast %43 : vector<8x1xf32> to vector<8x8xf32>
    %45 = arith.mulf %40, %44 : vector<8x8xf32>
    %46 = arith.truncf %45 : vector<8x8xf32> to vector<8x8xbf16>
    %cst_13 = arith.constant dense<0.000000e+00> : vector<8x8xf32>
    %47 = tpu.matmul %46, %34, %cst_13 {dimension_numbers = #tpu.dot_dimension_numbers<[1], [0], [0], [1], [0, 0, 1, 1], [], []>} : vector<8x8xbf16>, vector<8x8xbf16>, vector<8x8xf32> -> vector<8x8xf32>
    %48 = vector.extract_strided_slice %1 {offsets = [0, 16], sizes = [8, 8], strides = [1, 1]} : vector<8x32xf32> to vector<8x8xf32>
    %cst_14 = arith.constant 0.353553385 : f32
    %49 = vector.broadcast %cst_14 : f32 to vector<8x8xf32>
    %50 = arith.mulf %48, %49 : vector<8x8xf32>
    %51 = arith.truncf %50 : vector<8x8xf32> to vector<8x8xbf16>
    %52 = vector.extract_strided_slice %4 {offsets = [0, 16], sizes = [8, 8], strides = [1, 1]} : vector<8x32xf32> to vector<8x8xf32>
    %53 = arith.truncf %52 : vector<8x8xf32> to vector<8x8xbf16>
    %54 = vector.extract_strided_slice %5 {offsets = [0, 16], sizes = [8, 8], strides = [1, 1]} : vector<8x32xf32> to vector<8x8xf32>
    %55 = arith.truncf %54 : vector<8x8xf32> to vector<8x8xbf16>
    %cst_15 = arith.constant dense<0.000000e+00> : vector<8x8xf32>
    %56 = tpu.matmul %51, %53, %cst_15 {dimension_numbers = #tpu.dot_dimension_numbers<[1], [1], [0], [0], [0, 0, 1, 0], [], []>} : vector<8x8xbf16>, vector<8x8xbf16>, vector<8x8xf32> -> vector<8x8xf32>
    %cst_16 = arith.constant dense<0xFF800000> : vector<8xf32>
    %57 = vector.multi_reduction <maximumf>, %56, %cst_16 [1] : vector<8x8xf32> to vector<8xf32>
    %58 = vector.shape_cast %57 : vector<8xf32> to vector<8x1xf32>
    %59 = vector.broadcast %58 : vector<8x1xf32> to vector<8x8xf32>
    %60 = arith.subf %56, %59 : vector<8x8xf32>
    %61 = math.exp %60 : vector<8x8xf32>
    %cst_17 = arith.constant dense<0.000000e+00> : vector<8xf32>
    %62 = vector.multi_reduction <add>, %61, %cst_17 [1] : vector<8x8xf32> to vector<8xf32>
    %63 = vector.shape_cast %62 : vector<8xf32> to vector<8x1xf32>
    %64 = tpu.reciprocal %63 {approx = true} : vector<8x1xf32> -> vector<8x1xf32>
    %65 = vector.broadcast %64 : vector<8x1xf32> to vector<8x8xf32>
    %66 = arith.mulf %61, %65 : vector<8x8xf32>
    %67 = arith.truncf %66 : vector<8x8xf32> to vector<8x8xbf16>
    %cst_18 = arith.constant dense<0.000000e+00> : vector<8x8xf32>
    %68 = tpu.matmul %67, %55, %cst_18 {dimension_numbers = #tpu.dot_dimension_numbers<[1], [0], [0], [1], [0, 0, 1, 1], [], []>} : vector<8x8xbf16>, vector<8x8xbf16>, vector<8x8xf32> -> vector<8x8xf32>
    %69 = vector.extract_strided_slice %1 {offsets = [0, 24], sizes = [8, 8], strides = [1, 1]} : vector<8x32xf32> to vector<8x8xf32>
    %cst_19 = arith.constant 0.353553385 : f32
    %70 = vector.broadcast %cst_19 : f32 to vector<8x8xf32>
    %71 = arith.mulf %69, %70 : vector<8x8xf32>
    %72 = arith.truncf %71 : vector<8x8xf32> to vector<8x8xbf16>
    %73 = vector.extract_strided_slice %4 {offsets = [0, 24], sizes = [8, 8], strides = [1, 1]} : vector<8x32xf32> to vector<8x8xf32>
    %74 = arith.truncf %73 : vector<8x8xf32> to vector<8x8xbf16>
    %75 = vector.extract_strided_slice %5 {offsets = [0, 24], sizes = [8, 8], strides = [1, 1]} : vector<8x32xf32> to vector<8x8xf32>
    %76 = arith.truncf %75 : vector<8x8xf32> to vector<8x8xbf16>
    %cst_20 = arith.constant dense<0.000000e+00> : vector<8x8xf32>
    %77 = tpu.matmul %72, %74, %cst_20 {dimension_numbers = #tpu.dot_dimension_numbers<[1], [1], [0], [0], [0, 0, 1, 0], [], []>} : vector<8x8xbf16>, vector<8x8xbf16>, vector<8x8xf32> -> vector<8x8xf32>
    %cst_21 = arith.constant dense<0xFF800000> : vector<8xf32>
    %78 = vector.multi_reduction <maximumf>, %77, %cst_21 [1] : vector<8x8xf32> to vector<8xf32>
    %79 = vector.shape_cast %78 : vector<8xf32> to vector<8x1xf32>
    %80 = vector.broadcast %79 : vector<8x1xf32> to vector<8x8xf32>
    %81 = arith.subf %77, %80 : vector<8x8xf32>
    %82 = math.exp %81 : vector<8x8xf32>
    %cst_22 = arith.constant dense<0.000000e+00> : vector<8xf32>
    %83 = vector.multi_reduction <add>, %82, %cst_22 [1] : vector<8x8xf32> to vector<8xf32>
    %84 = vector.shape_cast %83 : vector<8xf32> to vector<8x1xf32>
    %85 = tpu.reciprocal %84 {approx = true} : vector<8x1xf32> -> vector<8x1xf32>
    %86 = vector.broadcast %85 : vector<8x1xf32> to vector<8x8xf32>
    %87 = arith.mulf %82, %86 : vector<8x8xf32>
    %88 = arith.truncf %87 : vector<8x8xf32> to vector<8x8xbf16>
    %cst_23 = arith.constant dense<0.000000e+00> : vector<8x8xf32>
    %89 = tpu.matmul %88, %76, %cst_23 {dimension_numbers = #tpu.dot_dimension_numbers<[1], [0], [0], [1], [0, 0, 1, 1], [], []>} : vector<8x8xbf16>, vector<8x8xbf16>, vector<8x8xf32> -> vector<8x8xf32>
    %90 = tpu.concatenate %26, %47, %68, %89 in 1 : vector<8x8xf32>, vector<8x8xf32>, vector<8x8xf32>, vector<8x8xf32> -> vector<8x32xf32>
    %c0_24 = arith.constant 0 : index
    %c0_25 = arith.constant 0 : index
    %c0_26 = arith.constant 0 : index
    %91 = vector.load %arg4[%c0_24, %c0_25, %c0_26] : memref<1x8x32xf32, #tpu.memory_space<vmem>>, vector<1x8x32xf32>
    %92 = vector.shape_cast %91 : vector<1x8x32xf32> to vector<8x32xf32>
    %93 = vector.shape_cast %90 : vector<8x32xf32> to vector<1x8x32xf32>
    tpu.vector_store %arg4[%c0_24, %c0_25, %c0_26], %93 {strides = array<i32>} : memref<1x8x32xf32, #tpu.memory_space<vmem>>, vector<1x8x32xf32>,
    return
  }
  func.func @transform_0(%arg0: i32, %arg1: i32) -> (i32, i32, i32) {
    %c0_i32 = arith.constant 0 : i32
    %c0_i32_0 = arith.constant 0 : i32
    return %arg0, %arg1, %c0_i32 : i32, i32, i32
  }
  func.func @transform_1(%arg0: i32, %arg1: i32) -> (i32, i32, i32) {
    %c0_i32 = arith.constant 0 : i32
    %c0_i32_0 = arith.constant 0 : i32
    %c0_i32_1 = arith.constant 0 : i32
    return %arg0, %c0_i32, %c0_i32_0 : i32, i32, i32
  }
  func.func @transform_2(%arg0: i32, %arg1: i32) -> (i32, i32, i32) {
    %c0_i32 = arith.constant 0 : i32
    %c0_i32_0 = arith.constant 0 : i32
    return %arg0, %arg1, %c0_i32 : i32, i32, i32
  }
}

module attributes {stable_mosaic.version = 11 : i64} {
  func.func @_linear_kernel(%arg0: i32, %arg1: i32, %arg2: i32, %arg3: memref<16x32xf32, #tpu.memory_space<vmem>>, %arg4: memref<32x32xbf16, #tpu.memory_space<vmem>>, %arg5: memref<1x32xf32, #tpu.memory_space<vmem>>, %arg6: memref<16x32xf32, #tpu.memory_space<vmem>>, %arg7: memref<16x32xf32, #tpu.memory_space<vmem>>) attributes {dimension_semantics = [#tpu.dimension_semantics<parallel>, #tpu.dimension_semantics<parallel>, #tpu.dimension_semantics<arbitrary>], iteration_bounds = array<i64: 1, 1, 1>, scalar_prefetch = 0 : i64, scratch_operands = 1 : i64, tpu.core_type = #tpu.core_type<tc>, window_params = [{transform_indices = @transform_0, window_bounds = array<i64: 16, 32>}, {transform_indices = @transform_1, window_bounds = array<i64: 32, 32>}, {transform_indices = @transform_2, window_bounds = array<i64: 1, 32>}, {transform_indices = @transform_3, window_bounds = array<i64: 16, 32>}]} {
    %c0_i32 = arith.constant 0 : i32
    %0 = arith.cmpi eq, %arg2, %c0_i32 : i32
    %1 = arith.extui %0 : i1 to i32
    %c0_i32_0 = arith.constant 0 : i32
    %2 = arith.cmpi ne, %1, %c0_i32_0 : i32
    scf.if %2 {
      %cst_10 = arith.constant 0.000000e+00 : f32
      %13 = vector.broadcast %cst_10 : f32 to vector<16x32xf32>
      %c0_11 = arith.constant 0 : index
      %c0_12 = arith.constant 0 : index
      %14 = vector.load %arg7[%c0_11, %c0_12] : memref<16x32xf32, #tpu.memory_space<vmem>>, vector<16x32xf32>
      tpu.vector_store %arg7[%c0_11, %c0_12], %13 {strides = array<i32>} : memref<16x32xf32, #tpu.memory_space<vmem>>, vector<16x32xf32>,
    } else {
    }
    %c0 = arith.constant 0 : index
    %c0_1 = arith.constant 0 : index
    %3 = vector.load %arg7[%c0, %c0_1] : memref<16x32xf32, #tpu.memory_space<vmem>>, vector<16x32xf32>
    %c0_2 = arith.constant 0 : index
    %c0_3 = arith.constant 0 : index
    %4 = vector.load %arg3[%c0_2, %c0_3] : memref<16x32xf32, #tpu.memory_space<vmem>>, vector<16x32xf32>
    %5 = arith.truncf %4 : vector<16x32xf32> to vector<16x32xbf16>
    %c0_4 = arith.constant 0 : index
    %c0_5 = arith.constant 0 : index
    %6 = vector.load %arg4[%c0_4, %c0_5] : memref<32x32xbf16, #tpu.memory_space<vmem>>, vector<32x32xbf16>
    %cst = arith.constant dense<0.000000e+00> : vector<16x32xf32>
    %7 = tpu.matmul %5, %6, %cst {dimension_numbers = #tpu.dot_dimension_numbers<[1], [0], [0], [1], [0, 0, 1, 1], [], []>} : vector<16x32xbf16>, vector<32x32xbf16>, vector<16x32xf32> -> vector<16x32xf32>
    %8 = arith.addf %3, %7 : vector<16x32xf32>
    %c0_6 = arith.constant 0 : index
    %c0_7 = arith.constant 0 : index
    %9 = vector.load %arg7[%c0_6, %c0_7] : memref<16x32xf32, #tpu.memory_space<vmem>>, vector<16x32xf32>
    tpu.vector_store %arg7[%c0_6, %c0_7], %8 {strides = array<i32>} : memref<16x32xf32, #tpu.memory_space<vmem>>, vector<16x32xf32>,
    %c0_i32_8 = arith.constant 0 : i32
    %10 = arith.cmpi eq, %arg2, %c0_i32_8 : i32
    %11 = arith.extui %10 : i1 to i32
    %c0_i32_9 = arith.constant 0 : i32
    %12 = arith.cmpi ne, %11, %c0_i32_9 : i32
    scf.if %12 {
      %c0_10 = arith.constant 0 : index
      %c0_11 = arith.constant 0 : index
      %13 = vector.load %arg7[%c0_10, %c0_11] : memref<16x32xf32, #tpu.memory_space<vmem>>, vector<16x32xf32>
      %c0_12 = arith.constant 0 : index
      %c0_13 = arith.constant 0 : index
      %14 = vector.load %arg5[%c0_12, %c0_13] : memref<1x32xf32, #tpu.memory_space<vmem>>, vector<1x32xf32>
      %15 = vector.broadcast %14 : vector<1x32xf32> to vector<16x32xf32>
      %16 = arith.addf %13, %15 : vector<16x32xf32>
      %c0_14 = arith.constant 0 : index
      %c0_15 = arith.constant 0 : index
      %17 = vector.load %arg6[%c0_14, %c0_15] : memref<16x32xf32, #tpu.memory_space<vmem>>, vector<16x32xf32>
      tpu.vector_store %arg6[%c0_14, %c0_15], %16 {strides = array<i32>} : memref<16x32xf32, #tpu.memory_space<vmem>>, vector<16x32xf32>,
    } else {
    }
    return
  }
  func.func @transform_0(%arg0: i32, %arg1: i32, %arg2: i32) -> (i32, i32) {
    %c0_i32 = arith.constant 0 : i32
    return %arg0, %arg2 : i32, i32
  }
  func.func @transform_1(%arg0: i32, %arg1: i32, %arg2: i32) -> (i32, i32) {
    %c0_i32 = arith.constant 0 : i32
    return %arg2, %arg1 : i32, i32
  }
  func.func @transform_2(%arg0: i32, %arg1: i32, %arg2: i32) -> (i32, i32) {
    %c0_i32 = arith.constant 0 : i32
    %c0_i32_0 = arith.constant 0 : i32
    return %c0_i32, %arg1 : i32, i32
  }
  func.func @transform_3(%arg0: i32, %arg1: i32, %arg2: i32) -> (i32, i32) {
    %c0_i32 = arith.constant 0 : i32
    return %arg0, %arg1 : i32, i32
  }
}

module attributes {stable_mosaic.version = 11 : i64} {
  func.func @_linear_kernel(%arg0: i32, %arg1: i32, %arg2: i32, %arg3: memref<16x32xf32, #tpu.memory_space<vmem>>, %arg4: memref<32x64xbf16, #tpu.memory_space<vmem>>, %arg5: memref<1x64xf32, #tpu.memory_space<vmem>>, %arg6: memref<16x64xf32, #tpu.memory_space<vmem>>, %arg7: memref<16x64xf32, #tpu.memory_space<vmem>>) attributes {dimension_semantics = [#tpu.dimension_semantics<parallel>, #tpu.dimension_semantics<parallel>, #tpu.dimension_semantics<arbitrary>], iteration_bounds = array<i64: 1, 1, 1>, scalar_prefetch = 0 : i64, scratch_operands = 1 : i64, tpu.core_type = #tpu.core_type<tc>, window_params = [{transform_indices = @transform_0, window_bounds = array<i64: 16, 32>}, {transform_indices = @transform_1, window_bounds = array<i64: 32, 64>}, {transform_indices = @transform_2, window_bounds = array<i64: 1, 64>}, {transform_indices = @transform_3, window_bounds = array<i64: 16, 64>}]} {
    %c0_i32 = arith.constant 0 : i32
    %0 = arith.cmpi eq, %arg2, %c0_i32 : i32
    %1 = arith.extui %0 : i1 to i32
    %c0_i32_0 = arith.constant 0 : i32
    %2 = arith.cmpi ne, %1, %c0_i32_0 : i32
    scf.if %2 {
      %cst_10 = arith.constant 0.000000e+00 : f32
      %13 = vector.broadcast %cst_10 : f32 to vector<16x64xf32>
      %c0_11 = arith.constant 0 : index
      %c0_12 = arith.constant 0 : index
      %14 = vector.load %arg7[%c0_11, %c0_12] : memref<16x64xf32, #tpu.memory_space<vmem>>, vector<16x64xf32>
      tpu.vector_store %arg7[%c0_11, %c0_12], %13 {strides = array<i32>} : memref<16x64xf32, #tpu.memory_space<vmem>>, vector<16x64xf32>,
    } else {
    }
    %c0 = arith.constant 0 : index
    %c0_1 = arith.constant 0 : index
    %3 = vector.load %arg7[%c0, %c0_1] : memref<16x64xf32, #tpu.memory_space<vmem>>, vector<16x64xf32>
    %c0_2 = arith.constant 0 : index
    %c0_3 = arith.constant 0 : index
    %4 = vector.load %arg3[%c0_2, %c0_3] : memref<16x32xf32, #tpu.memory_space<vmem>>, vector<16x32xf32>
    %5 = arith.truncf %4 : vector<16x32xf32> to vector<16x32xbf16>
    %c0_4 = arith.constant 0 : index
    %c0_5 = arith.constant 0 : index
    %6 = vector.load %arg4[%c0_4, %c0_5] : memref<32x64xbf16, #tpu.memory_space<vmem>>, vector<32x64xbf16>
    %cst = arith.constant dense<0.000000e+00> : vector<16x64xf32>
    %7 = tpu.matmul %5, %6, %cst {dimension_numbers = #tpu.dot_dimension_numbers<[1], [0], [0], [1], [0, 0, 1, 1], [], []>} : vector<16x32xbf16>, vector<32x64xbf16>, vector<16x64xf32> -> vector<16x64xf32>
    %8 = arith.addf %3, %7 : vector<16x64xf32>
    %c0_6 = arith.constant 0 : index
    %c0_7 = arith.constant 0 : index
    %9 = vector.load %arg7[%c0_6, %c0_7] : memref<16x64xf32, #tpu.memory_space<vmem>>, vector<16x64xf32>
    tpu.vector_store %arg7[%c0_6, %c0_7], %8 {strides = array<i32>} : memref<16x64xf32, #tpu.memory_space<vmem>>, vector<16x64xf32>,
    %c0_i32_8 = arith.constant 0 : i32
    %10 = arith.cmpi eq, %arg2, %c0_i32_8 : i32
    %11 = arith.extui %10 : i1 to i32
    %c0_i32_9 = arith.constant 0 : i32
    %12 = arith.cmpi ne, %11, %c0_i32_9 : i32
    scf.if %12 {
      %c0_10 = arith.constant 0 : index
      %c0_11 = arith.constant 0 : index
      %13 = vector.load %arg7[%c0_10, %c0_11] : memref<16x64xf32, #tpu.memory_space<vmem>>, vector<16x64xf32>
      %c0_12 = arith.constant 0 : index
      %c0_13 = arith.constant 0 : index
      %14 = vector.load %arg5[%c0_12, %c0_13] : memref<1x64xf32, #tpu.memory_space<vmem>>, vector<1x64xf32>
      %15 = vector.broadcast %14 : vector<1x64xf32> to vector<16x64xf32>
      %16 = arith.addf %13, %15 : vector<16x64xf32>
      %c0_14 = arith.constant 0 : index
      %c0_15 = arith.constant 0 : index
      %17 = vector.load %arg6[%c0_14, %c0_15] : memref<16x64xf32, #tpu.memory_space<vmem>>, vector<16x64xf32>
      tpu.vector_store %arg6[%c0_14, %c0_15], %16 {strides = array<i32>} : memref<16x64xf32, #tpu.memory_space<vmem>>, vector<16x64xf32>,
    } else {
    }
    return
  }
  func.func @transform_0(%arg0: i32, %arg1: i32, %arg2: i32) -> (i32, i32) {
    %c0_i32 = arith.constant 0 : i32
    return %arg0, %arg2 : i32, i32
  }
  func.func @transform_1(%arg0: i32, %arg1: i32, %arg2: i32) -> (i32, i32) {
    %c0_i32 = arith.constant 0 : i32
    return %arg2, %arg1 : i32, i32
  }
  func.func @transform_2(%arg0: i32, %arg1: i32, %arg2: i32) -> (i32, i32) {
    %c0_i32 = arith.constant 0 : i32
    %c0_i32_0 = arith.constant 0 : i32
    return %c0_i32, %arg1 : i32, i32
  }
  func.func @transform_3(%arg0: i32, %arg1: i32, %arg2: i32) -> (i32, i32) {
    %c0_i32 = arith.constant 0 : i32
    return %arg0, %arg1 : i32, i32
  }
}

module attributes {stable_mosaic.version = 11 : i64} {
  func.func @_add_layernorm_kernel(%arg0: i32, %arg1: memref<16x32xf32, #tpu.memory_space<vmem>>, %arg2: memref<16x32xf32, #tpu.memory_space<vmem>>, %arg3: memref<1x32xf32, #tpu.memory_space<vmem>>, %arg4: memref<1x32xf32, #tpu.memory_space<vmem>>, %arg5: memref<16x32xf32, #tpu.memory_space<vmem>>) attributes {dimension_semantics = [#tpu.dimension_semantics<parallel>], iteration_bounds = array<i64: 1>, scalar_prefetch = 0 : i64, scratch_operands = 0 : i64, tpu.core_type = #tpu.core_type<tc>, window_params = [{transform_indices = @transform_0, window_bounds = array<i64: 16, 32>}, {transform_indices = @transform_1, window_bounds = array<i64: 16, 32>}, {pipeline_mode = #tpu.pipeline_mode<synchronous>, transform_indices = @transform_2, window_bounds = array<i64: 1, 32>}, {pipeline_mode = #tpu.pipeline_mode<synchronous>, transform_indices = @transform_3, window_bounds = array<i64: 1, 32>}, {transform_indices = @transform_4, window_bounds = array<i64: 16, 32>}]} {
    %c0 = arith.constant 0 : index
    %c0_0 = arith.constant 0 : index
    %0 = vector.load %arg1[%c0, %c0_0] : memref<16x32xf32, #tpu.memory_space<vmem>>, vector<16x32xf32>
    %c0_1 = arith.constant 0 : index
    %c0_2 = arith.constant 0 : index
    %1 = vector.load %arg2[%c0_1, %c0_2] : memref<16x32xf32, #tpu.memory_space<vmem>>, vector<16x32xf32>
    %2 = arith.addf %0, %1 : vector<16x32xf32>
    %cst = arith.constant dense<0.000000e+00> : vector<16xf32>
    %3 = vector.multi_reduction <add>, %2, %cst [1] : vector<16x32xf32> to vector<16xf32>
    %4 = vector.shape_cast %3 : vector<16xf32> to vector<16x1xf32>
    %cst_3 = arith.constant 3.200000e+01 : f32
    %5 = vector.broadcast %cst_3 : f32 to vector<16x1xf32>
    %6 = arith.divf %4, %5 : vector<16x1xf32>
    %7 = vector.broadcast %6 : vector<16x1xf32> to vector<16x32xf32>
    %8 = arith.subf %2, %7 : vector<16x32xf32>
    %9 = arith.mulf %8, %8 : vector<16x32xf32>
    %cst_4 = arith.constant dense<0.000000e+00> : vector<16xf32>
    %10 = vector.multi_reduction <add>, %9, %cst_4 [1] : vector<16x32xf32> to vector<16xf32>
    %11 = vector.shape_cast %10 : vector<16xf32> to vector<16x1xf32>
    %cst_5 = arith.constant 3.200000e+01 : f32
    %12 = vector.broadcast %cst_5 : f32 to vector<16x1xf32>
    %13 = arith.divf %11, %12 : vector<16x1xf32>
    %14 = vector.broadcast %6 : vector<16x1xf32> to vector<16x32xf32>
    %15 = arith.subf %2, %14 : vector<16x32xf32>
    %cst_6 = arith.constant 9.99999974E-6 : f32
    %16 = vector.broadcast %cst_6 : f32 to vector<16x1xf32>
    %17 = arith.addf %13, %16 : vector<16x1xf32>
    %18 = math.rsqrt %17 : vector<16x1xf32>
    %19 = vector.broadcast %18 : vector<16x1xf32> to vector<16x32xf32>
    %20 = arith.mulf %15, %19 : vector<16x32xf32>
    %c0_7 = arith.constant 0 : index
    %c0_8 = arith.constant 0 : index
    %21 = vector.load %arg3[%c0_7, %c0_8] : memref<1x32xf32, #tpu.memory_space<vmem>>, vector<1x32xf32>
    %22 = vector.broadcast %21 : vector<1x32xf32> to vector<16x32xf32>
    %23 = arith.mulf %20, %22 : vector<16x32xf32>
    %c0_9 = arith.constant 0 : index
    %c0_10 = arith.constant 0 : index
    %24 = vector.load %arg4[%c0_9, %c0_10] : memref<1x32xf32, #tpu.memory_space<vmem>>, vector<1x32xf32>
    %25 = vector.broadcast %24 : vector<1x32xf32> to vector<16x32xf32>
    %26 = arith.addf %23, %25 : vector<16x32xf32>
    %c0_11 = arith.constant 0 : index
    %c0_12 = arith.constant 0 : index
    %27 = vector.load %arg5[%c0_11, %c0_12] : memref<16x32xf32, #tpu.memory_space<vmem>>, vector<16x32xf32>
    tpu.vector_store %arg5[%c0_11, %c0_12], %26 {strides = array<i32>} : memref<16x32xf32, #tpu.memory_space<vmem>>, vector<16x32xf32>,
    return
  }
  func.func @transform_0(%arg0: i32) -> (i32, i32) {
    %c0_i32 = arith.constant 0 : i32
    %c0_i32_0 = arith.constant 0 : i32
    return %arg0, %c0_i32 : i32, i32
  }
  func.func @transform_1(%arg0: i32) -> (i32, i32) {
    %c0_i32 = arith.constant 0 : i32
    %c0_i32_0 = arith.constant 0 : i32
    return %arg0, %c0_i32 : i32, i32
  }
  func.func @transform_2(%arg0: i32) -> (i32, i32) {
    %c0_i32 = arith.constant 0 : i32
    %c0_i32_0 = arith.constant 0 : i32
    %c0_i32_1 = arith.constant 0 : i32
    return %c0_i32, %c0_i32_0 : i32, i32
  }
  func.func @transform_3(%arg0: i32) -> (i32, i32) {
    %c0_i32 = arith.constant 0 : i32
    %c0_i32_0 = arith.constant 0 : i32
    %c0_i32_1 = arith.constant 0 : i32
    return %c0_i32, %c0_i32_0 : i32, i32
  }
  func.func @transform_4(%arg0: i32) -> (i32, i32) {
    %c0_i32 = arith.constant 0 : i32
    %c0_i32_0 = arith.constant 0 : i32
    return %arg0, %c0_i32 : i32, i32
  }
}

module attributes {stable_mosaic.version = 11 : i64} {
  func.func @_linear_kernel(%arg0: i32, %arg1: i32, %arg2: i32, %arg3: memref<16x32xf32, #tpu.memory_space<vmem>>, %arg4: memref<32x128xbf16, #tpu.memory_space<vmem>>, %arg5: memref<1x128xf32, #tpu.memory_space<vmem>>, %arg6: memref<16x128xf32, #tpu.memory_space<vmem>>, %arg7: memref<16x128xf32, #tpu.memory_space<vmem>>) attributes {dimension_semantics = [#tpu.dimension_semantics<parallel>, #tpu.dimension_semantics<parallel>, #tpu.dimension_semantics<arbitrary>], iteration_bounds = array<i64: 1, 1, 1>, scalar_prefetch = 0 : i64, scratch_operands = 1 : i64, tpu.core_type = #tpu.core_type<tc>, window_params = [{transform_indices = @transform_0, window_bounds = array<i64: 16, 32>}, {transform_indices = @transform_1, window_bounds = array<i64: 32, 128>}, {transform_indices = @transform_2, window_bounds = array<i64: 1, 128>}, {transform_indices = @transform_3, window_bounds = array<i64: 16, 128>}]} {
    %c0_i32 = arith.constant 0 : i32
    %0 = arith.cmpi eq, %arg2, %c0_i32 : i32
    %1 = arith.extui %0 : i1 to i32
    %c0_i32_0 = arith.constant 0 : i32
    %2 = arith.cmpi ne, %1, %c0_i32_0 : i32
    scf.if %2 {
      %cst_10 = arith.constant 0.000000e+00 : f32
      %13 = vector.broadcast %cst_10 : f32 to vector<16x128xf32>
      %c0_11 = arith.constant 0 : index
      %c0_12 = arith.constant 0 : index
      %14 = vector.load %arg7[%c0_11, %c0_12] : memref<16x128xf32, #tpu.memory_space<vmem>>, vector<16x128xf32>
      tpu.vector_store %arg7[%c0_11, %c0_12], %13 {strides = array<i32>} : memref<16x128xf32, #tpu.memory_space<vmem>>, vector<16x128xf32>,
    } else {
    }
    %c0 = arith.constant 0 : index
    %c0_1 = arith.constant 0 : index
    %3 = vector.load %arg7[%c0, %c0_1] : memref<16x128xf32, #tpu.memory_space<vmem>>, vector<16x128xf32>
    %c0_2 = arith.constant 0 : index
    %c0_3 = arith.constant 0 : index
    %4 = vector.load %arg3[%c0_2, %c0_3] : memref<16x32xf32, #tpu.memory_space<vmem>>, vector<16x32xf32>
    %5 = arith.truncf %4 : vector<16x32xf32> to vector<16x32xbf16>
    %c0_4 = arith.constant 0 : index
    %c0_5 = arith.constant 0 : index
    %6 = vector.load %arg4[%c0_4, %c0_5] : memref<32x128xbf16, #tpu.memory_space<vmem>>, vector<32x128xbf16>
    %cst = arith.constant dense<0.000000e+00> : vector<16x128xf32>
    %7 = tpu.matmul %5, %6, %cst {dimension_numbers = #tpu.dot_dimension_numbers<[1], [0], [0], [1], [0, 0, 1, 1], [], []>} : vector<16x32xbf16>, vector<32x128xbf16>, vector<16x128xf32> -> vector<16x128xf32>
    %8 = arith.addf %3, %7 : vector<16x128xf32>
    %c0_6 = arith.constant 0 : index
    %c0_7 = arith.constant 0 : index
    %9 = vector.load %arg7[%c0_6, %c0_7] : memref<16x128xf32, #tpu.memory_space<vmem>>, vector<16x128xf32>
    tpu.vector_store %arg7[%c0_6, %c0_7], %8 {strides = array<i32>} : memref<16x128xf32, #tpu.memory_space<vmem>>, vector<16x128xf32>,
    %c0_i32_8 = arith.constant 0 : i32
    %10 = arith.cmpi eq, %arg2, %c0_i32_8 : i32
    %11 = arith.extui %10 : i1 to i32
    %c0_i32_9 = arith.constant 0 : i32
    %12 = arith.cmpi ne, %11, %c0_i32_9 : i32
    scf.if %12 {
      %c0_10 = arith.constant 0 : index
      %c0_11 = arith.constant 0 : index
      %13 = vector.load %arg7[%c0_10, %c0_11] : memref<16x128xf32, #tpu.memory_space<vmem>>, vector<16x128xf32>
      %c0_12 = arith.constant 0 : index
      %c0_13 = arith.constant 0 : index
      %14 = vector.load %arg5[%c0_12, %c0_13] : memref<1x128xf32, #tpu.memory_space<vmem>>, vector<1x128xf32>
      %15 = vector.broadcast %14 : vector<1x128xf32> to vector<16x128xf32>
      %16 = arith.addf %13, %15 : vector<16x128xf32>
      %cst_14 = arith.constant 0.000000e+00 : f32
      %17 = vector.broadcast %cst_14 : f32 to vector<16x128xf32>
      %18 = arith.maximumf %16, %17 : vector<16x128xf32>
      %c0_15 = arith.constant 0 : index
      %c0_16 = arith.constant 0 : index
      %19 = vector.load %arg6[%c0_15, %c0_16] : memref<16x128xf32, #tpu.memory_space<vmem>>, vector<16x128xf32>
      tpu.vector_store %arg6[%c0_15, %c0_16], %18 {strides = array<i32>} : memref<16x128xf32, #tpu.memory_space<vmem>>, vector<16x128xf32>,
    } else {
    }
    return
  }
  func.func @transform_0(%arg0: i32, %arg1: i32, %arg2: i32) -> (i32, i32) {
    %c0_i32 = arith.constant 0 : i32
    return %arg0, %arg2 : i32, i32
  }
  func.func @transform_1(%arg0: i32, %arg1: i32, %arg2: i32) -> (i32, i32) {
    %c0_i32 = arith.constant 0 : i32
    return %arg2, %arg1 : i32, i32
  }
  func.func @transform_2(%arg0: i32, %arg1: i32, %arg2: i32) -> (i32, i32) {
    %c0_i32 = arith.constant 0 : i32
    %c0_i32_0 = arith.constant 0 : i32
    return %c0_i32, %arg1 : i32, i32
  }
  func.func @transform_3(%arg0: i32, %arg1: i32, %arg2: i32) -> (i32, i32) {
    %c0_i32 = arith.constant 0 : i32
    return %arg0, %arg1 : i32, i32
  }
}

module attributes {stable_mosaic.version = 11 : i64} {
  func.func @_linear_kernel(%arg0: i32, %arg1: i32, %arg2: i32, %arg3: memref<16x128xf32, #tpu.memory_space<vmem>>, %arg4: memref<128x32xbf16, #tpu.memory_space<vmem>>, %arg5: memref<1x32xf32, #tpu.memory_space<vmem>>, %arg6: memref<16x32xf32, #tpu.memory_space<vmem>>, %arg7: memref<16x32xf32, #tpu.memory_space<vmem>>) attributes {dimension_semantics = [#tpu.dimension_semantics<parallel>, #tpu.dimension_semantics<parallel>, #tpu.dimension_semantics<arbitrary>], iteration_bounds = array<i64: 1, 1, 1>, scalar_prefetch = 0 : i64, scratch_operands = 1 : i64, tpu.core_type = #tpu.core_type<tc>, window_params = [{transform_indices = @transform_0, window_bounds = array<i64: 16, 128>}, {transform_indices = @transform_1, window_bounds = array<i64: 128, 32>}, {transform_indices = @transform_2, window_bounds = array<i64: 1, 32>}, {transform_indices = @transform_3, window_bounds = array<i64: 16, 32>}]} {
    %c0_i32 = arith.constant 0 : i32
    %0 = arith.cmpi eq, %arg2, %c0_i32 : i32
    %1 = arith.extui %0 : i1 to i32
    %c0_i32_0 = arith.constant 0 : i32
    %2 = arith.cmpi ne, %1, %c0_i32_0 : i32
    scf.if %2 {
      %cst_10 = arith.constant 0.000000e+00 : f32
      %13 = vector.broadcast %cst_10 : f32 to vector<16x32xf32>
      %c0_11 = arith.constant 0 : index
      %c0_12 = arith.constant 0 : index
      %14 = vector.load %arg7[%c0_11, %c0_12] : memref<16x32xf32, #tpu.memory_space<vmem>>, vector<16x32xf32>
      tpu.vector_store %arg7[%c0_11, %c0_12], %13 {strides = array<i32>} : memref<16x32xf32, #tpu.memory_space<vmem>>, vector<16x32xf32>,
    } else {
    }
    %c0 = arith.constant 0 : index
    %c0_1 = arith.constant 0 : index
    %3 = vector.load %arg7[%c0, %c0_1] : memref<16x32xf32, #tpu.memory_space<vmem>>, vector<16x32xf32>
    %c0_2 = arith.constant 0 : index
    %c0_3 = arith.constant 0 : index
    %4 = vector.load %arg3[%c0_2, %c0_3] : memref<16x128xf32, #tpu.memory_space<vmem>>, vector<16x128xf32>
    %5 = arith.truncf %4 : vector<16x128xf32> to vector<16x128xbf16>
    %c0_4 = arith.constant 0 : index
    %c0_5 = arith.constant 0 : index
    %6 = vector.load %arg4[%c0_4, %c0_5] : memref<128x32xbf16, #tpu.memory_space<vmem>>, vector<128x32xbf16>
    %cst = arith.constant dense<0.000000e+00> : vector<16x32xf32>
    %7 = tpu.matmul %5, %6, %cst {dimension_numbers = #tpu.dot_dimension_numbers<[1], [0], [0], [1], [0, 0, 1, 1], [], []>} : vector<16x128xbf16>, vector<128x32xbf16>, vector<16x32xf32> -> vector<16x32xf32>
    %8 = arith.addf %3, %7 : vector<16x32xf32>
    %c0_6 = arith.constant 0 : index
    %c0_7 = arith.constant 0 : index
    %9 = vector.load %arg7[%c0_6, %c0_7] : memref<16x32xf32, #tpu.memory_space<vmem>>, vector<16x32xf32>
    tpu.vector_store %arg7[%c0_6, %c0_7], %8 {strides = array<i32>} : memref<16x32xf32, #tpu.memory_space<vmem>>, vector<16x32xf32>,
    %c0_i32_8 = arith.constant 0 : i32
    %10 = arith.cmpi eq, %arg2, %c0_i32_8 : i32
    %11 = arith.extui %10 : i1 to i32
    %c0_i32_9 = arith.constant 0 : i32
    %12 = arith.cmpi ne, %11, %c0_i32_9 : i32
    scf.if %12 {
      %c0_10 = arith.constant 0 : index
      %c0_11 = arith.constant 0 : index
      %13 = vector.load %arg7[%c0_10, %c0_11] : memref<16x32xf32, #tpu.memory_space<vmem>>, vector<16x32xf32>
      %c0_12 = arith.constant 0 : index
      %c0_13 = arith.constant 0 : index
      %14 = vector.load %arg5[%c0_12, %c0_13] : memref<1x32xf32, #tpu.memory_space<vmem>>, vector<1x32xf32>
      %15 = vector.broadcast %14 : vector<1x32xf32> to vector<16x32xf32>
      %16 = arith.addf %13, %15 : vector<16x32xf32>
      %c0_14 = arith.constant 0 : index
      %c0_15 = arith.constant 0 : index
      %17 = vector.load %arg6[%c0_14, %c0_15] : memref<16x32xf32, #tpu.memory_space<vmem>>, vector<16x32xf32>
      tpu.vector_store %arg6[%c0_14, %c0_15], %16 {strides = array<i32>} : memref<16x32xf32, #tpu.memory_space<vmem>>, vector<16x32xf32>,
    } else {
    }
    return
  }
  func.func @transform_0(%arg0: i32, %arg1: i32, %arg2: i32) -> (i32, i32) {
    %c0_i32 = arith.constant 0 : i32
    return %arg0, %arg2 : i32, i32
  }
  func.func @transform_1(%arg0: i32, %arg1: i32, %arg2: i32) -> (i32, i32) {
    %c0_i32 = arith.constant 0 : i32
    return %arg2, %arg1 : i32, i32
  }
  func.func @transform_2(%arg0: i32, %arg1: i32, %arg2: i32) -> (i32, i32) {
    %c0_i32 = arith.constant 0 : i32
    %c0_i32_0 = arith.constant 0 : i32
    return %c0_i32, %arg1 : i32, i32
  }
  func.func @transform_3(%arg0: i32, %arg1: i32, %arg2: i32) -> (i32, i32) {
    %c0_i32 = arith.constant 0 : i32
    return %arg0, %arg1 : i32, i32
  }
}

module attributes {stable_mosaic.version = 11 : i64} {
  func.func @_linear_kernel(%arg0: i32, %arg1: i32, %arg2: i32, %arg3: memref<16x32xf32, #tpu.memory_space<vmem>>, %arg4: memref<32x64xbf16, #tpu.memory_space<vmem>>, %arg5: memref<1x64xf32, #tpu.memory_space<vmem>>, %arg6: memref<16x64xf32, #tpu.memory_space<vmem>>, %arg7: memref<16x64xf32, #tpu.memory_space<vmem>>) attributes {dimension_semantics = [#tpu.dimension_semantics<parallel>, #tpu.dimension_semantics<parallel>, #tpu.dimension_semantics<arbitrary>], iteration_bounds = array<i64: 1, 1, 1>, scalar_prefetch = 0 : i64, scratch_operands = 1 : i64, tpu.core_type = #tpu.core_type<tc>, window_params = [{transform_indices = @transform_0, window_bounds = array<i64: 16, 32>}, {transform_indices = @transform_1, window_bounds = array<i64: 32, 64>}, {transform_indices = @transform_2, window_bounds = array<i64: 1, 64>}, {transform_indices = @transform_3, window_bounds = array<i64: 16, 64>}]} {
    %c0_i32 = arith.constant 0 : i32
    %0 = arith.cmpi eq, %arg2, %c0_i32 : i32
    %1 = arith.extui %0 : i1 to i32
    %c0_i32_0 = arith.constant 0 : i32
    %2 = arith.cmpi ne, %1, %c0_i32_0 : i32
    scf.if %2 {
      %cst_10 = arith.constant 0.000000e+00 : f32
      %13 = vector.broadcast %cst_10 : f32 to vector<16x64xf32>
      %c0_11 = arith.constant 0 : index
      %c0_12 = arith.constant 0 : index
      %14 = vector.load %arg7[%c0_11, %c0_12] : memref<16x64xf32, #tpu.memory_space<vmem>>, vector<16x64xf32>
      tpu.vector_store %arg7[%c0_11, %c0_12], %13 {strides = array<i32>} : memref<16x64xf32, #tpu.memory_space<vmem>>, vector<16x64xf32>,
    } else {
    }
    %c0 = arith.constant 0 : index
    %c0_1 = arith.constant 0 : index
    %3 = vector.load %arg7[%c0, %c0_1] : memref<16x64xf32, #tpu.memory_space<vmem>>, vector<16x64xf32>
    %c0_2 = arith.constant 0 : index
    %c0_3 = arith.constant 0 : index
    %4 = vector.load %arg3[%c0_2, %c0_3] : memref<16x32xf32, #tpu.memory_space<vmem>>, vector<16x32xf32>
    %5 = arith.truncf %4 : vector<16x32xf32> to vector<16x32xbf16>
    %c0_4 = arith.constant 0 : index
    %c0_5 = arith.constant 0 : index
    %6 = vector.load %arg4[%c0_4, %c0_5] : memref<32x64xbf16, #tpu.memory_space<vmem>>, vector<32x64xbf16>
    %cst = arith.constant dense<0.000000e+00> : vector<16x64xf32>
    %7 = tpu.matmul %5, %6, %cst {dimension_numbers = #tpu.dot_dimension_numbers<[1], [0], [0], [1], [0, 0, 1, 1], [], []>} : vector<16x32xbf16>, vector<32x64xbf16>, vector<16x64xf32> -> vector<16x64xf32>
    %8 = arith.addf %3, %7 : vector<16x64xf32>
    %c0_6 = arith.constant 0 : index
    %c0_7 = arith.constant 0 : index
    %9 = vector.load %arg7[%c0_6, %c0_7] : memref<16x64xf32, #tpu.memory_space<vmem>>, vector<16x64xf32>
    tpu.vector_store %arg7[%c0_6, %c0_7], %8 {strides = array<i32>} : memref<16x64xf32, #tpu.memory_space<vmem>>, vector<16x64xf32>,
    %c0_i32_8 = arith.constant 0 : i32
    %10 = arith.cmpi eq, %arg2, %c0_i32_8 : i32
    %11 = arith.extui %10 : i1 to i32
    %c0_i32_9 = arith.constant 0 : i32
    %12 = arith.cmpi ne, %11, %c0_i32_9 : i32
    scf.if %12 {
      %c0_10 = arith.constant 0 : index
      %c0_11 = arith.constant 0 : index
      %13 = vector.load %arg7[%c0_10, %c0_11] : memref<16x64xf32, #tpu.memory_space<vmem>>, vector<16x64xf32>
      %c0_12 = arith.constant 0 : index
      %c0_13 = arith.constant 0 : index
      %14 = vector.load %arg5[%c0_12, %c0_13] : memref<1x64xf32, #tpu.memory_space<vmem>>, vector<1x64xf32>
      %15 = vector.broadcast %14 : vector<1x64xf32> to vector<16x64xf32>
      %16 = arith.addf %13, %15 : vector<16x64xf32>
      %cst_14 = arith.constant dense<0xFF800000> : vector<16xf32>
      %17 = vector.multi_reduction <maximumf>, %16, %cst_14 [1] : vector<16x64xf32> to vector<16xf32>
      %18 = vector.shape_cast %17 : vector<16xf32> to vector<16x1xf32>
      %19 = vector.broadcast %18 : vector<16x1xf32> to vector<16x64xf32>
      %20 = arith.subf %16, %19 : vector<16x64xf32>
      %21 = math.exp %20 : vector<16x64xf32>
      %cst_15 = arith.constant dense<0.000000e+00> : vector<16xf32>
      %22 = vector.multi_reduction <add>, %21, %cst_15 [1] : vector<16x64xf32> to vector<16xf32>
      %23 = vector.shape_cast %22 : vector<16xf32> to vector<16x1xf32>
      %24 = tpu.reciprocal %23 : vector<16x1xf32> -> vector<16x1xf32>
      %25 = vector.broadcast %24 : vector<16x1xf32> to vector<16x64xf32>
      %26 = arith.mulf %21, %25 : vector<16x64xf32>
      %c0_16 = arith.constant 0 : index
      %c0_17 = arith.constant 0 : index
      %27 = vector.load %arg6[%c0_16, %c0_17] : memref<16x64xf32, #tpu.memory_space<vmem>>, vector<16x64xf32>
      tpu.vector_store %arg6[%c0_16, %c0_17], %26 {strides = array<i32>} : memref<16x64xf32, #tpu.memory_space<vmem>>, vector<16x64xf32>,
    } else {
    }
    return
  }
  func.func @transform_0(%arg0: i32, %arg1: i32, %arg2: i32) -> (i32, i32) {
    %c0_i32 = arith.constant 0 : i32
    return %arg0, %arg2 : i32, i32
  }
  func.func @transform_1(%arg0: i32, %arg1: i32, %arg2: i32) -> (i32, i32) {
    %c0_i32 = arith.constant 0 : i32
    return %arg2, %arg1 : i32, i32
  }
  func.func @transform_2(%arg0: i32, %arg1: i32, %arg2: i32) -> (i32, i32) {
    %c0_i32 = arith.constant 0 : i32
    %c0_i32_0 = arith.constant 0 : i32
    return %c0_i32, %arg1 : i32, i32
  }
  func.func @transform_3(%arg0: i32, %arg1: i32, %arg2: i32) -> (i32, i32) {
    %c0_i32 = arith.constant 0 : i32
    return %arg0, %arg1 : i32, i32
  }
}

module attributes {stable_mosaic.version = 11 : i64} {
  func.func @_attention_kernel(%arg0: i32, %arg1: i32, %arg2: memref<1x8x32xf32, #tpu.memory_space<vmem>>, %arg3: memref<1x8x64xf32, #tpu.memory_space<vmem>>, %arg4: memref<1x8x8xf32, #tpu.memory_space<vmem>>, %arg5: memref<1x8x32xf32, #tpu.memory_space<vmem>>) attributes {dimension_semantics = [#tpu.dimension_semantics<parallel>, #tpu.dimension_semantics<parallel>], iteration_bounds = array<i64: 2, 1>, scalar_prefetch = 0 : i64, scratch_operands = 0 : i64, tpu.core_type = #tpu.core_type<tc>, window_params = [{transform_indices = @transform_0, window_bounds = array<i64: 1, 8, 32>}, {transform_indices = @transform_1, window_bounds = array<i64: 1, 8, 64>}, {transform_indices = @transform_2, window_bounds = array<i64: 1, 8, 8>}, {transform_indices = @transform_3, window_bounds = array<i64: 1, 8, 32>}]} {
    %c0 = arith.constant 0 : index
    %c0_0 = arith.constant 0 : index
    %c0_1 = arith.constant 0 : index
    %0 = vector.load %arg4[%c0, %c0_0, %c0_1] : memref<1x8x8xf32, #tpu.memory_space<vmem>>, vector<1x8x8xf32>
    %1 = vector.shape_cast %0 : vector<1x8x8xf32> to vector<8x8xf32>
    %c0_2 = arith.constant 0 : index
    %c0_3 = arith.constant 0 : index
    %c0_4 = arith.constant 0 : index
    %2 = vector.load %arg2[%c0_2, %c0_3, %c0_4] : memref<1x8x32xf32, #tpu.memory_space<vmem>>, vector<1x8x32xf32>
    %3 = vector.shape_cast %2 : vector<1x8x32xf32> to vector<8x32xf32>
    %c0_5 = arith.constant 0 : index
    %c0_6 = arith.constant 0 : index
    %c0_7 = arith.constant 0 : index
    %4 = vector.load %arg3[%c0_5, %c0_6, %c0_7] : memref<1x8x64xf32, #tpu.memory_space<vmem>>, vector<1x8x64xf32>
    %5 = vector.shape_cast %4 : vector<1x8x64xf32> to vector<8x64xf32>
    %6 = vector.extract_strided_slice %5 {offsets = [0, 0], sizes = [8, 32], strides = [1, 1]} : vector<8x64xf32> to vector<8x32xf32>
    %7 = vector.extract_strided_slice %5 {offsets = [0, 32], sizes = [8, 32], strides = [1, 1]} : vector<8x64xf32> to vector<8x32xf32>
    %8 = vector.extract_strided_slice %3 {offsets = [0, 0], sizes = [8, 8], strides = [1, 1]} : vector<8x32xf32> to vector<8x8xf32>
    %cst = arith.constant 0.353553385 : f32
    %9 = vector.broadcast %cst : f32 to vector<8x8xf32>
    %10 = arith.mulf %8, %9 : vector<8x8xf32>
    %11 = arith.truncf %10 : vector<8x8xf32> to vector<8x8xbf16>
    %12 = vector.extract_strided_slice %6 {offsets = [0, 0], sizes = [8, 8], strides = [1, 1]} : vector<8x32xf32> to vector<8x8xf32>
    %13 = arith.truncf %12 : vector<8x8xf32> to vector<8x8xbf16>
    %14 = vector.extract_strided_slice %7 {offsets = [0, 0], sizes = [8, 8], strides = [1, 1]} : vector<8x32xf32> to vector<8x8xf32>
    %15 = arith.truncf %14 : vector<8x8xf32> to vector<8x8xbf16>
    %cst_8 = arith.constant dense<0.000000e+00> : vector<8x8xf32>
    %16 = tpu.matmul %11, %13, %cst_8 {dimension_numbers = #tpu.dot_dimension_numbers<[1], [1], [0], [0], [0, 0, 1, 0], [], []>} : vector<8x8xbf16>, vector<8x8xbf16>, vector<8x8xf32> -> vector<8x8xf32>
    %17 = arith.addf %16, %1 : vector<8x8xf32>
    %cst_9 = arith.constant dense<0xFF800000> : vector<8xf32>
    %18 = vector.multi_reduction <maximumf>, %17, %cst_9 [1] : vector<8x8xf32> to vector<8xf32>
    %19 = vector.shape_cast %18 : vector<8xf32> to vector<8x1xf32>
    %20 = vector.broadcast %19 : vector<8x1xf32> to vector<8x8xf32>
    %21 = arith.subf %17, %20 : vector<8x8xf32>
    %22 = math.exp %21 : vector<8x8xf32>
    %cst_10 = arith.constant dense<0.000000e+00> : vector<8xf32>
    %23 = vector.multi_reduction <add>, %22, %cst_10 [1] : vector<8x8xf32> to vector<8xf32>
    %24 = vector.shape_cast %23 : vector<8xf32> to vector<8x1xf32>
    %25 = tpu.reciprocal %24 {approx = true} : vector<8x1xf32> -> vector<8x1xf32>
    %26 = vector.broadcast %25 : vector<8x1xf32> to vector<8x8xf32>
    %27 = arith.mulf %22, %26 : vector<8x8xf32>
    %28 = arith.truncf %27 : vector<8x8xf32> to vector<8x8xbf16>
    %cst_11 = arith.constant dense<0.000000e+00> : vector<8x8xf32>
    %29 = tpu.matmul %28, %15, %cst_11 {dimension_numbers = #tpu.dot_dimension_numbers<[1], [0], [0], [1], [0, 0, 1, 1], [], []>} : vector<8x8xbf16>, vector<8x8xbf16>, vector<8x8xf32> -> vector<8x8xf32>
    %30 = vector.extract_strided_slice %3 {offsets = [0, 8], sizes = [8, 8], strides = [1, 1]} : vector<8x32xf32> to vector<8x8xf32>
    %cst_12 = arith.constant 0.353553385 : f32
    %31 = vector.broadcast %cst_12 : f32 to vector<8x8xf32>
    %32 = arith.mulf %30, %31 : vector<8x8xf32>
    %33 = arith.truncf %32 : vector<8x8xf32> to vector<8x8xbf16>
    %34 = vector.extract_strided_slice %6 {offsets = [0, 8], sizes = [8, 8], strides = [1, 1]} : vector<8x32xf32> to vector<8x8xf32>
    %35 = arith.truncf %34 : vector<8x8xf32> to vector<8x8xbf16>
    %36 = vector.extract_strided_slice %7 {offsets = [0, 8], sizes = [8, 8], strides = [1, 1]} : vector<8x32xf32> to vector<8x8xf32>
    %37 = arith.truncf %36 : vector<8x8xf32> to vector<8x8xbf16>
    %cst_13 = arith.constant dense<0.000000e+00> : vector<8x8xf32>
    %38 = tpu.matmul %33, %35, %cst_13 {dimension_numbers = #tpu.dot_dimension_numbers<[1], [1], [0], [0], [0, 0, 1, 0], [], []>} : vector<8x8xbf16>, vector<8x8xbf16>, vector<8x8xf32> -> vector<8x8xf32>
    %39 = arith.addf %38, %1 : vector<8x8xf32>
    %cst_14 = arith.constant dense<0xFF800000> : vector<8xf32>
    %40 = vector.multi_reduction <maximumf>, %39, %cst_14 [1] : vector<8x8xf32> to vector<8xf32>
    %41 = vector.shape_cast %40 : vector<8xf32> to vector<8x1xf32>
    %42 = vector.broadcast %41 : vector<8x1xf32> to vector<8x8xf32>
    %43 = arith.subf %39, %42 : vector<8x8xf32>
    %44 = math.exp %43 : vector<8x8xf32>
    %cst_15 = arith.constant dense<0.000000e+00> : vector<8xf32>
    %45 = vector.multi_reduction <add>, %44, %cst_15 [1] : vector<8x8xf32> to vector<8xf32>
    %46 = vector.shape_cast %45 : vector<8xf32> to vector<8x1xf32>
    %47 = tpu.reciprocal %46 {approx = true} : vector<8x1xf32> -> vector<8x1xf32>
    %48 = vector.broadcast %47 : vector<8x1xf32> to vector<8x8xf32>
    %49 = arith.mulf %44, %48 : vector<8x8xf32>
    %50 = arith.truncf %49 : vector<8x8xf32> to vector<8x8xbf16>
    %cst_16 = arith.constant dense<0.000000e+00> : vector<8x8xf32>
    %51 = tpu.matmul %50, %37, %cst_16 {dimension_numbers = #tpu.dot_dimension_numbers<[1], [0], [0], [1], [0, 0, 1, 1], [], []>} : vector<8x8xbf16>, vector<8x8xbf16>, vector<8x8xf32> -> vector<8x8xf32>
    %52 = vector.extract_strided_slice %3 {offsets = [0, 16], sizes = [8, 8], strides = [1, 1]} : vector<8x32xf32> to vector<8x8xf32>
    %cst_17 = arith.constant 0.353553385 : f32
    %53 = vector.broadcast %cst_17 : f32 to vector<8x8xf32>
    %54 = arith.mulf %52, %53 : vector<8x8xf32>
    %55 = arith.truncf %54 : vector<8x8xf32> to vector<8x8xbf16>
    %56 = vector.extract_strided_slice %6 {offsets = [0, 16], sizes = [8, 8], strides = [1, 1]} : vector<8x32xf32> to vector<8x8xf32>
    %57 = arith.truncf %56 : vector<8x8xf32> to vector<8x8xbf16>
    %58 = vector.extract_strided_slice %7 {offsets = [0, 16], sizes = [8, 8], strides = [1, 1]} : vector<8x32xf32> to vector<8x8xf32>
    %59 = arith.truncf %58 : vector<8x8xf32> to vector<8x8xbf16>
    %cst_18 = arith.constant dense<0.000000e+00> : vector<8x8xf32>
    %60 = tpu.matmul %55, %57, %cst_18 {dimension_numbers = #tpu.dot_dimension_numbers<[1], [1], [0], [0], [0, 0, 1, 0], [], []>} : vector<8x8xbf16>, vector<8x8xbf16>, vector<8x8xf32> -> vector<8x8xf32>
    %61 = arith.addf %60, %1 : vector<8x8xf32>
    %cst_19 = arith.constant dense<0xFF800000> : vector<8xf32>
    %62 = vector.multi_reduction <maximumf>, %61, %cst_19 [1] : vector<8x8xf32> to vector<8xf32>
    %63 = vector.shape_cast %62 : vector<8xf32> to vector<8x1xf32>
    %64 = vector.broadcast %63 : vector<8x1xf32> to vector<8x8xf32>
    %65 = arith.subf %61, %64 : vector<8x8xf32>
    %66 = math.exp %65 : vector<8x8xf32>
    %cst_20 = arith.constant dense<0.000000e+00> : vector<8xf32>
    %67 = vector.multi_reduction <add>, %66, %cst_20 [1] : vector<8x8xf32> to vector<8xf32>
    %68 = vector.shape_cast %67 : vector<8xf32> to vector<8x1xf32>
    %69 = tpu.reciprocal %68 {approx = true} : vector<8x1xf32> -> vector<8x1xf32>
    %70 = vector.broadcast %69 : vector<8x1xf32> to vector<8x8xf32>
    %71 = arith.mulf %66, %70 : vector<8x8xf32>
    %72 = arith.truncf %71 : vector<8x8xf32> to vector<8x8xbf16>
    %cst_21 = arith.constant dense<0.000000e+00> : vector<8x8xf32>
    %73 = tpu.matmul %72, %59, %cst_21 {dimension_numbers = #tpu.dot_dimension_numbers<[1], [0], [0], [1], [0, 0, 1, 1], [], []>} : vector<8x8xbf16>, vector<8x8xbf16>, vector<8x8xf32> -> vector<8x8xf32>
    %74 = vector.extract_strided_slice %3 {offsets = [0, 24], sizes = [8, 8], strides = [1, 1]} : vector<8x32xf32> to vector<8x8xf32>
    %cst_22 = arith.constant 0.353553385 : f32
    %75 = vector.broadcast %cst_22 : f32 to vector<8x8xf32>
    %76 = arith.mulf %74, %75 : vector<8x8xf32>
    %77 = arith.truncf %76 : vector<8x8xf32> to vector<8x8xbf16>
    %78 = vector.extract_strided_slice %6 {offsets = [0, 24], sizes = [8, 8], strides = [1, 1]} : vector<8x32xf32> to vector<8x8xf32>
    %79 = arith.truncf %78 : vector<8x8xf32> to vector<8x8xbf16>
    %80 = vector.extract_strided_slice %7 {offsets = [0, 24], sizes = [8, 8], strides = [1, 1]} : vector<8x32xf32> to vector<8x8xf32>
    %81 = arith.truncf %80 : vector<8x8xf32> to vector<8x8xbf16>
    %cst_23 = arith.constant dense<0.000000e+00> : vector<8x8xf32>
    %82 = tpu.matmul %77, %79, %cst_23 {dimension_numbers = #tpu.dot_dimension_numbers<[1], [1], [0], [0], [0, 0, 1, 0], [], []>} : vector<8x8xbf16>, vector<8x8xbf16>, vector<8x8xf32> -> vector<8x8xf32>
    %83 = arith.addf %82, %1 : vector<8x8xf32>
    %cst_24 = arith.constant dense<0xFF800000> : vector<8xf32>
    %84 = vector.multi_reduction <maximumf>, %83, %cst_24 [1] : vector<8x8xf32> to vector<8xf32>
    %85 = vector.shape_cast %84 : vector<8xf32> to vector<8x1xf32>
    %86 = vector.broadcast %85 : vector<8x1xf32> to vector<8x8xf32>
    %87 = arith.subf %83, %86 : vector<8x8xf32>
    %88 = math.exp %87 : vector<8x8xf32>
    %cst_25 = arith.constant dense<0.000000e+00> : vector<8xf32>
    %89 = vector.multi_reduction <add>, %88, %cst_25 [1] : vector<8x8xf32> to vector<8xf32>
    %90 = vector.shape_cast %89 : vector<8xf32> to vector<8x1xf32>
    %91 = tpu.reciprocal %90 {approx = true} : vector<8x1xf32> -> vector<8x1xf32>
    %92 = vector.broadcast %91 : vector<8x1xf32> to vector<8x8xf32>
    %93 = arith.mulf %88, %92 : vector<8x8xf32>
    %94 = arith.truncf %93 : vector<8x8xf32> to vector<8x8xbf16>
    %cst_26 = arith.constant dense<0.000000e+00> : vector<8x8xf32>
    %95 = tpu.matmul %94, %81, %cst_26 {dimension_numbers = #tpu.dot_dimension_numbers<[1], [0], [0], [1], [0, 0, 1, 1], [], []>} : vector<8x8xbf16>, vector<8x8xbf16>, vector<8x8xf32> -> vector<8x8xf32>
    %96 = tpu.concatenate %29, %51, %73, %95 in 1 : vector<8x8xf32>, vector<8x8xf32>, vector<8x8xf32>, vector<8x8xf32> -> vector<8x32xf32>
    %c0_27 = arith.constant 0 : index
    %c0_28 = arith.constant 0 : index
    %c0_29 = arith.constant 0 : index
    %97 = vector.load %arg5[%c0_27, %c0_28, %c0_29] : memref<1x8x32xf32, #tpu.memory_space<vmem>>, vector<1x8x32xf32>
    %98 = vector.shape_cast %97 : vector<1x8x32xf32> to vector<8x32xf32>
    %99 = vector.shape_cast %96 : vector<8x32xf32> to vector<1x8x32xf32>
    tpu.vector_store %arg5[%c0_27, %c0_28, %c0_29], %99 {strides = array<i32>} : memref<1x8x32xf32, #tpu.memory_space<vmem>>, vector<1x8x32xf32>,
    return
  }
  func.func @transform_0(%arg0: i32, %arg1: i32) -> (i32, i32, i32) {
    %c0_i32 = arith.constant 0 : i32
    %c0_i32_0 = arith.constant 0 : i32
    return %arg0, %arg1, %c0_i32 : i32, i32, i32
  }
  func.func @transform_1(%arg0: i32, %arg1: i32) -> (i32, i32, i32) {
    %c0_i32 = arith.constant 0 : i32
    %c0_i32_0 = arith.constant 0 : i32
    %c0_i32_1 = arith.constant 0 : i32
    return %arg0, %c0_i32, %c0_i32_0 : i32, i32, i32
  }
  func.func @transform_2(%arg0: i32, %arg1: i32) -> (i32, i32, i32) {
    %c0_i32 = arith.constant 0 : i32
    %c0_i32_0 = arith.constant 0 : i32
    %c0_i32_1 = arith.constant 0 : i32
    return %c0_i32, %arg1, %c0_i32_0 : i32, i32, i32
  }
  func.func @transform_3(%arg0: i32, %arg1: i32) -> (i32, i32, i32) {
    %c0_i32 = arith.constant 0 : i32
    %c0_i32_0 = arith.constant 0 : i32
    return %arg0, %arg1, %c0_i32 : i32, i32, i32
  }
}

</mosaic_0001>

<llo_original>
// kernel: transformer_forward.131
$region0: #{transformer_forward.131}
  #allocation0 [shape = 'u32[]', space=smem, size = 0x4, offset = 0x4, fixed_abs, tag = 'smem constant byte address 0x4 - core index']
  #allocation1 [shape = 'u32[144,128]{1,0:T(1,128)}', space=vmem, size = 0x12000, scoped, tag = 'internal scratch']
  %s0 = inlined_call_operand.vmem [shape: f32[16,32], index: 0, kind: input, shape index: {}]
  %s1 = inlined_call_operand.vmem [shape: f32[16,32], index: 1, kind: input, shape index: {}]
  %s2 = inlined_call_operand.vmem [shape: f32[1,32], index: 2, kind: input, shape index: {}]
  %s3 = inlined_call_operand.vmem [shape: f32[1,32], index: 3, kind: input, shape index: {}]
  %s4 = inlined_call_operand.vmem [shape: f32[16,32], index: 4, kind: output, shape index: {}]
  %s5 = sld [smem:[#allocation0]]
  $region26: #{transformer_forward.131} parent=0
    _
  %s7 = ssub.s32 1, %s5
  %s8 = scalar_select 0, %s7, %s5
  // Predicated region
  $region2: #{transformer_forward.131} parent=0 // pred_check
    _
  $region3: #{transformer_forward.131} parent=0 // pred_check_branch
    %10 = sbr.rel (0) target = $region5
  $region4: #{transformer_forward.131} parent=0 // pred_region
    _
  $region5: #{transformer_forward.131} parent=0 // pred_fallthru
    _
  // Predicated region
  $region6: #{transformer_forward.131} parent=0 // pred_check
    _
  $region7: #{transformer_forward.131} parent=0 // pred_check_branch
    %12 = sbr.rel (0) target = $region9
  $region8: #{transformer_forward.131} parent=0 // pred_region
    _
  $region9: #{transformer_forward.131} parent=0 // pred_fallthru
    _
  // Predicated region
  $region10: #{transformer_forward.131} parent=0 // pred_check
    _
  $region11: #{transformer_forward.131} parent=0 // pred_check_branch
    %14 = sbr.rel (0) target = $region13
  $region12: #{transformer_forward.131} parent=0 // pred_region
    _
  $region13: #{transformer_forward.131} parent=0 // pred_fallthru
    _
  // Predicated region
  $region14: #{transformer_forward.131} parent=0 // pred_check
    _
  $region15: #{transformer_forward.131} parent=0 // pred_check_branch
    %16 = sbr.rel (0) target = $region17
  $region16: #{transformer_forward.131} parent=0 // pred_region
    _
  $region17: #{transformer_forward.131} parent=0 // pred_fallthru
    _
  %v17 = vld [vmem:[%s0] sm:$0xff]
  %v18 = vld [vmem:[%s0 + $0x8] sm:$0xff]
  %v19 = vld [vmem:[%s1] sm:$0xff]
  %v20 = vld [vmem:[%s1 + $0x8] sm:$0xff]
  %v21 = vadd.f32 %v17, %v19
  %v22 = vadd.f32 %v18, %v20
  %vm23 = vcmask 261120
  %v24 = vsel %vm23, %v21, 0.0
  %25 = vadd.xlane.f32.xlu0 %v24
  %v26 = vpop.xlane.xlu0 %25
  %v27 = vsel %vm23, %v22, 0.0
  %28 = vadd.xlane.f32.xlu0 %v27
  %v29 = vpop.xlane.xlu0 %28
  %v30 = vrcp.pop 32.0
  %v31 = vmul.f32 %v26, %v30
  %v32 = vmul.f32 %v29, %v30
  %v33 = vsub.f32 %v21, %v31
  %v34 = vsub.f32 %v22, %v32
  %v35 = vmul.f32 %v33, %v33
  %v36 = vmul.f32 %v34, %v34
  %v37 = vsel %vm23, %v35, 0.0
  %38 = vadd.xlane.f32.xlu0 %v37
  %v39 = vpop.xlane.xlu0 %38
  %v40 = vsel %vm23, %v36, 0.0
  %41 = vadd.xlane.f32.xlu0 %v40
  %v42 = vpop.xlane.xlu0 %41
  %v43 = vmul.f32 %v39, %v30
  %v44 = vmul.f32 %v42, %v30
  %v45 = vadd.f32 %v43, 1e-05
  %v46 = vadd.f32 %v44, 1e-05
  %v47 = vrsqrt.pop %v45
  %v48 = vrsqrt.pop %v46
  %v49 = vmul.f32 %v33, %v47
  %v50 = vmul.f32 %v34, %v48
  %v51 = vld [vmem:[%s2] sm:$0x1]
  %v53 = vlaneseq
  %v54 = vshrl.u32 %v53, 7
  %v55 = vsub.s32 0, %v54
  %v56 = vrot.slane %v51, %v55
  %v58 = vmul.f32 %v49, %v56
  %v59 = vmul.f32 %v50, %v56
  %v60 = vld [vmem:[%s3] sm:$0x1]
  %v62 = vlaneseq
  %v63 = vshrl.u32 %v62, 7
  %v64 = vsub.s32 0, %v63
  %v65 = vrot.slane %v60, %v64
  %v67 = vadd.f32 %v58, %v65
  %v68 = vadd.f32 %v59, %v65
  %69 = vst.msk [vmem:[%s4] sm:$0xff] %vm23, %v67
  %70 = vst.msk [vmem:[%s4 + $0x8] sm:$0xff] %vm23, %v68
  // Predicated region
  $region18: #{transformer_forward.131} parent=0 // pred_check
    _
  $region19: #{transformer_forward.131} parent=0 // pred_check_branch
    %72 = sbr.rel (0) target = $region21
  $region20: #{transformer_forward.131} parent=0 // pred_region
    _
  $region21: #{transformer_forward.131} parent=0 // pred_fallthru
    _
  // Predicated region
  $region22: #{transformer_forward.131} parent=0 // pred_check
    _
  $region23: #{transformer_forward.131} parent=0 // pred_check_branch
    %74 = sbr.rel (0) target = $region25
  $region24: #{transformer_forward.131} parent=0 // pred_region
    _
  $region25: #{transformer_forward.131} parent=0 // pred_fallthru
    _

// kernel: transformer_forward.127
$region0: #{transformer_forward.127}
  #allocation0 [shape = 'u32[]', space=smem, size = 0x4, offset = 0x4, fixed_abs, tag = 'smem constant byte address 0x4 - core index']
  #allocation1 [shape = 'u32[144,128]{1,0:T(1,128)}', space=vmem, size = 0x12000, scoped, tag = 'internal scratch']
  #allocation2 [shape = 'f32[16,32]{1,0:T(8,128)}', space=vmem, size = 0x2000, scoped, tag = 'scratch operand']
  %s0 = inlined_call_operand.vmem [shape: f32[16,32], index: 0, kind: input, shape index: {}]
  %s1 = inlined_call_operand.vmem [shape: bf16[32,32], index: 1, kind: input, shape index: {}]
  %s2 = inlined_call_operand.vmem [shape: f32[1,32], index: 2, kind: input, shape index: {}]
  %s3 = inlined_call_operand.vmem [shape: f32[16,32], index: 3, kind: output, shape index: {}]
  %s4 = sld [smem:[#allocation0]]
  $region30: #{transformer_forward.127} parent=0
    _
  %s6 = ssub.s32 1, %s4
  %s7 = scalar_select 0, %s6, %s4
  // Predicated region
  $region2: #{transformer_forward.127} parent=0 // pred_check
    _
  $region3: #{transformer_forward.127} parent=0 // pred_check_branch
    %9 = sbr.rel (0) target = $region5
  $region4: #{transformer_forward.127} parent=0 // pred_region
    _
  $region5: #{transformer_forward.127} parent=0 // pred_fallthru
    _
  // Predicated region
  $region6: #{transformer_forward.127} parent=0 // pred_check
    _
  $region7: #{transformer_forward.127} parent=0 // pred_check_branch
    %11 = sbr.rel (0) target = $region9
  $region8: #{transformer_forward.127} parent=0 // pred_region
    _
  $region9: #{transformer_forward.127} parent=0 // pred_fallthru
    _
  // Predicated region
  $region10: #{transformer_forward.127} parent=0 // pred_check
    _
  $region11: #{transformer_forward.127} parent=0 // pred_check_branch
    %13 = sbr.rel (0) target = $region13
  $region12: #{transformer_forward.127} parent=0 // pred_region
    _
  $region13: #{transformer_forward.127} parent=0 // pred_fallthru
    _
  %p15 = scmp.eq.s32.totalorder 0, 0
  // Predicated region
  $region14: #{transformer_forward.127} parent=0 // pred_check
    %p16 = pneg %p15
  $region15: #{transformer_forward.127} parent=0 // pred_check_branch
    %18 = sbr.rel (%p16) target = $region17
  $region16: #{transformer_forward.127} parent=0 // pred_region
    %vm19 = vcmask 261120
    %20 = vst.msk [vmem:[#allocation2] sm:$0xff] %vm19, 0.0
    %21 = vst.msk [vmem:[#allocation2 + $0x8] sm:$0xff] %vm19, 0.0
  $region17: #{transformer_forward.127} parent=0 // pred_fallthru
    _
  %v22 = vld [vmem:[#allocation2] sm:$0xff]
  %v23 = vld [vmem:[#allocation2 + $0x8] sm:$0xff]
  %v24 = vld [vmem:[%s0] sm:$0xff]
  %v25 = vld [vmem:[%s0 + $0x8] sm:$0xff]
  %v26 = vpack.c.bf16 %v25, %v24
  %v27 = vld [vmem:[%s1] sm:$0xf]
  %v28 = vld [vmem:[%s1 + $0x4] sm:$0xf]
  %v29 = vld [vmem:[%s1 + $0x8] sm:$0xf]
  %v30 = vld [vmem:[%s1 + $0xc] sm:$0xf]
  %v35 = vunpack.c.l.b16 %v27
  %v36 = vunpack.c.l.b16 %v28
  %v37 = vunpack.c.l.b16 %v29
  %v38 = vunpack.c.l.b16 %v30
  %v39 = vpack.c.b16 %v36, %v35
  %v40 = vpack.c.b16 %v38, %v37
  %vm43 = vcmask 261120
  %v45 = vsel %vm43, %v26, 0
  %47 = vmatprep.subr.bf16.mxu0 0
  %48 = vmatpush1.bf16.msra.mxu0 %v39
  %49 = vmatprep.subr.bf16.mxu0 0
  %50 = vmatpush1.bf16.msra.mxu0 %v40
  %51 = vmatprep.subr.bf16.mxu0 0
  %52 = vmatpush1.bf16.msra.mxu0 0
  %53 = vmatprep.subr.bf16.mxu0 0
  %54 = vmatpush1.bf16.msra.mxu0 0
  %55 = vmatprep.subr.bf16.mxu0 0
  %56 = vmatpush1.bf16.msra.mxu0 0
  %57 = vmatprep.subr.bf16.mxu0 0
  %58 = vmatpush1.bf16.msra.mxu0 0
  %59 = vmatprep.subr.bf16.mxu0 0
  %60 = vmatpush1.bf16.msra.mxu0 0
  %61 = vmatprep.subr.bf16.mxu0 0
  %62 = vmatpush1.bf16.msra.mxu0 0
  %63 = vmatprep.subr.bf16.mxu0 0
  %64 = vmatpush1.bf16.msra.mxu0 0
  %65 = vmatprep.subr.bf16.mxu0 0
  %66 = vmatpush1.bf16.msra.mxu0 0
  %67 = vmatprep.subr.bf16.mxu0 0
  %68 = vmatpush1.bf16.msra.mxu0 0
  %69 = vmatprep.subr.bf16.mxu0 0
  %70 = vmatpush1.bf16.msra.mxu0 0
  %71 = vmatprep.subr.bf16.mxu0 0
  %72 = vmatpush1.bf16.msra.mxu0 0
  %73 = vmatprep.subr.bf16.mxu0 0
  %74 = vmatpush1.bf16.msra.mxu0 0
  %75 = vmatprep.subr.bf16.mxu0 0
  %76 = vmatpush1.bf16.msra.mxu0 0
  %77 = vmatprep.subr.bf16.mxu0 0
  %78 = vmatpush1.bf16.msra.mxu0 0
  %79 = vmatprep.mubr.bf16.mxu0 0
  %80 = vmatmul.mubr.bf16.gmra.mrb[0].mxu0 %v45
  %v81 = vpop.f32.mrb[0].mxu0
  %v82 = vadd.f32 0.0, %v81
  %v83 = vpop.f32.mrb[0].mxu0
  %v84 = vpop.f32.mrb[0].mxu0
  %v85 = vadd.f32 0.0, %v84
  %v86 = vpop.f32.mrb[0].mxu0
  %87 = vdwg.mxu0
  %v88 = vadd.f32 %v22, %v82
  %v89 = vadd.f32 %v23, %v85
  %90 = vst.msk [vmem:[#allocation2] sm:$0xff] %vm43, %v88
  %91 = vst.msk [vmem:[#allocation2 + $0x8] sm:$0xff] %vm43, %v89
  // Predicated region
  $region18: #{transformer_forward.127} parent=0 // pred_check
    %p92 = pneg %p15
  $region19: #{transformer_forward.127} parent=0 // pred_check_branch
    %94 = sbr.rel (%p92) target = $region21
  $region20: #{transformer_forward.127} parent=0 // pred_region
    %v95 = vld [vmem:[#allocation2] sm:$0xff]
    %v96 = vld [vmem:[#allocation2 + $0x8] sm:$0xff]
    %v97 = vld [vmem:[%s2] sm:$0x1]
    %v99 = vlaneseq
    %v100 = vshrl.u32 %v99, 7
    %v101 = vsub.s32 0, %v100
    %v102 = vrot.slane %v97, %v101
    %v104 = vadd.f32 %v95, %v102
    %v105 = vadd.f32 %v96, %v102
    %106 = vst.msk [vmem:[%s3] sm:$0xff] %vm43, %v104
    %107 = vst.msk [vmem:[%s3 + $0x8] sm:$0xff] %vm43, %v105
  $region21: #{transformer_forward.127} parent=0 // pred_fallthru
    _
  // Predicated region
  $region22: #{transformer_forward.127} parent=0 // pred_check
    _
  $region23: #{transformer_forward.127} parent=0 // pred_check_branch
    %109 = sbr.rel (0) target = $region25
  $region24: #{transformer_forward.127} parent=0 // pred_region
    _
  $region25: #{transformer_forward.127} parent=0 // pred_fallthru
    _
  // Predicated region
  $region26: #{transformer_forward.127} parent=0 // pred_check
    _
  $region27: #{transformer_forward.127} parent=0 // pred_check_branch
    %111 = sbr.rel (0) target = $region29
  $region28: #{transformer_forward.127} parent=0 // pred_region
    _
  $region29: #{transformer_forward.127} parent=0 // pred_fallthru
    _

// kernel: transformer_forward.128
$region0: #{transformer_forward.128}
  #allocation0 [shape = 'u32[]', space=smem, size = 0x4, offset = 0x4, fixed_abs, tag = 'smem constant byte address 0x4 - core index']
  #allocation1 [shape = 'u32[144,128]{1,0:T(1,128)}', space=vmem, size = 0x12000, scoped, tag = 'internal scratch']
  #allocation2 [shape = 'f32[16,64]{1,0:T(8,128)}', space=vmem, size = 0x2000, scoped, tag = 'scratch operand']
  %s0 = inlined_call_operand.vmem [shape: f32[16,32], index: 0, kind: input, shape index: {}]
  %s1 = inlined_call_operand.vmem [shape: bf16[32,64], index: 1, kind: input, shape index: {}]
  %s2 = inlined_call_operand.vmem [shape: f32[1,64], index: 2, kind: input, shape index: {}]
  %s3 = inlined_call_operand.vmem [shape: f32[16,64], index: 3, kind: output, shape index: {}]
  %s4 = sld [smem:[#allocation0]]
  $region30: #{transformer_forward.128} parent=0
    _
  %s6 = ssub.s32 1, %s4
  %s7 = scalar_select 0, %s6, %s4
  // Predicated region
  $region2: #{transformer_forward.128} parent=0 // pred_check
    _
  $region3: #{transformer_forward.128} parent=0 // pred_check_branch
    %9 = sbr.rel (0) target = $region5
  $region4: #{transformer_forward.128} parent=0 // pred_region
    _
  $region5: #{transformer_forward.128} parent=0 // pred_fallthru
    _
  // Predicated region
  $region6: #{transformer_forward.128} parent=0 // pred_check
    _
  $region7: #{transformer_forward.128} parent=0 // pred_check_branch
    %11 = sbr.rel (0) target = $region9
  $region8: #{transformer_forward.128} parent=0 // pred_region
    _
  $region9: #{transformer_forward.128} parent=0 // pred_fallthru
    _
  // Predicated region
  $region10: #{transformer_forward.128} parent=0 // pred_check
    _
  $region11: #{transformer_forward.128} parent=0 // pred_check_branch
    %13 = sbr.rel (0) target = $region13
  $region12: #{transformer_forward.128} parent=0 // pred_region
    _
  $region13: #{transformer_forward.128} parent=0 // pred_fallthru
    _
  %p15 = scmp.eq.s32.totalorder 0, 0
  // Predicated region
  $region14: #{transformer_forward.128} parent=0 // pred_check
    %p16 = pneg %p15
  $region15: #{transformer_forward.128} parent=0 // pred_check_branch
    %18 = sbr.rel (%p16) target = $region17
  $region16: #{transformer_forward.128} parent=0 // pred_region
    %vm19 = vcmask 523264
    %20 = vst.msk [vmem:[#allocation2] sm:$0xff] %vm19, 0.0
    %21 = vst.msk [vmem:[#allocation2 + $0x8] sm:$0xff] %vm19, 0.0
  $region17: #{transformer_forward.128} parent=0 // pred_fallthru
    _
  %v22 = vld [vmem:[#allocation2] sm:$0xff]
  %v23 = vld [vmem:[#allocation2 + $0x8] sm:$0xff]
  %v24 = vld [vmem:[%s0] sm:$0xff]
  %v25 = vld [vmem:[%s0 + $0x8] sm:$0xff]
  %v26 = vpack.c.bf16 %v25, %v24
  %v27 = vld [vmem:[%s1] sm:$0xf]
  %v28 = vld [vmem:[%s1 + $0x4] sm:$0xf]
  %v29 = vld [vmem:[%s1 + $0x8] sm:$0xf]
  %v30 = vld [vmem:[%s1 + $0xc] sm:$0xf]
  %v35 = vunpack.c.l.b16 %v27
  %v36 = vunpack.c.l.b16 %v28
  %v37 = vunpack.c.l.b16 %v29
  %v38 = vunpack.c.l.b16 %v30
  %v39 = vpack.c.b16 %v36, %v35
  %v40 = vpack.c.b16 %v38, %v37
  %vm43 = vcmask 261120
  %v45 = vsel %vm43, %v26, 0
  %47 = vmatprep.subr.bf16.mxu0 0
  %48 = vmatpush1.bf16.msra.mxu0 %v39
  %49 = vmatprep.subr.bf16.mxu0 0
  %50 = vmatpush1.bf16.msra.mxu0 %v40
  %51 = vmatprep.subr.bf16.mxu0 0
  %52 = vmatpush1.bf16.msra.mxu0 0
  %53 = vmatprep.subr.bf16.mxu0 0
  %54 = vmatpush1.bf16.msra.mxu0 0
  %55 = vmatprep.subr.bf16.mxu0 0
  %56 = vmatpush1.bf16.msra.mxu0 0
  %57 = vmatprep.subr.bf16.mxu0 0
  %58 = vmatpush1.bf16.msra.mxu0 0
  %59 = vmatprep.subr.bf16.mxu0 0
  %60 = vmatpush1.bf16.msra.mxu0 0
  %61 = vmatprep.subr.bf16.mxu0 0
  %62 = vmatpush1.bf16.msra.mxu0 0
  %63 = vmatprep.subr.bf16.mxu0 0
  %64 = vmatpush1.bf16.msra.mxu0 0
  %65 = vmatprep.subr.bf16.mxu0 0
  %66 = vmatpush1.bf16.msra.mxu0 0
  %67 = vmatprep.subr.bf16.mxu0 0
  %68 = vmatpush1.bf16.msra.mxu0 0
  %69 = vmatprep.subr.bf16.mxu0 0
  %70 = vmatpush1.bf16.msra.mxu0 0
  %71 = vmatprep.subr.bf16.mxu0 0
  %72 = vmatpush1.bf16.msra.mxu0 0
  %73 = vmatprep.subr.bf16.mxu0 0
  %74 = vmatpush1.bf16.msra.mxu0 0
  %75 = vmatprep.subr.bf16.mxu0 0
  %76 = vmatpush1.bf16.msra.mxu0 0
  %77 = vmatprep.subr.bf16.mxu0 0
  %78 = vmatpush1.bf16.msra.mxu0 0
  %79 = vmatprep.mubr.bf16.mxu0 0
  %80 = vmatmul.mubr.bf16.gmra.mrb[0].mxu0 %v45
  %v81 = vpop.f32.mrb[0].mxu0
  %v82 = vadd.f32 0.0, %v81
  %v83 = vpop.f32.mrb[0].mxu0
  %v84 = vpop.f32.mrb[0].mxu0
  %v85 = vadd.f32 0.0, %v84
  %v86 = vpop.f32.mrb[0].mxu0
  %87 = vdwg.mxu0
  %v88 = vadd.f32 %v22, %v82
  %v89 = vadd.f32 %v23, %v85
  %vm90 = vcmask 523264
  %91 = vst.msk [vmem:[#allocation2] sm:$0xff] %vm90, %v88
  %92 = vst.msk [vmem:[#allocation2 + $0x8] sm:$0xff] %vm90, %v89
  // Predicated region
  $region18: #{transformer_forward.128} parent=0 // pred_check
    %p93 = pneg %p15
  $region19: #{transformer_forward.128} parent=0 // pred_check_branch
    %95 = sbr.rel (%p93) target = $region21
  $region20: #{transformer_forward.128} parent=0 // pred_region
    %v96 = vld [vmem:[#allocation2] sm:$0xff]
    %v97 = vld [vmem:[#allocation2 + $0x8] sm:$0xff]
    %v98 = vld [vmem:[%s2] sm:$0x1]
    %v100 = vlaneseq
    %v101 = vshrl.u32 %v100, 7
    %v102 = vsub.s32 0, %v101
    %v103 = vrot.slane %v98, %v102
    %v105 = vadd.f32 %v96, %v103
    %v106 = vadd.f32 %v97, %v103
    %107 = vst.msk [vmem:[%s3] sm:$0xff] %vm90, %v105
    %108 = vst.msk [vmem:[%s3 + $0x8] sm:$0xff] %vm90, %v106
  $region21: #{transformer_forward.128} parent=0 // pred_fallthru
    _
  // Predicated region
  $region22: #{transformer_forward.128} parent=0 // pred_check
    _
  $region23: #{transformer_forward.128} parent=0 // pred_check_branch
    %110 = sbr.rel (0) target = $region25
  $region24: #{transformer_forward.128} parent=0 // pred_region
    _
  $region25: #{transformer_forward.128} parent=0 // pred_fallthru
    _
  // Predicated region
  $region26: #{transformer_forward.128} parent=0 // pred_check
    _
  $region27: #{transformer_forward.128} parent=0 // pred_check_branch
    %112 = sbr.rel (0) target = $region29
  $region28: #{transformer_forward.128} parent=0 // pred_region
    _
  $region29: #{transformer_forward.128} parent=0 // pred_fallthru
    _

// kernel: transformer_forward.129
$region0: #{transformer_forward.129}
  #allocation0 [shape = 'u32[]', space=smem, size = 0x4, offset = 0x4, fixed_abs, tag = 'smem constant byte address 0x4 - core index']
  #allocation1 [shape = 'u32[144,128]{1,0:T(1,128)}', space=vmem, size = 0x12000, scoped, tag = 'internal scratch']
  %s0 = inlined_call_operand.vmem [shape: f32[2,8,32], index: 0, kind: input, shape index: {}]
  %s1 = inlined_call_operand.vmem [shape: f32[2,8,64], index: 1, kind: input, shape index: {}]
  %s2 = inlined_call_operand.vmem [shape: f32[2,8,32], index: 2, kind: output, shape index: {}]
  %s3 = sld [smem:[#allocation0]]
  $region41: #{transformer_forward.129} parent=0
    _
  %s5 = ssub.s32 1, %s3
  %s6 = scalar_select 0, %s5, %s3
  loop: start=0, step=1, limit=4
  $region2: #{transformer_forward.129} parent=0 // loop_pre_header
    _
  $region3: #{transformer_forward.129} parent=0 // loop_header
    %s8 = sphi 0, %s12
    %p9 = scmp.ge.s32.totalorder %s8, 4
    %s15 = sphi 0, %s27
    %s16 = sphi 0, %s23
    %s17 = sphi 0, %s15
    %s18 = sphi 0, %s16
    %s19 = sphi 0, %s17
    %s20 = sphi 0, %s18
    %s32 = sphi 0, %s34
    %s35 = sphi 0, %s32
    %s36 = sphi 0, %s35
    %s52 = sphi 0, %s36
    %s58 = sphi 0, %s60
    %s61 = sphi 0, %s58
    %s62 = sphi 0, %s61
    %s78 = sphi 0, %s62
    %s86 = sphi 0, %s88
    %s89 = sphi 0, %s86
    %s90 = sphi 0, %s89
    %s106 = sphi 0, %s90
  $region4: #{transformer_forward.129} parent=0 // loop_header_branch
    %11 = sbr.rel (%p9) target = $region8
  $region5: #{transformer_forward.129} parent=0 // loop_body
    %s13 = ssub.s32 %s8, 1
    %s14 = ssub.s32 %s8, 2
    %s21 = sadd.s32 1, %s16
    %p22 = scmp.ge.s32.totalorder %s21, 1
    %s23 = scalar_select %p22, 0, %s21
    %s24 = sadd.s32 1, %s15
    %s25 = scalar_select %p22, %s24, %s15
    %p26 = scmp.ge.s32.totalorder %s25, 2
    %s27 = scalar_select %p26, 0, %s25
    %s28 = ssub.s32 %s15, %s27
    %s29 = ssub.s32 %s16, %s23
    %s30 = sor.u32 %s28, %s29
    %p31 = scmp.eq.s32.totalorder %s30, 0
    %s33 = sadd.s32 %s32, 1
    %s34 = scalar_select %p31, %s32, %s33
    %p37 = pneg %p31
    %p38 = scmp.eq.s32.totalorder %s8, 1
    %p39 = por %p37, %p38
    %p40 = scmp.ne.s32.totalorder %s32, %s35
    %p41 = scmp.eq.s32.totalorder %s8, 0
    %p42 = por %p40, %p41
    %p43 = scmp.ne.s32.totalorder %s32, %s35
    %p44 = scmp.eq.s32.totalorder %s13, 1
    %p45 = por %p43, %p44
    %p46 = scmp.ne.s32.totalorder %s35, %s36
    %p47 = scmp.eq.s32.totalorder %s13, 0
    %p48 = por %p46, %p47
    %p49 = scmp.ne.s32.totalorder %s35, %s36
    %p50 = scmp.eq.s32.totalorder %s14, 1
    %p51 = por %p49, %p50
    %p53 = scmp.ne.s32.totalorder %s36, %s52
    %p54 = scmp.eq.s32.totalorder %s14, 0
    %p55 = por %p53, %p54
    %s56 = ssub.s32 %s15, %s27
    %p57 = scmp.eq.s32.totalorder %s56, 0
    %s59 = sadd.s32 %s58, 1
    %s60 = scalar_select %p57, %s58, %s59
    %p63 = pneg %p57
    %p64 = scmp.eq.s32.totalorder %s8, 1
    %p65 = por %p63, %p64
    %p66 = scmp.ne.s32.totalorder %s58, %s61
    %p67 = scmp.eq.s32.totalorder %s8, 0
    %p68 = por %p66, %p67
    %p69 = scmp.ne.s32.totalorder %s58, %s61
    %p70 = scmp.eq.s32.totalorder %s13, 1
    %p71 = por %p69, %p70
    %p72 = scmp.ne.s32.totalorder %s61, %s62
    %p73 = scmp.eq.s32.totalorder %s13, 0
    %p74 = por %p72, %p73
    %p75 = scmp.ne.s32.totalorder %s61, %s62
    %p76 = scmp.eq.s32.totalorder %s14, 1
    %p77 = por %p75, %p76
    %p79 = scmp.ne.s32.totalorder %s62, %s78
    %p80 = scmp.eq.s32.totalorder %s14, 0
    %p81 = por %p79, %p80
    %s82 = ssub.s32 %s15, %s27
    %s83 = ssub.s32 %s16, %s23
    %s84 = sor.u32 %s82, %s83
    %p85 = scmp.eq.s32.totalorder %s84, 0
    %s87 = sadd.s32 %s86, 1
    %s88 = scalar_select %p85, %s86, %s87
    %p91 = pneg %p85
    %p92 = scmp.eq.s32.totalorder %s8, 1
    %p93 = por %p91, %p92
    %p94 = scmp.ne.s32.totalorder %s86, %s89
    %p95 = scmp.eq.s32.totalorder %s8, 0
    %p96 = por %p94, %p95
    %p97 = scmp.ne.s32.totalorder %s86, %s89
    %p98 = scmp.eq.s32.totalorder %s13, 1
    %p99 = por %p97, %p98
    %p100 = scmp.ne.s32.totalorder %s89, %s90
    %p101 = scmp.eq.s32.totalorder %s13, 0
    %p102 = por %p100, %p101
    %p103 = scmp.ne.s32.totalorder %s89, %s90
    %p104 = scmp.eq.s32.totalorder %s14, 1
    %p105 = por %p103, %p104
    %p107 = scmp.ne.s32.totalorder %s90, %s106
    %p108 = scmp.eq.s32.totalorder %s14, 0
    %p109 = por %p107, %p108
    %p110 = scmp.le.s32.totalorder 1, %s8
    %p111 = scmp.lt.s32.totalorder %s8, 3
    %p112 = pnand %p110, %p111
    %p113 = pneg %p112
    // Predicated region
    $region9: #{transformer_forward.129} parent=5 // pred_check
      _
    $region10: #{transformer_forward.129} parent=5 // pred_check_branch
      %115 = sbr.rel (%p112) target = $region12
    $region11: #{transformer_forward.129} parent=5 // pred_region
      %s116 = ssub.s32 %s8, 1
    $region12: #{transformer_forward.129} parent=5 // pred_fallthru
      _
    %p117 = scmp.lt.s32.totalorder %s8, 2
    // Predicated region
    $region13: #{transformer_forward.129} parent=5 // pred_check
      %p118 = pneg %p117
    $region14: #{transformer_forward.129} parent=5 // pred_check_branch
      %120 = sbr.rel (%p118) target = $region16
    $region15: #{transformer_forward.129} parent=5 // pred_region
      // Predicated region
      $region17: #{transformer_forward.129} parent=15 // pred_check
        %p121 = pneg %p42
      $region18: #{transformer_forward.129} parent=15 // pred_check_branch
        %123 = sbr.rel (%p121) target = $region20
      $region19: #{transformer_forward.129} parent=15 // pred_region
        %p124 = scmp.lt.s32.totalorder %s15, 1
        %s125 = scalar_select %p124, %s15, 1
        %p126 = scmp.lt.s32.totalorder %s16, 0
        %s127 = scalar_select %p126, %s16, 0
        %s128 = sadd.s32 %s127, %s125
        %s129 = smul.addr %s128, 8
        %s130 = scalar_lea.vmem %s0, %s129
      $region20: #{transformer_forward.129} parent=15 // pred_fallthru
        _
      // Predicated region
      $region21: #{transformer_forward.129} parent=15 // pred_check
        %p131 = pneg %p68
      $region22: #{transformer_forward.129} parent=15 // pred_check_branch
        %133 = sbr.rel (%p131) target = $region24
      $region23: #{transformer_forward.129} parent=15 // pred_region
        %p134 = scmp.lt.s32.totalorder %s15, 1
        %s135 = scalar_select %p134, %s15, 1
        %s136 = smul.addr %s135, 8
        %s137 = scalar_lea.vmem %s1, %s136
      $region24: #{transformer_forward.129} parent=15 // pred_fallthru
        _
    $region16: #{transformer_forward.129} parent=5 // pred_fallthru
      _
    %p138 = scmp.le.s32.totalorder 1, %s8
    %p139 = scmp.lt.s32.totalorder %s8, 3
    %p140 = pnand %p138, %p139
    %p141 = pneg %p140
    // Predicated region
    $region25: #{transformer_forward.129} parent=5 // pred_check
      _
    $region26: #{transformer_forward.129} parent=5 // pred_check_branch
      %143 = sbr.rel (%p140) target = $region28
    $region27: #{transformer_forward.129} parent=5 // pred_region
      %s144 = ssub.s32 %s8, 1
      %p145 = scmp.lt.s32.totalorder %s17, 1
      %s146 = scalar_select %p145, %s17, 1
      %p147 = scmp.lt.s32.totalorder %s18, 0
      %s148 = scalar_select %p147, %s18, 0
      %s149 = sadd.s32 %s148, %s146
      %s150 = smul.addr %s149, 8
      %s151 = scalar_lea.vmem %s0, %s150
      %p152 = pneg %p48
      %p153 = pneg %p45
      %p154 = scmp.lt.s32.totalorder %s17, 1
      %s155 = scalar_select %p154, %s17, 1
      %s156 = smul.addr %s155, 8
      %s157 = scalar_lea.vmem %s1, %s156
      %p158 = pneg %p74
      %p159 = pneg %p71
      %p160 = pneg %p102
      %p161 = pneg %p99
      %p162 = scmp.lt.s32.totalorder %s17, 1
      %s163 = scalar_select %p162, %s17, 1
      %p164 = scmp.lt.s32.totalorder %s18, 0
      %s165 = scalar_select %p164, %s18, 0
      %s166 = sadd.s32 %s165, %s163
      %s167 = smul.addr %s166, 8
      %s168 = scalar_lea.vmem %s2, %s167
      %p169 = scmp.lt.s32.totalorder %s17, 1
      %s170 = scalar_select %p169, %s17, 1
      %p171 = scmp.lt.s32.totalorder %s18, 0
      %s172 = scalar_select %p171, %s18, 0
      %s173 = sadd.s32 %s172, %s170
      %s174 = smul.addr %s173, 8
      %s175 = scalar_lea.vmem %s0, %s174
      %p176 = scmp.lt.s32.totalorder %s17, 1
      %s177 = scalar_select %p176, %s17, 1
      %s178 = smul.addr %s177, 8
      %s179 = scalar_lea.vmem %s1, %s178
      %p180 = scmp.lt.s32.totalorder %s17, 1
      %s181 = scalar_select %p180, %s17, 1
      %p182 = scmp.lt.s32.totalorder %s18, 0
      %s183 = scalar_select %p182, %s18, 0
      %s184 = sadd.s32 %s183, %s181
      %s185 = smul.addr %s184, 8
      %s186 = scalar_lea.vmem %s2, %s185
      %v188 = vld [vmem:[%s175] sm:$0xff]
      %v189 = vld [vmem:[%s179] sm:$0xff]
      %v190 = vmul.f32 %v188, 0.35355338
      %v191 = vpack.c.bf16 %v190, %v190
      %v192 = vpack.c.bf16 %v189, %v189
      %vm193 = vcmask 64512
      %v195 = vsel %vm193, %v191, 0
      %v198 = vsel %vm193, %v192, 0
      %200 = vmatprep.subr.bf16.mxu0 0
      %201 = vmatpush1.bf16.xpose.msra.mxu0 %v198
      %202 = vmatprep.subr.bf16.mxu0 0
      %203 = vmatpush1.bf16.xpose.msra.mxu0 0
      %204 = vmatprep.subr.bf16.mxu0 0
      %205 = vmatpush1.bf16.xpose.msra.mxu0 0
      %206 = vmatprep.subr.bf16.mxu0 0
      %207 = vmatpush1.bf16.xpose.msra.mxu0 0
      %208 = vmatprep.subr.bf16.mxu0 0
      %209 = vmatpush1.bf16.xpose.msra.mxu0 0
      %210 = vmatprep.subr.bf16.mxu0 0
      %211 = vmatpush1.bf16.xpose.msra.mxu0 0
      %212 = vmatprep.subr.bf16.mxu0 0
      %213 = vmatpush1.bf16.xpose.msra.mxu0 0
      %214 = vmatprep.subr.bf16.mxu0 0
      %215 = vmatpush1.bf16.xpose.msra.mxu0 0
      %216 = vmatprep.subr.bf16.mxu0 0
      %217 = vmatpush1.bf16.xpose.msra.mxu0 0
      %218 = vmatprep.subr.bf16.mxu0 0
      %219 = vmatpush1.bf16.xpose.msra.mxu0 0
      %220 = vmatprep.subr.bf16.mxu0 0
      %221 = vmatpush1.bf16.xpose.msra.mxu0 0
      %222 = vmatprep.subr.bf16.mxu0 0
      %223 = vmatpush1.bf16.xpose.msra.mxu0 0
      %224 = vmatprep.subr.bf16.mxu0 0
      %225 = vmatpush1.bf16.xpose.msra.mxu0 0
      %226 = vmatprep.subr.bf16.mxu0 0
      %227 = vmatpush1.bf16.xpose.msra.mxu0 0
      %228 = vmatprep.subr.bf16.mxu0 0
      %229 = vmatpush1.bf16.xpose.msra.mxu0 0
      %230 = vmatprep.subr.bf16.mxu0 0
      %231 = vmatpush1.bf16.xpose.msra.mxu0 0
      %232 = vmatprep.mubr.bf16.mxu0 0
      %233 = vmatmul.mubr.bf16.gmra.mrb[0].mxu0 %v195
      %v234 = vpop.f32.mrb[0].mxu0
      %v235 = vadd.f32 0.0, %v234
      %v236 = vpop.f32.mrb[0].mxu0
      %v237 = vpop.f32.mrb[0].mxu0
      %v238 = vpop.f32.mrb[0].mxu0
      %239 = vdwg.mxu0
      %v240 = vsel %vm193, %v235, -inf
      %241 = vmax.xlane.f32.xlu0 %v240
      %v242 = vpop.xlane.xlu0 %241
      %v243 = vsub.f32 %v235, %v242
      %v244 = vmul.f32 %v243, 1.442695
      %v245 = vpow.pop %v244
      %v246 = vsel %vm193, %v245, 0.0
      %247 = vadd.xlane.f32.xlu0 %v246
      %v248 = vpop.xlane.xlu0 %247
      %v249 = vrcp.pop %v248
      %v250 = vmul.f32 %v245, %v249
      %v251 = vpack.c.bf16 %v250, %v250
      %253 = vrot.lane.b32.xlu0 %v192, 96
      %v254 = vpop.permute.xlu0 %253
      %v256 = vsel %vm193, %v251, 0
      %vm258 = vcmask 1043456
      %v260 = vsel %vm258, %v254, 0
      %262 = vmatprep.subr.bf16.mxu0 0
      %263 = vmatpush1.bf16.msra.mxu0 %v260
      %264 = vmatprep.subr.bf16.mxu0 0
      %265 = vmatpush1.bf16.msra.mxu0 0
      %266 = vmatprep.subr.bf16.mxu0 0
      %267 = vmatpush1.bf16.msra.mxu0 0
      %268 = vmatprep.subr.bf16.mxu0 0
      %269 = vmatpush1.bf16.msra.mxu0 0
      %270 = vmatprep.subr.bf16.mxu0 0
      %271 = vmatpush1.bf16.msra.mxu0 0
      %272 = vmatprep.subr.bf16.mxu0 0
      %273 = vmatpush1.bf16.msra.mxu0 0
      %274 = vmatprep.subr.bf16.mxu0 0
      %275 = vmatpush1.bf16.msra.mxu0 0
      %276 = vmatprep.subr.bf16.mxu0 0
      %277 = vmatpush1.bf16.msra.mxu0 0
      %278 = vmatprep.subr.bf16.mxu0 0
      %279 = vmatpush1.bf16.msra.mxu0 0
      %280 = vmatprep.subr.bf16.mxu0 0
      %281 = vmatpush1.bf16.msra.mxu0 0
      %282 = vmatprep.subr.bf16.mxu0 0
      %283 = vmatpush1.bf16.msra.mxu0 0
      %284 = vmatprep.subr.bf16.mxu0 0
      %285 = vmatpush1.bf16.msra.mxu0 0
      %286 = vmatprep.subr.bf16.mxu0 0
      %287 = vmatpush1.bf16.msra.mxu0 0
      %288 = vmatprep.subr.bf16.mxu0 0
      %289 = vmatpush1.bf16.msra.mxu0 0
      %290 = vmatprep.subr.bf16.mxu0 0
      %291 = vmatpush1.bf16.msra.mxu0 0
      %292 = vmatprep.subr.bf16.mxu0 0
      %293 = vmatpush1.bf16.msra.mxu0 0
      %294 = vmatprep.mubr.bf16.mxu0 0
      %295 = vmatmul.mubr.bf16.gmra.mrb[0].mxu0 %v256
      %v296 = vpop.f32.mrb[0].mxu0
      %v297 = vadd.f32 0.0, %v296
      %v298 = vpop.f32.mrb[0].mxu0
      %v299 = vpop.f32.mrb[0].mxu0
      %v300 = vpop.f32.mrb[0].mxu0
      %301 = vdwg.mxu0
      %303 = vrot.lane.b32.xlu0 %v191, 120
      %v304 = vpop.permute.xlu0 %303
      %305 = vrot.lane.b32.xlu0 %v192, 120
      %v306 = vpop.permute.xlu0 %305
      %v308 = vsel %vm193, %v304, 0
      %v311 = vsel %vm193, %v306, 0
      %313 = vmatprep.subr.bf16.mxu0 0
      %314 = vmatpush1.bf16.xpose.msra.mxu0 %v311
      %315 = vmatprep.subr.bf16.mxu0 0
      %316 = vmatpush1.bf16.xpose.msra.mxu0 0
      %317 = vmatprep.subr.bf16.mxu0 0
      %318 = vmatpush1.bf16.xpose.msra.mxu0 0
      %319 = vmatprep.subr.bf16.mxu0 0
      %320 = vmatpush1.bf16.xpose.msra.mxu0 0
      %321 = vmatprep.subr.bf16.mxu0 0
      %322 = vmatpush1.bf16.xpose.msra.mxu0 0
      %323 = vmatprep.subr.bf16.mxu0 0
      %324 = vmatpush1.bf16.xpose.msra.mxu0 0
      %325 = vmatprep.subr.bf16.mxu0 0
      %326 = vmatpush1.bf16.xpose.msra.mxu0 0
      %327 = vmatprep.subr.bf16.mxu0 0
      %328 = vmatpush1.bf16.xpose.msra.mxu0 0
      %329 = vmatprep.subr.bf16.mxu0 0
      %330 = vmatpush1.bf16.xpose.msra.mxu0 0
      %331 = vmatprep.subr.bf16.mxu0 0
      %332 = vmatpush1.bf16.xpose.msra.mxu0 0
      %333 = vmatprep.subr.bf16.mxu0 0
      %334 = vmatpush1.bf16.xpose.msra.mxu0 0
      %335 = vmatprep.subr.bf16.mxu0 0
      %336 = vmatpush1.bf16.xpose.msra.mxu0 0
      %337 = vmatprep.subr.bf16.mxu0 0
      %338 = vmatpush1.bf16.xpose.msra.mxu0 0
      %339 = vmatprep.subr.bf16.mxu0 0
      %340 = vmatpush1.bf16.xpose.msra.mxu0 0
      %341 = vmatprep.subr.bf16.mxu0 0
      %342 = vmatpush1.bf16.xpose.msra.mxu0 0
      %343 = vmatprep.subr.bf16.mxu0 0
      %344 = vmatpush1.bf16.xpose.msra.mxu0 0
      %345 = vmatprep.mubr.bf16.mxu0 0
      %346 = vmatmul.mubr.bf16.gmra.mrb[0].mxu0 %v308
      %v347 = vpop.f32.mrb[0].mxu0
      %v348 = vadd.f32 0.0, %v347
      %v349 = vpop.f32.mrb[0].mxu0
      %v350 = vpop.f32.mrb[0].mxu0
      %v351 = vpop.f32.mrb[0].mxu0
      %352 = vdwg.mxu0
      %v353 = vsel %vm193, %v348, -inf
      %354 = vmax.xlane.f32.xlu0 %v353
      %v355 = vpop.xlane.xlu0 %354
      %v356 = vsub.f32 %v348, %v355
      %v357 = vmul.f32 %v356, 1.442695
      %v358 = vpow.pop %v357
      %v359 = vsel %vm193, %v358, 0.0
      %360 = vadd.xlane.f32.xlu0 %v359
      %v361 = vpop.xlane.xlu0 %360
      %v362 = vrcp.pop %v361
      %v363 = vmul.f32 %v358, %v362
      %v364 = vpack.c.bf16 %v363, %v363
      %365 = vrot.lane.b32.xlu0 %v192, 88
      %v366 = vpop.permute.xlu0 %365
      %v368 = vsel %vm193, %v364, 0
      %v371 = vsel %vm258, %v366, 0
      %373 = vmatprep.subr.bf16.mxu0 0
      %374 = vmatpush1.bf16.msra.mxu0 %v371
      %375 = vmatprep.subr.bf16.mxu0 0
      %376 = vmatpush1.bf16.msra.mxu0 0
      %377 = vmatprep.subr.bf16.mxu0 0
      %378 = vmatpush1.bf16.msra.mxu0 0
      %379 = vmatprep.subr.bf16.mxu0 0
      %380 = vmatpush1.bf16.msra.mxu0 0
      %381 = vmatprep.subr.bf16.mxu0 0
      %382 = vmatpush1.bf16.msra.mxu0 0
      %383 = vmatprep.subr.bf16.mxu0 0
      %384 = vmatpush1.bf16.msra.mxu0 0
      %385 = vmatprep.subr.bf16.mxu0 0
      %386 = vmatpush1.bf16.msra.mxu0 0
      %387 = vmatprep.subr.bf16.mxu0 0
      %388 = vmatpush1.bf16.msra.mxu0 0
      %389 = vmatprep.subr.bf16.mxu0 0
      %390 = vmatpush1.bf16.msra.mxu0 0
      %391 = vmatprep.subr.bf16.mxu0 0
      %392 = vmatpush1.bf16.msra.mxu0 0
      %393 = vmatprep.subr.bf16.mxu0 0
      %394 = vmatpush1.bf16.msra.mxu0 0
      %395 = vmatprep.subr.bf16.mxu0 0
      %396 = vmatpush1.bf16.msra.mxu0 0
      %397 = vmatprep.subr.bf16.mxu0 0
      %398 = vmatpush1.bf16.msra.mxu0 0
      %399 = vmatprep.subr.bf16.mxu0 0
      %400 = vmatpush1.bf16.msra.mxu0 0
      %401 = vmatprep.subr.bf16.mxu0 0
      %402 = vmatpush1.bf16.msra.mxu0 0
      %403 = vmatprep.subr.bf16.mxu0 0
      %404 = vmatpush1.bf16.msra.mxu0 0
      %405 = vmatprep.mubr.bf16.mxu0 0
      %406 = vmatmul.mubr.bf16.gmra.mrb[0].mxu0 %v368
      %v407 = vpop.f32.mrb[0].mxu0
      %v408 = vadd.f32 0.0, %v407
      %v409 = vpop.f32.mrb[0].mxu0
      %v410 = vpop.f32.mrb[0].mxu0
      %v411 = vpop.f32.mrb[0].mxu0
      %412 = vdwg.mxu0
      %413 = vrot.lane.b32.xlu0 %v191, 112
      %v414 = vpop.permute.xlu0 %413
      %415 = vrot.lane.b32.xlu0 %v192, 112
      %v416 = vpop.permute.xlu0 %415
      %v418 = vsel %vm193, %v414, 0
      %v421 = vsel %vm193, %v416, 0
      %423 = vmatprep.subr.bf16.mxu0 0
      %424 = vmatpush1.bf16.xpose.msra.mxu0 %v421
      %425 = vmatprep.subr.bf16.mxu0 0
      %426 = vmatpush1.bf16.xpose.msra.mxu0 0
      %427 = vmatprep.subr.bf16.mxu0 0
      %428 = vmatpush1.bf16.xpose.msra.mxu0 0
      %429 = vmatprep.subr.bf16.mxu0 0
      %430 = vmatpush1.bf16.xpose.msra.mxu0 0
      %431 = vmatprep.subr.bf16.mxu0 0
      %432 = vmatpush1.bf16.xpose.msra.mxu0 0
      %433 = vmatprep.subr.bf16.mxu0 0
      %434 = vmatpush1.bf16.xpose.msra.mxu0 0
      %435 = vmatprep.subr.bf16.mxu0 0
      %436 = vmatpush1.bf16.xpose.msra.mxu0 0
      %437 = vmatprep.subr.bf16.mxu0 0
      %438 = vmatpush1.bf16.xpose.msra.mxu0 0
      %439 = vmatprep.subr.bf16.mxu0 0
      %440 = vmatpush1.bf16.xpose.msra.mxu0 0
      %441 = vmatprep.subr.bf16.mxu0 0
      %442 = vmatpush1.bf16.xpose.msra.mxu0 0
      %443 = vmatprep.subr.bf16.mxu0 0
      %444 = vmatpush1.bf16.xpose.msra.mxu0 0
      %445 = vmatprep.subr.bf16.mxu0 0
      %446 = vmatpush1.bf16.xpose.msra.mxu0 0
      %447 = vmatprep.subr.bf16.mxu0 0
      %448 = vmatpush1.bf16.xpose.msra.mxu0 0
      %449 = vmatprep.subr.bf16.mxu0 0
      %450 = vmatpush1.bf16.xpose.msra.mxu0 0
      %451 = vmatprep.subr.bf16.mxu0 0
      %452 = vmatpush1.bf16.xpose.msra.mxu0 0
      %453 = vmatprep.subr.bf16.mxu0 0
      %454 = vmatpush1.bf16.xpose.msra.mxu0 0
      %455 = vmatprep.mubr.bf16.mxu0 0
      %456 = vmatmul.mubr.bf16.gmra.mrb[0].mxu0 %v418
      %v457 = vpop.f32.mrb[0].mxu0
      %v458 = vadd.f32 0.0, %v457
      %v459 = vpop.f32.mrb[0].mxu0
      %v460 = vpop.f32.mrb[0].mxu0
      %v461 = vpop.f32.mrb[0].mxu0
      %462 = vdwg.mxu0
      %v463 = vsel %vm193, %v458, -inf
      %464 = vmax.xlane.f32.xlu0 %v463
      %v465 = vpop.xlane.xlu0 %464
      %v466 = vsub.f32 %v458, %v465
      %v467 = vmul.f32 %v466, 1.442695
      %v468 = vpow.pop %v467
      %v469 = vsel %vm193, %v468, 0.0
      %470 = vadd.xlane.f32.xlu0 %v469
      %v471 = vpop.xlane.xlu0 %470
      %v472 = vrcp.pop %v471
      %v473 = vmul.f32 %v468, %v472
      %v474 = vpack.c.bf16 %v473, %v473
      %475 = vrot.lane.b32.xlu0 %v192, 80
      %v476 = vpop.permute.xlu0 %475
      %v478 = vsel %vm193, %v474, 0
      %v481 = vsel %vm258, %v476, 0
      %483 = vmatprep.subr.bf16.mxu0 0
      %484 = vmatpush1.bf16.msra.mxu0 %v481
      %485 = vmatprep.subr.bf16.mxu0 0
      %486 = vmatpush1.bf16.msra.mxu0 0
      %487 = vmatprep.subr.bf16.mxu0 0
      %488 = vmatpush1.bf16.msra.mxu0 0
      %489 = vmatprep.subr.bf16.mxu0 0
      %490 = vmatpush1.bf16.msra.mxu0 0
      %491 = vmatprep.subr.bf16.mxu0 0
      %492 = vmatpush1.bf16.msra.mxu0 0
      %493 = vmatprep.subr.bf16.mxu0 0
      %494 = vmatpush1.bf16.msra.mxu0 0
      %495 = vmatprep.subr.bf16.mxu0 0
      %496 = vmatpush1.bf16.msra.mxu0 0
      %497 = vmatprep.subr.bf16.mxu0 0
      %498 = vmatpush1.bf16.msra.mxu0 0
      %499 = vmatprep.subr.bf16.mxu0 0
      %500 = vmatpush1.bf16.msra.mxu0 0
      %501 = vmatprep.subr.bf16.mxu0 0
      %502 = vmatpush1.bf16.msra.mxu0 0
      %503 = vmatprep.subr.bf16.mxu0 0
      %504 = vmatpush1.bf16.msra.mxu0 0
      %505 = vmatprep.subr.bf16.mxu0 0
      %506 = vmatpush1.bf16.msra.mxu0 0
      %507 = vmatprep.subr.bf16.mxu0 0
      %508 = vmatpush1.bf16.msra.mxu0 0
      %509 = vmatprep.subr.bf16.mxu0 0
      %510 = vmatpush1.bf16.msra.mxu0 0
      %511 = vmatprep.subr.bf16.mxu0 0
      %512 = vmatpush1.bf16.msra.mxu0 0
      %513 = vmatprep.subr.bf16.mxu0 0
      %514 = vmatpush1.bf16.msra.mxu0 0
      %515 = vmatprep.mubr.bf16.mxu0 0
      %516 = vmatmul.mubr.bf16.gmra.mrb[0].mxu0 %v478
      %v517 = vpop.f32.mrb[0].mxu0
      %v518 = vadd.f32 0.0, %v517
      %v519 = vpop.f32.mrb[0].mxu0
      %v520 = vpop.f32.mrb[0].mxu0
      %v521 = vpop.f32.mrb[0].mxu0
      %522 = vdwg.mxu0
      %523 = vrot.lane.b32.xlu0 %v191, 104
      %v524 = vpop.permute.xlu0 %523
      %525 = vrot.lane.b32.xlu0 %v192, 104
      %v526 = vpop.permute.xlu0 %525
      %v528 = vsel %vm193, %v524, 0
      %v531 = vsel %vm193, %v526, 0
      %533 = vmatprep.subr.bf16.mxu0 0
      %534 = vmatpush1.bf16.xpose.msra.mxu0 %v531
      %535 = vmatprep.subr.bf16.mxu0 0
      %536 = vmatpush1.bf16.xpose.msra.mxu0 0
      %537 = vmatprep.subr.bf16.mxu0 0
      %538 = vmatpush1.bf16.xpose.msra.mxu0 0
      %539 = vmatprep.subr.bf16.mxu0 0
      %540 = vmatpush1.bf16.xpose.msra.mxu0 0
      %541 = vmatprep.subr.bf16.mxu0 0
      %542 = vmatpush1.bf16.xpose.msra.mxu0 0
      %543 = vmatprep.subr.bf16.mxu0 0
      %544 = vmatpush1.bf16.xpose.msra.mxu0 0
      %545 = vmatprep.subr.bf16.mxu0 0
      %546 = vmatpush1.bf16.xpose.msra.mxu0 0
      %547 = vmatprep.subr.bf16.mxu0 0
      %548 = vmatpush1.bf16.xpose.msra.mxu0 0
      %549 = vmatprep.subr.bf16.mxu0 0
      %550 = vmatpush1.bf16.xpose.msra.mxu0 0
      %551 = vmatprep.subr.bf16.mxu0 0
      %552 = vmatpush1.bf16.xpose.msra.mxu0 0
      %553 = vmatprep.subr.bf16.mxu0 0
      %554 = vmatpush1.bf16.xpose.msra.mxu0 0
      %555 = vmatprep.subr.bf16.mxu0 0
      %556 = vmatpush1.bf16.xpose.msra.mxu0 0
      %557 = vmatprep.subr.bf16.mxu0 0
      %558 = vmatpush1.bf16.xpose.msra.mxu0 0
      %559 = vmatprep.subr.bf16.mxu0 0
      %560 = vmatpush1.bf16.xpose.msra.mxu0 0
      %561 = vmatprep.subr.bf16.mxu0 0
      %562 = vmatpush1.bf16.xpose.msra.mxu0 0
      %563 = vmatprep.subr.bf16.mxu0 0
      %564 = vmatpush1.bf16.xpose.msra.mxu0 0
      %565 = vmatprep.mubr.bf16.mxu0 0
      %566 = vmatmul.mubr.bf16.gmra.mrb[0].mxu0 %v528
      %v567 = vpop.f32.mrb[0].mxu0
      %v568 = vadd.f32 0.0, %v567
      %v569 = vpop.f32.mrb[0].mxu0
      %v570 = vpop.f32.mrb[0].mxu0
      %v571 = vpop.f32.mrb[0].mxu0
      %572 = vdwg.mxu0
      %v573 = vsel %vm193, %v568, -inf
      %574 = vmax.xlane.f32.xlu0 %v573
      %v575 = vpop.xlane.xlu0 %574
      %v576 = vsub.f32 %v568, %v575
      %v577 = vmul.f32 %v576, 1.442695
      %v578 = vpow.pop %v577
      %v579 = vsel %vm193, %v578, 0.0
      %580 = vadd.xlane.f32.xlu0 %v579
      %v581 = vpop.xlane.xlu0 %580
      %v582 = vrcp.pop %v581
      %v583 = vmul.f32 %v578, %v582
      %v584 = vpack.c.bf16 %v583, %v583
      %585 = vrot.lane.b32.xlu0 %v192, 72
      %v586 = vpop.permute.xlu0 %585
      %v588 = vsel %vm193, %v584, 0
      %v591 = vsel %vm258, %v586, 0
      %593 = vmatprep.subr.bf16.mxu0 0
      %594 = vmatpush1.bf16.msra.mxu0 %v591
      %595 = vmatprep.subr.bf16.mxu0 0
      %596 = vmatpush1.bf16.msra.mxu0 0
      %597 = vmatprep.subr.bf16.mxu0 0
      %598 = vmatpush1.bf16.msra.mxu0 0
      %599 = vmatprep.subr.bf16.mxu0 0
      %600 = vmatpush1.bf16.msra.mxu0 0
      %601 = vmatprep.subr.bf16.mxu0 0
      %602 = vmatpush1.bf16.msra.mxu0 0
      %603 = vmatprep.subr.bf16.mxu0 0
      %604 = vmatpush1.bf16.msra.mxu0 0
      %605 = vmatprep.subr.bf16.mxu0 0
      %606 = vmatpush1.bf16.msra.mxu0 0
      %607 = vmatprep.subr.bf16.mxu0 0
      %608 = vmatpush1.bf16.msra.mxu0 0
      %609 = vmatprep.subr.bf16.mxu0 0
      %610 = vmatpush1.bf16.msra.mxu0 0
      %611 = vmatprep.subr.bf16.mxu0 0
      %612 = vmatpush1.bf16.msra.mxu0 0
      %613 = vmatprep.subr.bf16.mxu0 0
      %614 = vmatpush1.bf16.msra.mxu0 0
      %615 = vmatprep.subr.bf16.mxu0 0
      %616 = vmatpush1.bf16.msra.mxu0 0
      %617 = vmatprep.subr.bf16.mxu0 0
      %618 = vmatpush1.bf16.msra.mxu0 0
      %619 = vmatprep.subr.bf16.mxu0 0
      %620 = vmatpush1.bf16.msra.mxu0 0
      %621 = vmatprep.subr.bf16.mxu0 0
      %622 = vmatpush1.bf16.msra.mxu0 0
      %623 = vmatprep.subr.bf16.mxu0 0
      %624 = vmatpush1.bf16.msra.mxu0 0
      %625 = vmatprep.mubr.bf16.mxu0 0
      %626 = vmatmul.mubr.bf16.gmra.mrb[0].mxu0 %v588
      %v627 = vpop.f32.mrb[0].mxu0
      %v628 = vadd.f32 0.0, %v627
      %v629 = vpop.f32.mrb[0].mxu0
      %v630 = vpop.f32.mrb[0].mxu0
      %v631 = vpop.f32.mrb[0].mxu0
      %632 = vdwg.mxu0
      %634 = vrot.lane.b32.xlu0 %v408, 8
      %v635 = vpop.permute.xlu0 %634
      %638 = vrot.lane.b32.xlu0 %v518, 16
      %v639 = vpop.permute.xlu0 %638
      %642 = vrot.lane.b32.xlu0 %v628, 24
      %v643 = vpop.permute.xlu0 %642
      %v645 = vsel %vm193, %v297, %v635
      %vm646 = vcmask 130048
      %v647 = vsel %vm646, %v645, %v639
      %vm648 = vcmask 195584
      %v649 = vsel %vm648, %v647, %v643
      %vm650 = vcmask 261120
      %651 = vst.msk [vmem:[%s186] sm:$0xff] %vm650, %v649
      %p652 = scmp.lt.s32.totalorder %s17, 1
      %s653 = scalar_select %p652, %s17, 1
      %p654 = scmp.lt.s32.totalorder %s18, 0
      %s655 = scalar_select %p654, %s18, 0
      %s656 = sadd.s32 %s655, %s653
      %s657 = smul.addr %s656, 8
      %s658 = scalar_lea.vmem %s2, %s657
      // Predicated region
      $region29: #{transformer_forward.129} parent=27 // pred_check
        %p659 = pneg %p99
      $region30: #{transformer_forward.129} parent=27 // pred_check_branch
        %661 = sbr.rel (%p659) target = $region32
      $region31: #{transformer_forward.129} parent=27 // pred_region
        _
      $region32: #{transformer_forward.129} parent=27 // pred_fallthru
        _
    $region28: #{transformer_forward.129} parent=5 // pred_fallthru
      _
    %p662 = scmp.le.s32.totalorder 2, %s8
    // Predicated region
    $region33: #{transformer_forward.129} parent=5 // pred_check
      %p663 = pneg %p662
    $region34: #{transformer_forward.129} parent=5 // pred_check_branch
      %665 = sbr.rel (%p663) target = $region36
    $region35: #{transformer_forward.129} parent=5 // pred_region
      %s666 = ssub.s32 %s8, 2
      // Predicated region
      $region37: #{transformer_forward.129} parent=35 // pred_check
        %p667 = pneg %p105
      $region38: #{transformer_forward.129} parent=35 // pred_check_branch
        %669 = sbr.rel (%p667) target = $region40
      $region39: #{transformer_forward.129} parent=35 // pred_region
        %p670 = scmp.lt.s32.totalorder %s19, 1
        %s671 = scalar_select %p670, %s19, 1
        %p672 = scmp.lt.s32.totalorder %s20, 0
        %s673 = scalar_select %p672, %s20, 0
        %s674 = sadd.s32 %s673, %s671
        %s675 = smul.addr %s674, 8
        %s676 = scalar_lea.vmem %s2, %s675
      $region40: #{transformer_forward.129} parent=35 // pred_fallthru
        _
    $region36: #{transformer_forward.129} parent=5 // pred_fallthru
      _
  $region6: #{transformer_forward.129} parent=0 // loop_footer
    %s12 = sadd.s32 1, %s8
  $region7: #{transformer_forward.129} parent=0 // loop_footer_branch
    %7 = sbr.rel target = $region3
  $region8: #{transformer_forward.129} parent=0 // loop_exit
    _

// kernel: transformer_forward.132
$region0: #{transformer_forward.132}
  #allocation0 [shape = 'u32[]', space=smem, size = 0x4, offset = 0x4, fixed_abs, tag = 'smem constant byte address 0x4 - core index']
  #allocation1 [shape = 'u32[144,128]{1,0:T(1,128)}', space=vmem, size = 0x12000, scoped, tag = 'internal scratch']
  #allocation2 [shape = 'f32[16,128]{1,0:T(8,128)}', space=vmem, size = 0x2000, scoped, tag = 'scratch operand']
  %s0 = inlined_call_operand.vmem [shape: f32[16,32], index: 0, kind: input, shape index: {}]
  %s1 = inlined_call_operand.vmem [shape: bf16[32,128], index: 1, kind: input, shape index: {}]
  %s2 = inlined_call_operand.vmem [shape: f32[1,128], index: 2, kind: input, shape index: {}]
  %s3 = inlined_call_operand.vmem [shape: f32[16,128], index: 3, kind: output, shape index: {}]
  %s4 = sld [smem:[#allocation0]]
  $region30: #{transformer_forward.132} parent=0
    _
  %s6 = ssub.s32 1, %s4
  %s7 = scalar_select 0, %s6, %s4
  // Predicated region
  $region2: #{transformer_forward.132} parent=0 // pred_check
    _
  $region3: #{transformer_forward.132} parent=0 // pred_check_branch
    %9 = sbr.rel (0) target = $region5
  $region4: #{transformer_forward.132} parent=0 // pred_region
    _
  $region5: #{transformer_forward.132} parent=0 // pred_fallthru
    _
  // Predicated region
  $region6: #{transformer_forward.132} parent=0 // pred_check
    _
  $region7: #{transformer_forward.132} parent=0 // pred_check_branch
    %11 = sbr.rel (0) target = $region9
  $region8: #{transformer_forward.132} parent=0 // pred_region
    _
  $region9: #{transformer_forward.132} parent=0 // pred_fallthru
    _
  // Predicated region
  $region10: #{transformer_forward.132} parent=0 // pred_check
    _
  $region11: #{transformer_forward.132} parent=0 // pred_check_branch
    %13 = sbr.rel (0) target = $region13
  $region12: #{transformer_forward.132} parent=0 // pred_region
    _
  $region13: #{transformer_forward.132} parent=0 // pred_fallthru
    _
  %p15 = scmp.eq.s32.totalorder 0, 0
  // Predicated region
  $region14: #{transformer_forward.132} parent=0 // pred_check
    %p16 = pneg %p15
  $region15: #{transformer_forward.132} parent=0 // pred_check_branch
    %18 = sbr.rel (%p16) target = $region17
  $region16: #{transformer_forward.132} parent=0 // pred_region
    %19 = vst [vmem:[#allocation2] sm:$0xff] 0.0
    %20 = vst [vmem:[#allocation2 + $0x8] sm:$0xff] 0.0
  $region17: #{transformer_forward.132} parent=0 // pred_fallthru
    _
  %v21 = vld [vmem:[#allocation2] sm:$0xff]
  %v22 = vld [vmem:[#allocation2 + $0x8] sm:$0xff]
  %v23 = vld [vmem:[%s0] sm:$0xff]
  %v24 = vld [vmem:[%s0 + $0x8] sm:$0xff]
  %v25 = vpack.c.bf16 %v24, %v23
  %v26 = vld [vmem:[%s1] sm:$0xf]
  %v27 = vld [vmem:[%s1 + $0x4] sm:$0xf]
  %v28 = vld [vmem:[%s1 + $0x8] sm:$0xf]
  %v29 = vld [vmem:[%s1 + $0xc] sm:$0xf]
  %v34 = vunpack.c.l.b16 %v26
  %v35 = vunpack.c.l.b16 %v27
  %v36 = vunpack.c.l.b16 %v28
  %v37 = vunpack.c.l.b16 %v29
  %v38 = vpack.c.b16 %v35, %v34
  %v39 = vpack.c.b16 %v37, %v36
  %vm42 = vcmask 261120
  %v44 = vsel %vm42, %v25, 0
  %46 = vmatprep.subr.bf16.mxu0 0
  %47 = vmatpush1.bf16.msra.mxu0 %v38
  %48 = vmatprep.subr.bf16.mxu0 0
  %49 = vmatpush1.bf16.msra.mxu0 %v39
  %50 = vmatprep.subr.bf16.mxu0 0
  %51 = vmatpush1.bf16.msra.mxu0 0
  %52 = vmatprep.subr.bf16.mxu0 0
  %53 = vmatpush1.bf16.msra.mxu0 0
  %54 = vmatprep.subr.bf16.mxu0 0
  %55 = vmatpush1.bf16.msra.mxu0 0
  %56 = vmatprep.subr.bf16.mxu0 0
  %57 = vmatpush1.bf16.msra.mxu0 0
  %58 = vmatprep.subr.bf16.mxu0 0
  %59 = vmatpush1.bf16.msra.mxu0 0
  %60 = vmatprep.subr.bf16.mxu0 0
  %61 = vmatpush1.bf16.msra.mxu0 0
  %62 = vmatprep.subr.bf16.mxu0 0
  %63 = vmatpush1.bf16.msra.mxu0 0
  %64 = vmatprep.subr.bf16.mxu0 0
  %65 = vmatpush1.bf16.msra.mxu0 0
  %66 = vmatprep.subr.bf16.mxu0 0
  %67 = vmatpush1.bf16.msra.mxu0 0
  %68 = vmatprep.subr.bf16.mxu0 0
  %69 = vmatpush1.bf16.msra.mxu0 0
  %70 = vmatprep.subr.bf16.mxu0 0
  %71 = vmatpush1.bf16.msra.mxu0 0
  %72 = vmatprep.subr.bf16.mxu0 0
  %73 = vmatpush1.bf16.msra.mxu0 0
  %74 = vmatprep.subr.bf16.mxu0 0
  %75 = vmatpush1.bf16.msra.mxu0 0
  %76 = vmatprep.subr.bf16.mxu0 0
  %77 = vmatpush1.bf16.msra.mxu0 0
  %78 = vmatprep.mubr.bf16.mxu0 0
  %79 = vmatmul.mubr.bf16.gmra.mrb[0].mxu0 %v44
  %v80 = vpop.f32.mrb[0].mxu0
  %v81 = vadd.f32 0.0, %v80
  %v82 = vpop.f32.mrb[0].mxu0
  %v83 = vpop.f32.mrb[0].mxu0
  %v84 = vadd.f32 0.0, %v83
  %v85 = vpop.f32.mrb[0].mxu0
  %86 = vdwg.mxu0
  %v87 = vadd.f32 %v21, %v81
  %v88 = vadd.f32 %v22, %v84
  %89 = vst [vmem:[#allocation2] sm:$0xff] %v87
  %90 = vst [vmem:[#allocation2 + $0x8] sm:$0xff] %v88
  // Predicated region
  $region18: #{transformer_forward.132} parent=0 // pred_check
    %p91 = pneg %p15
  $region19: #{transformer_forward.132} parent=0 // pred_check_branch
    %93 = sbr.rel (%p91) target = $region21
  $region20: #{transformer_forward.132} parent=0 // pred_region
    %v94 = vld [vmem:[#allocation2] sm:$0xff]
    %v95 = vld [vmem:[#allocation2 + $0x8] sm:$0xff]
    %v96 = vld [vmem:[%s2] sm:$0x1]
    %v98 = vlaneseq
    %v99 = vshrl.u32 %v98, 7
    %v100 = vsub.s32 0, %v99
    %v101 = vrot.slane %v96, %v100
    %v103 = vadd.f32 %v94, %v101
    %v104 = vadd.f32 %v95, %v101
    %v105 = vmax.f32 %v103, 0.0
    %v106 = vmax.f32 %v104, 0.0
    %107 = vst [vmem:[%s3] sm:$0xff] %v105
    %108 = vst [vmem:[%s3 + $0x8] sm:$0xff] %v106
  $region21: #{transformer_forward.132} parent=0 // pred_fallthru
    _
  // Predicated region
  $region22: #{transformer_forward.132} parent=0 // pred_check
    _
  $region23: #{transformer_forward.132} parent=0 // pred_check_branch
    %110 = sbr.rel (0) target = $region25
  $region24: #{transformer_forward.132} parent=0 // pred_region
    _
  $region25: #{transformer_forward.132} parent=0 // pred_fallthru
    _
  // Predicated region
  $region26: #{transformer_forward.132} parent=0 // pred_check
    _
  $region27: #{transformer_forward.132} parent=0 // pred_check_branch
    %112 = sbr.rel (0) target = $region29
  $region28: #{transformer_forward.132} parent=0 // pred_region
    _
  $region29: #{transformer_forward.132} parent=0 // pred_fallthru
    _

// kernel: transformer_forward.253
$region0: #{transformer_forward.253}
  #allocation0 [shape = 'u32[]', space=smem, size = 0x4, offset = 0x4, fixed_abs, tag = 'smem constant byte address 0x4 - core index']
  #allocation1 [shape = 'u32[144,128]{1,0:T(1,128)}', space=vmem, size = 0x12000, scoped, tag = 'internal scratch']
  #allocation2 [shape = 'f32[16,64]{1,0:T(8,128)}', space=vmem, size = 0x2000, scoped, tag = 'scratch operand']
  %s0 = inlined_call_operand.vmem [shape: f32[16,32], index: 0, kind: input, shape index: {}]
  %s1 = inlined_call_operand.vmem [shape: bf16[32,64], index: 1, kind: input, shape index: {}]
  %s2 = inlined_call_operand.vmem [shape: f32[1,64], index: 2, kind: input, shape index: {}]
  %s3 = inlined_call_operand.hbm [shape: f32[16,64], index: 3, kind: output, shape index: {}]
  %s4 = sld [smem:[#allocation0]]
  $region30: #{transformer_forward.253} parent=0
    _
  %s6 = ssub.s32 1, %s4
  %s7 = scalar_select 0, %s6, %s4
  $region1: #{transformer_forward.253} parent=0
    #allocation3 [shape = 'u8[8192]{0}', space=vmem, size = 0x2000, scoped, tag = 'output window, operand 0, single buffered']
    #allocation4 [shape = 's32[1]{0}', space=sflag, size = 0x4, scoped, tag = 'scoped memory for transformer_forward.253']
    %8 = vsyncpa [#allocation4], 0
    // Predicated region
    $region2: #{transformer_forward.253} parent=1 // pred_check
      _
    $region3: #{transformer_forward.253} parent=1 // pred_check_branch
      %10 = sbr.rel (0) target = $region5
    $region4: #{transformer_forward.253} parent=1 // pred_region
      _
    $region5: #{transformer_forward.253} parent=1 // pred_fallthru
      _
    // Predicated region
    $region6: #{transformer_forward.253} parent=1 // pred_check
      _
    $region7: #{transformer_forward.253} parent=1 // pred_check_branch
      %12 = sbr.rel (0) target = $region9
    $region8: #{transformer_forward.253} parent=1 // pred_region
      _
    $region9: #{transformer_forward.253} parent=1 // pred_fallthru
      _
    // Predicated region
    $region10: #{transformer_forward.253} parent=1 // pred_check
      _
    $region11: #{transformer_forward.253} parent=1 // pred_check_branch
      %14 = sbr.rel (0) target = $region13
    $region12: #{transformer_forward.253} parent=1 // pred_region
      _
    $region13: #{transformer_forward.253} parent=1 // pred_fallthru
      _
    %p16 = scmp.eq.s32.totalorder 0, 0
    // Predicated region
    $region14: #{transformer_forward.253} parent=1 // pred_check
      %p17 = pneg %p16
    $region15: #{transformer_forward.253} parent=1 // pred_check_branch
      %19 = sbr.rel (%p17) target = $region17
    $region16: #{transformer_forward.253} parent=1 // pred_region
      %vm20 = vcmask 523264
      %21 = vst.msk [vmem:[#allocation2] sm:$0xff] %vm20, 0.0
      %22 = vst.msk [vmem:[#allocation2 + $0x8] sm:$0xff] %vm20, 0.0
    $region17: #{transformer_forward.253} parent=1 // pred_fallthru
      _
    %v23 = vld [vmem:[#allocation2] sm:$0xff]
    %v24 = vld [vmem:[#allocation2 + $0x8] sm:$0xff]
    %v25 = vld [vmem:[%s0] sm:$0xff]
    %v26 = vld [vmem:[%s0 + $0x8] sm:$0xff]
    %v27 = vpack.c.bf16 %v26, %v25
    %v28 = vld [vmem:[%s1] sm:$0xf]
    %v29 = vld [vmem:[%s1 + $0x4] sm:$0xf]
    %v30 = vld [vmem:[%s1 + $0x8] sm:$0xf]
    %v31 = vld [vmem:[%s1 + $0xc] sm:$0xf]
    %v36 = vunpack.c.l.b16 %v28
    %v37 = vunpack.c.l.b16 %v29
    %v38 = vunpack.c.l.b16 %v30
    %v39 = vunpack.c.l.b16 %v31
    %v40 = vpack.c.b16 %v37, %v36
    %v41 = vpack.c.b16 %v39, %v38
    %vm44 = vcmask 261120
    %v46 = vsel %vm44, %v27, 0
    %48 = vmatprep.subr.bf16.mxu0 0
    %49 = vmatpush1.bf16.msra.mxu0 %v40
    %50 = vmatprep.subr.bf16.mxu0 0
    %51 = vmatpush1.bf16.msra.mxu0 %v41
    %52 = vmatprep.subr.bf16.mxu0 0
    %53 = vmatpush1.bf16.msra.mxu0 0
    %54 = vmatprep.subr.bf16.mxu0 0
    %55 = vmatpush1.bf16.msra.mxu0 0
    %56 = vmatprep.subr.bf16.mxu0 0
    %57 = vmatpush1.bf16.msra.mxu0 0
    %58 = vmatprep.subr.bf16.mxu0 0
    %59 = vmatpush1.bf16.msra.mxu0 0
    %60 = vmatprep.subr.bf16.mxu0 0
    %61 = vmatpush1.bf16.msra.mxu0 0
    %62 = vmatprep.subr.bf16.mxu0 0
    %63 = vmatpush1.bf16.msra.mxu0 0
    %64 = vmatprep.subr.bf16.mxu0 0
    %65 = vmatpush1.bf16.msra.mxu0 0
    %66 = vmatprep.subr.bf16.mxu0 0
    %67 = vmatpush1.bf16.msra.mxu0 0
    %68 = vmatprep.subr.bf16.mxu0 0
    %69 = vmatpush1.bf16.msra.mxu0 0
    %70 = vmatprep.subr.bf16.mxu0 0
    %71 = vmatpush1.bf16.msra.mxu0 0
    %72 = vmatprep.subr.bf16.mxu0 0
    %73 = vmatpush1.bf16.msra.mxu0 0
    %74 = vmatprep.subr.bf16.mxu0 0
    %75 = vmatpush1.bf16.msra.mxu0 0
    %76 = vmatprep.subr.bf16.mxu0 0
    %77 = vmatpush1.bf16.msra.mxu0 0
    %78 = vmatprep.subr.bf16.mxu0 0
    %79 = vmatpush1.bf16.msra.mxu0 0
    %80 = vmatprep.mubr.bf16.mxu0 0
    %81 = vmatmul.mubr.bf16.gmra.mrb[0].mxu0 %v46
    %v82 = vpop.f32.mrb[0].mxu0
    %v83 = vadd.f32 0.0, %v82
    %v84 = vpop.f32.mrb[0].mxu0
    %v85 = vpop.f32.mrb[0].mxu0
    %v86 = vadd.f32 0.0, %v85
    %v87 = vpop.f32.mrb[0].mxu0
    %88 = vdwg.mxu0
    %v89 = vadd.f32 %v23, %v83
    %v90 = vadd.f32 %v24, %v86
    %vm91 = vcmask 523264
    %92 = vst.msk [vmem:[#allocation2] sm:$0xff] %vm91, %v89
    %93 = vst.msk [vmem:[#allocation2 + $0x8] sm:$0xff] %vm91, %v90
    // Predicated region
    $region18: #{transformer_forward.253} parent=1 // pred_check
      %p94 = pneg %p16
    $region19: #{transformer_forward.253} parent=1 // pred_check_branch
      %96 = sbr.rel (%p94) target = $region21
    $region20: #{transformer_forward.253} parent=1 // pred_region
      %v97 = vld [vmem:[#allocation2] sm:$0xff]
      %v98 = vld [vmem:[#allocation2 + $0x8] sm:$0xff]
      %v99 = vld [vmem:[%s2] sm:$0x1]
      %v101 = vlaneseq
      %v102 = vshrl.u32 %v101, 7
      %v103 = vsub.s32 0, %v102
      %v104 = vrot.slane %v99, %v103
      %v106 = vadd.f32 %v97, %v104
      %v107 = vadd.f32 %v98, %v104
      %v108 = vsel %vm91, %v106, -inf
      %109 = vmax.xlane.f32.xlu0 %v108
      %v110 = vpop.xlane.xlu0 %109
      %v111 = vsel %vm91, %v107, -inf
      %112 = vmax.xlane.f32.xlu0 %v111
      %v113 = vpop.xlane.xlu0 %112
      %v114 = vsub.f32 %v106, %v110
      %v115 = vsub.f32 %v107, %v113
      %v116 = vmul.f32 %v114, 1.442695
      %v117 = vpow.pop %v116
      %v118 = vmul.f32 %v115, 1.442695
      %v119 = vpow.pop %v118
      %v120 = vsel %vm91, %v117, 0.0
      %121 = vadd.xlane.f32.xlu0 %v120
      %v122 = vpop.xlane.xlu0 %121
      %v123 = vsel %vm91, %v119, 0.0
      %124 = vadd.xlane.f32.xlu0 %v123
      %v125 = vpop.xlane.xlu0 %124
      %v126 = vrcp.pop %v122
      %v127 = vrcp.pop %v125
      %v128 = vmul.f32 %v117, %v126
      %v129 = vmul.f32 %v119, %v127
      %130 = vst.msk [vmem:[#allocation3] sm:$0xff] %vm91, %v128
      %131 = vst.msk [vmem:[#allocation3 + $0x8] sm:$0xff] %vm91, %v129
    $region21: #{transformer_forward.253} parent=1 // pred_fallthru
      _
    // Predicated region
    $region22: #{transformer_forward.253} parent=1 // pred_check
      _
    $region23: #{transformer_forward.253} parent=1 // pred_check_branch
      %133 = sbr.rel (0) target = $region25
    $region24: #{transformer_forward.253} parent=1 // pred_region
      %s135 = ssub.s32 256, 256
      %136 = vsyncadd [#allocation4], %s135
      %s137 = sshll.u32 [#allocation3], 4
      %s138 = int_to_ptr.vmem [resolvable:$true] %s137
      %143 = dma.vmem_to_hbm [thread:$0]  %s138, 256, %s3, [#allocation4], 128, 128, 8
    $region25: #{transformer_forward.253} parent=1 // pred_fallthru
      _
    // Predicated region
    $region26: #{transformer_forward.253} parent=1 // pred_check
      _
    $region27: #{transformer_forward.253} parent=1 // pred_check_branch
      %145 = sbr.rel (0) target = $region29
    $region28: #{transformer_forward.253} parent=1 // pred_region
      %146 = dma.done [#allocation4], 256
    $region29: #{transformer_forward.253} parent=1 // pred_fallthru
      _
    %147 = vsyncpa [#allocation4], 1

// kernel: transformer_forward.133
$region0: #{transformer_forward.133}
  #allocation0 [shape = 'u32[]', space=smem, size = 0x4, offset = 0x4, fixed_abs, tag = 'smem constant byte address 0x4 - core index']
  #allocation1 [shape = 'u32[144,128]{1,0:T(1,128)}', space=vmem, size = 0x12000, scoped, tag = 'internal scratch']
  #allocation2 [shape = 'f32[16,32]{1,0:T(8,128)}', space=vmem, size = 0x2000, scoped, tag = 'scratch operand']
  %s0 = inlined_call_operand.vmem [shape: f32[16,128], index: 0, kind: input, shape index: {}]
  %s1 = inlined_call_operand.vmem [shape: bf16[128,32], index: 1, kind: input, shape index: {}]
  %s2 = inlined_call_operand.vmem [shape: f32[1,32], index: 2, kind: input, shape index: {}]
  %s3 = inlined_call_operand.vmem [shape: f32[16,32], index: 3, kind: output, shape index: {}]
  %s4 = sld [smem:[#allocation0]]
  $region30: #{transformer_forward.133} parent=0
    _
  %s6 = ssub.s32 1, %s4
  %s7 = scalar_select 0, %s6, %s4
  // Predicated region
  $region2: #{transformer_forward.133} parent=0 // pred_check
    _
  $region3: #{transformer_forward.133} parent=0 // pred_check_branch
    %9 = sbr.rel (0) target = $region5
  $region4: #{transformer_forward.133} parent=0 // pred_region
    _
  $region5: #{transformer_forward.133} parent=0 // pred_fallthru
    _
  // Predicated region
  $region6: #{transformer_forward.133} parent=0 // pred_check
    _
  $region7: #{transformer_forward.133} parent=0 // pred_check_branch
    %11 = sbr.rel (0) target = $region9
  $region8: #{transformer_forward.133} parent=0 // pred_region
    _
  $region9: #{transformer_forward.133} parent=0 // pred_fallthru
    _
  // Predicated region
  $region10: #{transformer_forward.133} parent=0 // pred_check
    _
  $region11: #{transformer_forward.133} parent=0 // pred_check_branch
    %13 = sbr.rel (0) target = $region13
  $region12: #{transformer_forward.133} parent=0 // pred_region
    _
  $region13: #{transformer_forward.133} parent=0 // pred_fallthru
    _
  %p15 = scmp.eq.s32.totalorder 0, 0
  // Predicated region
  $region14: #{transformer_forward.133} parent=0 // pred_check
    %p16 = pneg %p15
  $region15: #{transformer_forward.133} parent=0 // pred_check_branch
    %18 = sbr.rel (%p16) target = $region17
  $region16: #{transformer_forward.133} parent=0 // pred_region
    %vm19 = vcmask 261120
    %20 = vst.msk [vmem:[#allocation2] sm:$0xff] %vm19, 0.0
    %21 = vst.msk [vmem:[#allocation2 + $0x8] sm:$0xff] %vm19, 0.0
  $region17: #{transformer_forward.133} parent=0 // pred_fallthru
    _
  %v22 = vld [vmem:[#allocation2] sm:$0xff]
  %v23 = vld [vmem:[#allocation2 + $0x8] sm:$0xff]
  %v24 = vld [vmem:[%s0] sm:$0xff]
  %v25 = vld [vmem:[%s0 + $0x8] sm:$0xff]
  %v26 = vpack.c.bf16 %v25, %v24
  %v27 = vld [vmem:[%s1] sm:$0xf]
  %v28 = vld [vmem:[%s1 + $0x4] sm:$0xf]
  %v29 = vld [vmem:[%s1 + $0x8] sm:$0xf]
  %v30 = vld [vmem:[%s1 + $0xc] sm:$0xf]
  %v31 = vld [vmem:[%s1 + $0x10] sm:$0xf]
  %v32 = vld [vmem:[%s1 + $0x14] sm:$0xf]
  %v33 = vld [vmem:[%s1 + $0x18] sm:$0xf]
  %v34 = vld [vmem:[%s1 + $0x1c] sm:$0xf]
  %v35 = vld [vmem:[%s1 + $0x20] sm:$0xf]
  %v36 = vld [vmem:[%s1 + $0x24] sm:$0xf]
  %v37 = vld [vmem:[%s1 + $0x28] sm:$0xf]
  %v38 = vld [vmem:[%s1 + $0x2c] sm:$0xf]
  %v39 = vld [vmem:[%s1 + $0x30] sm:$0xf]
  %v40 = vld [vmem:[%s1 + $0x34] sm:$0xf]
  %v41 = vld [vmem:[%s1 + $0x38] sm:$0xf]
  %v42 = vld [vmem:[%s1 + $0x3c] sm:$0xf]
  %v59 = vunpack.c.l.b16 %v27
  %v60 = vunpack.c.l.b16 %v28
  %v61 = vunpack.c.l.b16 %v29
  %v62 = vunpack.c.l.b16 %v30
  %v63 = vunpack.c.l.b16 %v31
  %v64 = vunpack.c.l.b16 %v32
  %v65 = vunpack.c.l.b16 %v33
  %v66 = vunpack.c.l.b16 %v34
  %v67 = vunpack.c.l.b16 %v35
  %v68 = vunpack.c.l.b16 %v36
  %v69 = vunpack.c.l.b16 %v37
  %v70 = vunpack.c.l.b16 %v38
  %v71 = vunpack.c.l.b16 %v39
  %v72 = vunpack.c.l.b16 %v40
  %v73 = vunpack.c.l.b16 %v41
  %v74 = vunpack.c.l.b16 %v42
  %v75 = vpack.c.b16 %v60, %v59
  %v76 = vpack.c.b16 %v62, %v61
  %v77 = vpack.c.b16 %v64, %v63
  %v78 = vpack.c.b16 %v66, %v65
  %v79 = vpack.c.b16 %v68, %v67
  %v80 = vpack.c.b16 %v70, %v69
  %v81 = vpack.c.b16 %v72, %v71
  %v82 = vpack.c.b16 %v74, %v73
  %91 = vmatprep.subr.bf16.mxu0 0
  %92 = vmatpush1.bf16.msra.mxu0 %v75
  %93 = vmatprep.subr.bf16.mxu0 0
  %94 = vmatpush1.bf16.msra.mxu0 %v76
  %95 = vmatprep.subr.bf16.mxu0 0
  %96 = vmatpush1.bf16.msra.mxu0 %v77
  %97 = vmatprep.subr.bf16.mxu0 0
  %98 = vmatpush1.bf16.msra.mxu0 %v78
  %99 = vmatprep.subr.bf16.mxu0 0
  %100 = vmatpush1.bf16.msra.mxu0 %v79
  %101 = vmatprep.subr.bf16.mxu0 0
  %102 = vmatpush1.bf16.msra.mxu0 %v80
  %103 = vmatprep.subr.bf16.mxu0 0
  %104 = vmatpush1.bf16.msra.mxu0 %v81
  %105 = vmatprep.subr.bf16.mxu0 0
  %106 = vmatpush1.bf16.msra.mxu0 %v82
  %107 = vmatprep.subr.bf16.mxu0 0
  %108 = vmatpush1.bf16.msra.mxu0 0
  %109 = vmatprep.subr.bf16.mxu0 0
  %110 = vmatpush1.bf16.msra.mxu0 0
  %111 = vmatprep.subr.bf16.mxu0 0
  %112 = vmatpush1.bf16.msra.mxu0 0
  %113 = vmatprep.subr.bf16.mxu0 0
  %114 = vmatpush1.bf16.msra.mxu0 0
  %115 = vmatprep.subr.bf16.mxu0 0
  %116 = vmatpush1.bf16.msra.mxu0 0
  %117 = vmatprep.subr.bf16.mxu0 0
  %118 = vmatpush1.bf16.msra.mxu0 0
  %119 = vmatprep.subr.bf16.mxu0 0
  %120 = vmatpush1.bf16.msra.mxu0 0
  %121 = vmatprep.subr.bf16.mxu0 0
  %122 = vmatpush1.bf16.msra.mxu0 0
  %123 = vmatprep.mubr.bf16.mxu0 0
  %124 = vmatmul.mubr.bf16.gmra.mrb[0].mxu0 %v26
  %v125 = vpop.f32.mrb[0].mxu0
  %v126 = vadd.f32 0.0, %v125
  %v127 = vpop.f32.mrb[0].mxu0
  %v128 = vpop.f32.mrb[0].mxu0
  %v129 = vadd.f32 0.0, %v128
  %v130 = vpop.f32.mrb[0].mxu0
  %131 = vdwg.mxu0
  %v132 = vadd.f32 %v22, %v126
  %v133 = vadd.f32 %v23, %v129
  %vm134 = vcmask 261120
  %135 = vst.msk [vmem:[#allocation2] sm:$0xff] %vm134, %v132
  %136 = vst.msk [vmem:[#allocation2 + $0x8] sm:$0xff] %vm134, %v133
  // Predicated region
  $region18: #{transformer_forward.133} parent=0 // pred_check
    %p137 = pneg %p15
  $region19: #{transformer_forward.133} parent=0 // pred_check_branch
    %139 = sbr.rel (%p137) target = $region21
  $region20: #{transformer_forward.133} parent=0 // pred_region
    %v140 = vld [vmem:[#allocation2] sm:$0xff]
    %v141 = vld [vmem:[#allocation2 + $0x8] sm:$0xff]
    %v142 = vld [vmem:[%s2] sm:$0x1]
    %v144 = vlaneseq
    %v145 = vshrl.u32 %v144, 7
    %v146 = vsub.s32 0, %v145
    %v147 = vrot.slane %v142, %v146
    %v149 = vadd.f32 %v140, %v147
    %v150 = vadd.f32 %v141, %v147
    %151 = vst.msk [vmem:[%s3] sm:$0xff] %vm134, %v149
    %152 = vst.msk [vmem:[%s3 + $0x8] sm:$0xff] %vm134, %v150
  $region21: #{transformer_forward.133} parent=0 // pred_fallthru
    _
  // Predicated region
  $region22: #{transformer_forward.133} parent=0 // pred_check
    _
  $region23: #{transformer_forward.133} parent=0 // pred_check_branch
    %154 = sbr.rel (0) target = $region25
  $region24: #{transformer_forward.133} parent=0 // pred_region
    _
  $region25: #{transformer_forward.133} parent=0 // pred_fallthru
    _
  // Predicated region
  $region26: #{transformer_forward.133} parent=0 // pred_check
    _
  $region27: #{transformer_forward.133} parent=0 // pred_check_branch
    %156 = sbr.rel (0) target = $region29
  $region28: #{transformer_forward.133} parent=0 // pred_region
    _
  $region29: #{transformer_forward.133} parent=0 // pred_fallthru
    _

// kernel: transformer_forward.177
$region0: #{transformer_forward.177}
  #allocation0 [shape = 'u32[]', space=smem, size = 0x4, offset = 0x4, fixed_abs, tag = 'smem constant byte address 0x4 - core index']
  #allocation1 [shape = 'u32[144,128]{1,0:T(1,128)}', space=vmem, size = 0x12000, scoped, tag = 'internal scratch']
  %s0 = inlined_call_operand.vmem [shape: f32[2,8,32], index: 0, kind: input, shape index: {}]
  %s1 = inlined_call_operand.vmem [shape: f32[2,8,64], index: 1, kind: input, shape index: {}]
  %s2 = inlined_call_operand.vmem [shape: f32[1,8,8], index: 2, kind: input, shape index: {}]
  %s3 = inlined_call_operand.vmem [shape: f32[2,8,32], index: 3, kind: output, shape index: {}]
  %s4 = sld [smem:[#allocation0]]
  $region45: #{transformer_forward.177} parent=0
    _
  %s6 = ssub.s32 1, %s4
  %s7 = scalar_select 0, %s6, %s4
  loop: start=0, step=1, limit=4
  $region2: #{transformer_forward.177} parent=0 // loop_pre_header
    _
  $region3: #{transformer_forward.177} parent=0 // loop_header
    %s9 = sphi 0, %s13
    %p10 = scmp.ge.s32.totalorder %s9, 4
    %s16 = sphi 0, %s28
    %s17 = sphi 0, %s24
    %s18 = sphi 0, %s16
    %s19 = sphi 0, %s17
    %s20 = sphi 0, %s18
    %s21 = sphi 0, %s19
    %s33 = sphi 0, %s35
    %s36 = sphi 0, %s33
    %s37 = sphi 0, %s36
    %s53 = sphi 0, %s37
    %s59 = sphi 0, %s61
    %s62 = sphi 0, %s59
    %s63 = sphi 0, %s62
    %s79 = sphi 0, %s63
    %s85 = sphi 0, %s87
    %s88 = sphi 0, %s85
    %s89 = sphi 0, %s88
    %s105 = sphi 0, %s89
    %s113 = sphi 0, %s115
    %s116 = sphi 0, %s113
    %s117 = sphi 0, %s116
    %s133 = sphi 0, %s117
  $region4: #{transformer_forward.177} parent=0 // loop_header_branch
    %12 = sbr.rel (%p10) target = $region8
  $region5: #{transformer_forward.177} parent=0 // loop_body
    %s14 = ssub.s32 %s9, 1
    %s15 = ssub.s32 %s9, 2
    %s22 = sadd.s32 1, %s17
    %p23 = scmp.ge.s32.totalorder %s22, 1
    %s24 = scalar_select %p23, 0, %s22
    %s25 = sadd.s32 1, %s16
    %s26 = scalar_select %p23, %s25, %s16
    %p27 = scmp.ge.s32.totalorder %s26, 2
    %s28 = scalar_select %p27, 0, %s26
    %s29 = ssub.s32 %s16, %s28
    %s30 = ssub.s32 %s17, %s24
    %s31 = sor.u32 %s29, %s30
    %p32 = scmp.eq.s32.totalorder %s31, 0
    %s34 = sadd.s32 %s33, 1
    %s35 = scalar_select %p32, %s33, %s34
    %p38 = pneg %p32
    %p39 = scmp.eq.s32.totalorder %s9, 1
    %p40 = por %p38, %p39
    %p41 = scmp.ne.s32.totalorder %s33, %s36
    %p42 = scmp.eq.s32.totalorder %s9, 0
    %p43 = por %p41, %p42
    %p44 = scmp.ne.s32.totalorder %s33, %s36
    %p45 = scmp.eq.s32.totalorder %s14, 1
    %p46 = por %p44, %p45
    %p47 = scmp.ne.s32.totalorder %s36, %s37
    %p48 = scmp.eq.s32.totalorder %s14, 0
    %p49 = por %p47, %p48
    %p50 = scmp.ne.s32.totalorder %s36, %s37
    %p51 = scmp.eq.s32.totalorder %s15, 1
    %p52 = por %p50, %p51
    %p54 = scmp.ne.s32.totalorder %s37, %s53
    %p55 = scmp.eq.s32.totalorder %s15, 0
    %p56 = por %p54, %p55
    %s57 = ssub.s32 %s16, %s28
    %p58 = scmp.eq.s32.totalorder %s57, 0
    %s60 = sadd.s32 %s59, 1
    %s61 = scalar_select %p58, %s59, %s60
    %p64 = pneg %p58
    %p65 = scmp.eq.s32.totalorder %s9, 1
    %p66 = por %p64, %p65
    %p67 = scmp.ne.s32.totalorder %s59, %s62
    %p68 = scmp.eq.s32.totalorder %s9, 0
    %p69 = por %p67, %p68
    %p70 = scmp.ne.s32.totalorder %s59, %s62
    %p71 = scmp.eq.s32.totalorder %s14, 1
    %p72 = por %p70, %p71
    %p73 = scmp.ne.s32.totalorder %s62, %s63
    %p74 = scmp.eq.s32.totalorder %s14, 0
    %p75 = por %p73, %p74
    %p76 = scmp.ne.s32.totalorder %s62, %s63
    %p77 = scmp.eq.s32.totalorder %s15, 1
    %p78 = por %p76, %p77
    %p80 = scmp.ne.s32.totalorder %s63, %s79
    %p81 = scmp.eq.s32.totalorder %s15, 0
    %p82 = por %p80, %p81
    %s83 = ssub.s32 %s17, %s24
    %p84 = scmp.eq.s32.totalorder %s83, 0
    %s86 = sadd.s32 %s85, 1
    %s87 = scalar_select %p84, %s85, %s86
    %p90 = pneg %p84
    %p91 = scmp.eq.s32.totalorder %s9, 1
    %p92 = por %p90, %p91
    %p93 = scmp.ne.s32.totalorder %s85, %s88
    %p94 = scmp.eq.s32.totalorder %s9, 0
    %p95 = por %p93, %p94
    %p96 = scmp.ne.s32.totalorder %s85, %s88
    %p97 = scmp.eq.s32.totalorder %s14, 1
    %p98 = por %p96, %p97
    %p99 = scmp.ne.s32.totalorder %s88, %s89
    %p100 = scmp.eq.s32.totalorder %s14, 0
    %p101 = por %p99, %p100
    %p102 = scmp.ne.s32.totalorder %s88, %s89
    %p103 = scmp.eq.s32.totalorder %s15, 1
    %p104 = por %p102, %p103
    %p106 = scmp.ne.s32.totalorder %s89, %s105
    %p107 = scmp.eq.s32.totalorder %s15, 0
    %p108 = por %p106, %p107
    %s109 = ssub.s32 %s16, %s28
    %s110 = ssub.s32 %s17, %s24
    %s111 = sor.u32 %s109, %s110
    %p112 = scmp.eq.s32.totalorder %s111, 0
    %s114 = sadd.s32 %s113, 1
    %s115 = scalar_select %p112, %s113, %s114
    %p118 = pneg %p112
    %p119 = scmp.eq.s32.totalorder %s9, 1
    %p120 = por %p118, %p119
    %p121 = scmp.ne.s32.totalorder %s113, %s116
    %p122 = scmp.eq.s32.totalorder %s9, 0
    %p123 = por %p121, %p122
    %p124 = scmp.ne.s32.totalorder %s113, %s116
    %p125 = scmp.eq.s32.totalorder %s14, 1
    %p126 = por %p124, %p125
    %p127 = scmp.ne.s32.totalorder %s116, %s117
    %p128 = scmp.eq.s32.totalorder %s14, 0
    %p129 = por %p127, %p128
    %p130 = scmp.ne.s32.totalorder %s116, %s117
    %p131 = scmp.eq.s32.totalorder %s15, 1
    %p132 = por %p130, %p131
    %p134 = scmp.ne.s32.totalorder %s117, %s133
    %p135 = scmp.eq.s32.totalorder %s15, 0
    %p136 = por %p134, %p135
    %p137 = scmp.le.s32.totalorder 1, %s9
    %p138 = scmp.lt.s32.totalorder %s9, 3
    %p139 = pnand %p137, %p138
    %p140 = pneg %p139
    // Predicated region
    $region9: #{transformer_forward.177} parent=5 // pred_check
      _
    $region10: #{transformer_forward.177} parent=5 // pred_check_branch
      %142 = sbr.rel (%p139) target = $region12
    $region11: #{transformer_forward.177} parent=5 // pred_region
      %s143 = ssub.s32 %s9, 1
      // Predicated region
      $region13: #{transformer_forward.177} parent=11 // pred_check
        %p144 = pneg %p101
      $region14: #{transformer_forward.177} parent=11 // pred_check_branch
        %146 = sbr.rel (%p144) target = $region16
      $region15: #{transformer_forward.177} parent=11 // pred_region
        %p147 = scmp.lt.s32.totalorder %s19, 0
        %s148 = scalar_select %p147, %s19, 0
        %s149 = smul.addr %s148, 8
        %s150 = scalar_lea.vmem %s2, %s149
      $region16: #{transformer_forward.177} parent=11 // pred_fallthru
        _
    $region12: #{transformer_forward.177} parent=5 // pred_fallthru
      _
    %p151 = scmp.lt.s32.totalorder %s9, 2
    // Predicated region
    $region17: #{transformer_forward.177} parent=5 // pred_check
      %p152 = pneg %p151
    $region18: #{transformer_forward.177} parent=5 // pred_check_branch
      %154 = sbr.rel (%p152) target = $region20
    $region19: #{transformer_forward.177} parent=5 // pred_region
      // Predicated region
      $region21: #{transformer_forward.177} parent=19 // pred_check
        %p155 = pneg %p43
      $region22: #{transformer_forward.177} parent=19 // pred_check_branch
        %157 = sbr.rel (%p155) target = $region24
      $region23: #{transformer_forward.177} parent=19 // pred_region
        %p158 = scmp.lt.s32.totalorder %s16, 1
        %s159 = scalar_select %p158, %s16, 1
        %p160 = scmp.lt.s32.totalorder %s17, 0
        %s161 = scalar_select %p160, %s17, 0
        %s162 = sadd.s32 %s161, %s159
        %s163 = smul.addr %s162, 8
        %s164 = scalar_lea.vmem %s0, %s163
      $region24: #{transformer_forward.177} parent=19 // pred_fallthru
        _
      // Predicated region
      $region25: #{transformer_forward.177} parent=19 // pred_check
        %p165 = pneg %p69
      $region26: #{transformer_forward.177} parent=19 // pred_check_branch
        %167 = sbr.rel (%p165) target = $region28
      $region27: #{transformer_forward.177} parent=19 // pred_region
        %p168 = scmp.lt.s32.totalorder %s16, 1
        %s169 = scalar_select %p168, %s16, 1
        %s170 = smul.addr %s169, 8
        %s171 = scalar_lea.vmem %s1, %s170
      $region28: #{transformer_forward.177} parent=19 // pred_fallthru
        _
    $region20: #{transformer_forward.177} parent=5 // pred_fallthru
      _
    %p172 = scmp.le.s32.totalorder 1, %s9
    %p173 = scmp.lt.s32.totalorder %s9, 3
    %p174 = pnand %p172, %p173
    %p175 = pneg %p174
    // Predicated region
    $region29: #{transformer_forward.177} parent=5 // pred_check
      _
    $region30: #{transformer_forward.177} parent=5 // pred_check_branch
      %177 = sbr.rel (%p174) target = $region32
    $region31: #{transformer_forward.177} parent=5 // pred_region
      %s178 = ssub.s32 %s9, 1
      %p179 = scmp.lt.s32.totalorder %s18, 1
      %s180 = scalar_select %p179, %s18, 1
      %p181 = scmp.lt.s32.totalorder %s19, 0
      %s182 = scalar_select %p181, %s19, 0
      %s183 = sadd.s32 %s182, %s180
      %s184 = smul.addr %s183, 8
      %s185 = scalar_lea.vmem %s0, %s184
      %p186 = pneg %p49
      %p187 = pneg %p46
      %p188 = scmp.lt.s32.totalorder %s18, 1
      %s189 = scalar_select %p188, %s18, 1
      %s190 = smul.addr %s189, 8
      %s191 = scalar_lea.vmem %s1, %s190
      %p192 = pneg %p75
      %p193 = pneg %p72
      %p194 = scmp.lt.s32.totalorder %s19, 0
      %s195 = scalar_select %p194, %s19, 0
      %s196 = smul.addr %s195, 8
      %s197 = scalar_lea.vmem %s2, %s196
      %p198 = pneg %p101
      %p199 = pneg %p98
      %p200 = pneg %p129
      %p201 = pneg %p126
      %p202 = scmp.lt.s32.totalorder %s18, 1
      %s203 = scalar_select %p202, %s18, 1
      %p204 = scmp.lt.s32.totalorder %s19, 0
      %s205 = scalar_select %p204, %s19, 0
      %s206 = sadd.s32 %s205, %s203
      %s207 = smul.addr %s206, 8
      %s208 = scalar_lea.vmem %s3, %s207
      %p209 = scmp.lt.s32.totalorder %s18, 1
      %s210 = scalar_select %p209, %s18, 1
      %p211 = scmp.lt.s32.totalorder %s19, 0
      %s212 = scalar_select %p211, %s19, 0
      %s213 = sadd.s32 %s212, %s210
      %s214 = smul.addr %s213, 8
      %s215 = scalar_lea.vmem %s0, %s214
      %p216 = scmp.lt.s32.totalorder %s18, 1
      %s217 = scalar_select %p216, %s18, 1
      %s218 = smul.addr %s217, 8
      %s219 = scalar_lea.vmem %s1, %s218
      %p220 = scmp.lt.s32.totalorder %s19, 0
      %s221 = scalar_select %p220, %s19, 0
      %s222 = smul.addr %s221, 8
      %s223 = scalar_lea.vmem %s2, %s222
      %p224 = scmp.lt.s32.totalorder %s18, 1
      %s225 = scalar_select %p224, %s18, 1
      %p226 = scmp.lt.s32.totalorder %s19, 0
      %s227 = scalar_select %p226, %s19, 0
      %s228 = sadd.s32 %s227, %s225
      %s229 = smul.addr %s228, 8
      %s230 = scalar_lea.vmem %s3, %s229
      %v232 = vld [vmem:[%s223] sm:$0xff]
      %v233 = vld [vmem:[%s215] sm:$0xff]
      %v234 = vld [vmem:[%s219] sm:$0xff]
      %v235 = vmul.f32 %v233, 0.35355338
      %v236 = vpack.c.bf16 %v235, %v235
      %v237 = vpack.c.bf16 %v234, %v234
      %vm238 = vcmask 64512
      %v240 = vsel %vm238, %v236, 0
      %v243 = vsel %vm238, %v237, 0
      %245 = vmatprep.subr.bf16.mxu0 0
      %246 = vmatpush1.bf16.xpose.msra.mxu0 %v243
      %247 = vmatprep.subr.bf16.mxu0 0
      %248 = vmatpush1.bf16.xpose.msra.mxu0 0
      %249 = vmatprep.subr.bf16.mxu0 0
      %250 = vmatpush1.bf16.xpose.msra.mxu0 0
      %251 = vmatprep.subr.bf16.mxu0 0
      %252 = vmatpush1.bf16.xpose.msra.mxu0 0
      %253 = vmatprep.subr.bf16.mxu0 0
      %254 = vmatpush1.bf16.xpose.msra.mxu0 0
      %255 = vmatprep.subr.bf16.mxu0 0
      %256 = vmatpush1.bf16.xpose.msra.mxu0 0
      %257 = vmatprep.subr.bf16.mxu0 0
      %258 = vmatpush1.bf16.xpose.msra.mxu0 0
      %259 = vmatprep.subr.bf16.mxu0 0
      %260 = vmatpush1.bf16.xpose.msra.mxu0 0
      %261 = vmatprep.subr.bf16.mxu0 0
      %262 = vmatpush1.bf16.xpose.msra.mxu0 0
      %263 = vmatprep.subr.bf16.mxu0 0
      %264 = vmatpush1.bf16.xpose.msra.mxu0 0
      %265 = vmatprep.subr.bf16.mxu0 0
      %266 = vmatpush1.bf16.xpose.msra.mxu0 0
      %267 = vmatprep.subr.bf16.mxu0 0
      %268 = vmatpush1.bf16.xpose.msra.mxu0 0
      %269 = vmatprep.subr.bf16.mxu0 0
      %270 = vmatpush1.bf16.xpose.msra.mxu0 0
      %271 = vmatprep.subr.bf16.mxu0 0
      %272 = vmatpush1.bf16.xpose.msra.mxu0 0
      %273 = vmatprep.subr.bf16.mxu0 0
      %274 = vmatpush1.bf16.xpose.msra.mxu0 0
      %275 = vmatprep.subr.bf16.mxu0 0
      %276 = vmatpush1.bf16.xpose.msra.mxu0 0
      %277 = vmatprep.mubr.bf16.mxu0 0
      %278 = vmatmul.mubr.bf16.gmra.mrb[0].mxu0 %v240
      %v279 = vpop.f32.mrb[0].mxu0
      %v280 = vadd.f32 %v232, %v279
      %v281 = vpop.f32.mrb[0].mxu0
      %v282 = vpop.f32.mrb[0].mxu0
      %v283 = vpop.f32.mrb[0].mxu0
      %284 = vdwg.mxu0
      %v285 = vsel %vm238, %v280, -inf
      %286 = vmax.xlane.f32.xlu0 %v285
      %v287 = vpop.xlane.xlu0 %286
      %v288 = vsub.f32 %v280, %v287
      %v289 = vmul.f32 %v288, 1.442695
      %v290 = vpow.pop %v289
      %v291 = vsel %vm238, %v290, 0.0
      %292 = vadd.xlane.f32.xlu0 %v291
      %v293 = vpop.xlane.xlu0 %292
      %v294 = vrcp.pop %v293
      %v295 = vmul.f32 %v290, %v294
      %v296 = vpack.c.bf16 %v295, %v295
      %298 = vrot.lane.b32.xlu0 %v237, 96
      %v299 = vpop.permute.xlu0 %298
      %v301 = vsel %vm238, %v296, 0
      %vm303 = vcmask 1043456
      %v305 = vsel %vm303, %v299, 0
      %307 = vmatprep.subr.bf16.mxu0 0
      %308 = vmatpush1.bf16.msra.mxu0 %v305
      %309 = vmatprep.subr.bf16.mxu0 0
      %310 = vmatpush1.bf16.msra.mxu0 0
      %311 = vmatprep.subr.bf16.mxu0 0
      %312 = vmatpush1.bf16.msra.mxu0 0
      %313 = vmatprep.subr.bf16.mxu0 0
      %314 = vmatpush1.bf16.msra.mxu0 0
      %315 = vmatprep.subr.bf16.mxu0 0
      %316 = vmatpush1.bf16.msra.mxu0 0
      %317 = vmatprep.subr.bf16.mxu0 0
      %318 = vmatpush1.bf16.msra.mxu0 0
      %319 = vmatprep.subr.bf16.mxu0 0
      %320 = vmatpush1.bf16.msra.mxu0 0
      %321 = vmatprep.subr.bf16.mxu0 0
      %322 = vmatpush1.bf16.msra.mxu0 0
      %323 = vmatprep.subr.bf16.mxu0 0
      %324 = vmatpush1.bf16.msra.mxu0 0
      %325 = vmatprep.subr.bf16.mxu0 0
      %326 = vmatpush1.bf16.msra.mxu0 0
      %327 = vmatprep.subr.bf16.mxu0 0
      %328 = vmatpush1.bf16.msra.mxu0 0
      %329 = vmatprep.subr.bf16.mxu0 0
      %330 = vmatpush1.bf16.msra.mxu0 0
      %331 = vmatprep.subr.bf16.mxu0 0
      %332 = vmatpush1.bf16.msra.mxu0 0
      %333 = vmatprep.subr.bf16.mxu0 0
      %334 = vmatpush1.bf16.msra.mxu0 0
      %335 = vmatprep.subr.bf16.mxu0 0
      %336 = vmatpush1.bf16.msra.mxu0 0
      %337 = vmatprep.subr.bf16.mxu0 0
      %338 = vmatpush1.bf16.msra.mxu0 0
      %339 = vmatprep.mubr.bf16.mxu0 0
      %340 = vmatmul.mubr.bf16.gmra.mrb[0].mxu0 %v301
      %v341 = vpop.f32.mrb[0].mxu0
      %v342 = vadd.f32 0.0, %v341
      %v343 = vpop.f32.mrb[0].mxu0
      %v344 = vpop.f32.mrb[0].mxu0
      %v345 = vpop.f32.mrb[0].mxu0
      %346 = vdwg.mxu0
      %348 = vrot.lane.b32.xlu0 %v236, 120
      %v349 = vpop.permute.xlu0 %348
      %350 = vrot.lane.b32.xlu0 %v237, 120
      %v351 = vpop.permute.xlu0 %350
      %v353 = vsel %vm238, %v349, 0
      %v356 = vsel %vm238, %v351, 0
      %358 = vmatprep.subr.bf16.mxu0 0
      %359 = vmatpush1.bf16.xpose.msra.mxu0 %v356
      %360 = vmatprep.subr.bf16.mxu0 0
      %361 = vmatpush1.bf16.xpose.msra.mxu0 0
      %362 = vmatprep.subr.bf16.mxu0 0
      %363 = vmatpush1.bf16.xpose.msra.mxu0 0
      %364 = vmatprep.subr.bf16.mxu0 0
      %365 = vmatpush1.bf16.xpose.msra.mxu0 0
      %366 = vmatprep.subr.bf16.mxu0 0
      %367 = vmatpush1.bf16.xpose.msra.mxu0 0
      %368 = vmatprep.subr.bf16.mxu0 0
      %369 = vmatpush1.bf16.xpose.msra.mxu0 0
      %370 = vmatprep.subr.bf16.mxu0 0
      %371 = vmatpush1.bf16.xpose.msra.mxu0 0
      %372 = vmatprep.subr.bf16.mxu0 0
      %373 = vmatpush1.bf16.xpose.msra.mxu0 0
      %374 = vmatprep.subr.bf16.mxu0 0
      %375 = vmatpush1.bf16.xpose.msra.mxu0 0
      %376 = vmatprep.subr.bf16.mxu0 0
      %377 = vmatpush1.bf16.xpose.msra.mxu0 0
      %378 = vmatprep.subr.bf16.mxu0 0
      %379 = vmatpush1.bf16.xpose.msra.mxu0 0
      %380 = vmatprep.subr.bf16.mxu0 0
      %381 = vmatpush1.bf16.xpose.msra.mxu0 0
      %382 = vmatprep.subr.bf16.mxu0 0
      %383 = vmatpush1.bf16.xpose.msra.mxu0 0
      %384 = vmatprep.subr.bf16.mxu0 0
      %385 = vmatpush1.bf16.xpose.msra.mxu0 0
      %386 = vmatprep.subr.bf16.mxu0 0
      %387 = vmatpush1.bf16.xpose.msra.mxu0 0
      %388 = vmatprep.subr.bf16.mxu0 0
      %389 = vmatpush1.bf16.xpose.msra.mxu0 0
      %390 = vmatprep.mubr.bf16.mxu0 0
      %391 = vmatmul.mubr.bf16.gmra.mrb[0].mxu0 %v353
      %v392 = vpop.f32.mrb[0].mxu0
      %v393 = vadd.f32 %v232, %v392
      %v394 = vpop.f32.mrb[0].mxu0
      %v395 = vpop.f32.mrb[0].mxu0
      %v396 = vpop.f32.mrb[0].mxu0
      %397 = vdwg.mxu0
      %v398 = vsel %vm238, %v393, -inf
      %399 = vmax.xlane.f32.xlu0 %v398
      %v400 = vpop.xlane.xlu0 %399
      %v401 = vsub.f32 %v393, %v400
      %v402 = vmul.f32 %v401, 1.442695
      %v403 = vpow.pop %v402
      %v404 = vsel %vm238, %v403, 0.0
      %405 = vadd.xlane.f32.xlu0 %v404
      %v406 = vpop.xlane.xlu0 %405
      %v407 = vrcp.pop %v406
      %v408 = vmul.f32 %v403, %v407
      %v409 = vpack.c.bf16 %v408, %v408
      %410 = vrot.lane.b32.xlu0 %v237, 88
      %v411 = vpop.permute.xlu0 %410
      %v413 = vsel %vm238, %v409, 0
      %v416 = vsel %vm303, %v411, 0
      %418 = vmatprep.subr.bf16.mxu0 0
      %419 = vmatpush1.bf16.msra.mxu0 %v416
      %420 = vmatprep.subr.bf16.mxu0 0
      %421 = vmatpush1.bf16.msra.mxu0 0
      %422 = vmatprep.subr.bf16.mxu0 0
      %423 = vmatpush1.bf16.msra.mxu0 0
      %424 = vmatprep.subr.bf16.mxu0 0
      %425 = vmatpush1.bf16.msra.mxu0 0
      %426 = vmatprep.subr.bf16.mxu0 0
      %427 = vmatpush1.bf16.msra.mxu0 0
      %428 = vmatprep.subr.bf16.mxu0 0
      %429 = vmatpush1.bf16.msra.mxu0 0
      %430 = vmatprep.subr.bf16.mxu0 0
      %431 = vmatpush1.bf16.msra.mxu0 0
      %432 = vmatprep.subr.bf16.mxu0 0
      %433 = vmatpush1.bf16.msra.mxu0 0
      %434 = vmatprep.subr.bf16.mxu0 0
      %435 = vmatpush1.bf16.msra.mxu0 0
      %436 = vmatprep.subr.bf16.mxu0 0
      %437 = vmatpush1.bf16.msra.mxu0 0
      %438 = vmatprep.subr.bf16.mxu0 0
      %439 = vmatpush1.bf16.msra.mxu0 0
      %440 = vmatprep.subr.bf16.mxu0 0
      %441 = vmatpush1.bf16.msra.mxu0 0
      %442 = vmatprep.subr.bf16.mxu0 0
      %443 = vmatpush1.bf16.msra.mxu0 0
      %444 = vmatprep.subr.bf16.mxu0 0
      %445 = vmatpush1.bf16.msra.mxu0 0
      %446 = vmatprep.subr.bf16.mxu0 0
      %447 = vmatpush1.bf16.msra.mxu0 0
      %448 = vmatprep.subr.bf16.mxu0 0
      %449 = vmatpush1.bf16.msra.mxu0 0
      %450 = vmatprep.mubr.bf16.mxu0 0
      %451 = vmatmul.mubr.bf16.gmra.mrb[0].mxu0 %v413
      %v452 = vpop.f32.mrb[0].mxu0
      %v453 = vadd.f32 0.0, %v452
      %v454 = vpop.f32.mrb[0].mxu0
      %v455 = vpop.f32.mrb[0].mxu0
      %v456 = vpop.f32.mrb[0].mxu0
      %457 = vdwg.mxu0
      %458 = vrot.lane.b32.xlu0 %v236, 112
      %v459 = vpop.permute.xlu0 %458
      %460 = vrot.lane.b32.xlu0 %v237, 112
      %v461 = vpop.permute.xlu0 %460
      %v463 = vsel %vm238, %v459, 0
      %v466 = vsel %vm238, %v461, 0
      %468 = vmatprep.subr.bf16.mxu0 0
      %469 = vmatpush1.bf16.xpose.msra.mxu0 %v466
      %470 = vmatprep.subr.bf16.mxu0 0
      %471 = vmatpush1.bf16.xpose.msra.mxu0 0
      %472 = vmatprep.subr.bf16.mxu0 0
      %473 = vmatpush1.bf16.xpose.msra.mxu0 0
      %474 = vmatprep.subr.bf16.mxu0 0
      %475 = vmatpush1.bf16.xpose.msra.mxu0 0
      %476 = vmatprep.subr.bf16.mxu0 0
      %477 = vmatpush1.bf16.xpose.msra.mxu0 0
      %478 = vmatprep.subr.bf16.mxu0 0
      %479 = vmatpush1.bf16.xpose.msra.mxu0 0
      %480 = vmatprep.subr.bf16.mxu0 0
      %481 = vmatpush1.bf16.xpose.msra.mxu0 0
      %482 = vmatprep.subr.bf16.mxu0 0
      %483 = vmatpush1.bf16.xpose.msra.mxu0 0
      %484 = vmatprep.subr.bf16.mxu0 0
      %485 = vmatpush1.bf16.xpose.msra.mxu0 0
      %486 = vmatprep.subr.bf16.mxu0 0
      %487 = vmatpush1.bf16.xpose.msra.mxu0 0
      %488 = vmatprep.subr.bf16.mxu0 0
      %489 = vmatpush1.bf16.xpose.msra.mxu0 0
      %490 = vmatprep.subr.bf16.mxu0 0
      %491 = vmatpush1.bf16.xpose.msra.mxu0 0
      %492 = vmatprep.subr.bf16.mxu0 0
      %493 = vmatpush1.bf16.xpose.msra.mxu0 0
      %494 = vmatprep.subr.bf16.mxu0 0
      %495 = vmatpush1.bf16.xpose.msra.mxu0 0
      %496 = vmatprep.subr.bf16.mxu0 0
      %497 = vmatpush1.bf16.xpose.msra.mxu0 0
      %498 = vmatprep.subr.bf16.mxu0 0
      %499 = vmatpush1.bf16.xpose.msra.mxu0 0
      %500 = vmatprep.mubr.bf16.mxu0 0
      %501 = vmatmul.mubr.bf16.gmra.mrb[0].mxu0 %v463
      %v502 = vpop.f32.mrb[0].mxu0
      %v503 = vadd.f32 %v232, %v502
      %v504 = vpop.f32.mrb[0].mxu0
      %v505 = vpop.f32.mrb[0].mxu0
      %v506 = vpop.f32.mrb[0].mxu0
      %507 = vdwg.mxu0
      %v508 = vsel %vm238, %v503, -inf
      %509 = vmax.xlane.f32.xlu0 %v508
      %v510 = vpop.xlane.xlu0 %509
      %v511 = vsub.f32 %v503, %v510
      %v512 = vmul.f32 %v511, 1.442695
      %v513 = vpow.pop %v512
      %v514 = vsel %vm238, %v513, 0.0
      %515 = vadd.xlane.f32.xlu0 %v514
      %v516 = vpop.xlane.xlu0 %515
      %v517 = vrcp.pop %v516
      %v518 = vmul.f32 %v513, %v517
      %v519 = vpack.c.bf16 %v518, %v518
      %520 = vrot.lane.b32.xlu0 %v237, 80
      %v521 = vpop.permute.xlu0 %520
      %v523 = vsel %vm238, %v519, 0
      %v526 = vsel %vm303, %v521, 0
      %528 = vmatprep.subr.bf16.mxu0 0
      %529 = vmatpush1.bf16.msra.mxu0 %v526
      %530 = vmatprep.subr.bf16.mxu0 0
      %531 = vmatpush1.bf16.msra.mxu0 0
      %532 = vmatprep.subr.bf16.mxu0 0
      %533 = vmatpush1.bf16.msra.mxu0 0
      %534 = vmatprep.subr.bf16.mxu0 0
      %535 = vmatpush1.bf16.msra.mxu0 0
      %536 = vmatprep.subr.bf16.mxu0 0
      %537 = vmatpush1.bf16.msra.mxu0 0
      %538 = vmatprep.subr.bf16.mxu0 0
      %539 = vmatpush1.bf16.msra.mxu0 0
      %540 = vmatprep.subr.bf16.mxu0 0
      %541 = vmatpush1.bf16.msra.mxu0 0
      %542 = vmatprep.subr.bf16.mxu0 0
      %543 = vmatpush1.bf16.msra.mxu0 0
      %544 = vmatprep.subr.bf16.mxu0 0
      %545 = vmatpush1.bf16.msra.mxu0 0
      %546 = vmatprep.subr.bf16.mxu0 0
      %547 = vmatpush1.bf16.msra.mxu0 0
      %548 = vmatprep.subr.bf16.mxu0 0
      %549 = vmatpush1.bf16.msra.mxu0 0
      %550 = vmatprep.subr.bf16.mxu0 0
      %551 = vmatpush1.bf16.msra.mxu0 0
      %552 = vmatprep.subr.bf16.mxu0 0
      %553 = vmatpush1.bf16.msra.mxu0 0
      %554 = vmatprep.subr.bf16.mxu0 0
      %555 = vmatpush1.bf16.msra.mxu0 0
      %556 = vmatprep.subr.bf16.mxu0 0
      %557 = vmatpush1.bf16.msra.mxu0 0
      %558 = vmatprep.subr.bf16.mxu0 0
      %559 = vmatpush1.bf16.msra.mxu0 0
      %560 = vmatprep.mubr.bf16.mxu0 0
      %561 = vmatmul.mubr.bf16.gmra.mrb[0].mxu0 %v523
      %v562 = vpop.f32.mrb[0].mxu0
      %v563 = vadd.f32 0.0, %v562
      %v564 = vpop.f32.mrb[0].mxu0
      %v565 = vpop.f32.mrb[0].mxu0
      %v566 = vpop.f32.mrb[0].mxu0
      %567 = vdwg.mxu0
      %568 = vrot.lane.b32.xlu0 %v236, 104
      %v569 = vpop.permute.xlu0 %568
      %570 = vrot.lane.b32.xlu0 %v237, 104
      %v571 = vpop.permute.xlu0 %570
      %v573 = vsel %vm238, %v569, 0
      %v576 = vsel %vm238, %v571, 0
      %578 = vmatprep.subr.bf16.mxu0 0
      %579 = vmatpush1.bf16.xpose.msra.mxu0 %v576
      %580 = vmatprep.subr.bf16.mxu0 0
      %581 = vmatpush1.bf16.xpose.msra.mxu0 0
      %582 = vmatprep.subr.bf16.mxu0 0
      %583 = vmatpush1.bf16.xpose.msra.mxu0 0
      %584 = vmatprep.subr.bf16.mxu0 0
      %585 = vmatpush1.bf16.xpose.msra.mxu0 0
      %586 = vmatprep.subr.bf16.mxu0 0
      %587 = vmatpush1.bf16.xpose.msra.mxu0 0
      %588 = vmatprep.subr.bf16.mxu0 0
      %589 = vmatpush1.bf16.xpose.msra.mxu0 0
      %590 = vmatprep.subr.bf16.mxu0 0
      %591 = vmatpush1.bf16.xpose.msra.mxu0 0
      %592 = vmatprep.subr.bf16.mxu0 0
      %593 = vmatpush1.bf16.xpose.msra.mxu0 0
      %594 = vmatprep.subr.bf16.mxu0 0
      %595 = vmatpush1.bf16.xpose.msra.mxu0 0
      %596 = vmatprep.subr.bf16.mxu0 0
      %597 = vmatpush1.bf16.xpose.msra.mxu0 0
      %598 = vmatprep.subr.bf16.mxu0 0
      %599 = vmatpush1.bf16.xpose.msra.mxu0 0
      %600 = vmatprep.subr.bf16.mxu0 0
      %601 = vmatpush1.bf16.xpose.msra.mxu0 0
      %602 = vmatprep.subr.bf16.mxu0 0
      %603 = vmatpush1.bf16.xpose.msra.mxu0 0
      %604 = vmatprep.subr.bf16.mxu0 0
      %605 = vmatpush1.bf16.xpose.msra.mxu0 0
      %606 = vmatprep.subr.bf16.mxu0 0
      %607 = vmatpush1.bf16.xpose.msra.mxu0 0
      %608 = vmatprep.subr.bf16.mxu0 0
      %609 = vmatpush1.bf16.xpose.msra.mxu0 0
      %610 = vmatprep.mubr.bf16.mxu0 0
      %611 = vmatmul.mubr.bf16.gmra.mrb[0].mxu0 %v573
      %v612 = vpop.f32.mrb[0].mxu0
      %v613 = vadd.f32 %v232, %v612
      %v614 = vpop.f32.mrb[0].mxu0
      %v615 = vpop.f32.mrb[0].mxu0
      %v616 = vpop.f32.mrb[0].mxu0
      %617 = vdwg.mxu0
      %v618 = vsel %vm238, %v613, -inf
      %619 = vmax.xlane.f32.xlu0 %v618
      %v620 = vpop.xlane.xlu0 %619
      %v621 = vsub.f32 %v613, %v620
      %v622 = vmul.f32 %v621, 1.442695
      %v623 = vpow.pop %v622
      %v624 = vsel %vm238, %v623, 0.0
      %625 = vadd.xlane.f32.xlu0 %v624
      %v626 = vpop.xlane.xlu0 %625
      %v627 = vrcp.pop %v626
      %v628 = vmul.f32 %v623, %v627
      %v629 = vpack.c.bf16 %v628, %v628
      %630 = vrot.lane.b32.xlu0 %v237, 72
      %v631 = vpop.permute.xlu0 %630
      %v633 = vsel %vm238, %v629, 0
      %v636 = vsel %vm303, %v631, 0
      %638 = vmatprep.subr.bf16.mxu0 0
      %639 = vmatpush1.bf16.msra.mxu0 %v636
      %640 = vmatprep.subr.bf16.mxu0 0
      %641 = vmatpush1.bf16.msra.mxu0 0
      %642 = vmatprep.subr.bf16.mxu0 0
      %643 = vmatpush1.bf16.msra.mxu0 0
      %644 = vmatprep.subr.bf16.mxu0 0
      %645 = vmatpush1.bf16.msra.mxu0 0
      %646 = vmatprep.subr.bf16.mxu0 0
      %647 = vmatpush1.bf16.msra.mxu0 0
      %648 = vmatprep.subr.bf16.mxu0 0
      %649 = vmatpush1.bf16.msra.mxu0 0
      %650 = vmatprep.subr.bf16.mxu0 0
      %651 = vmatpush1.bf16.msra.mxu0 0
      %652 = vmatprep.subr.bf16.mxu0 0
      %653 = vmatpush1.bf16.msra.mxu0 0
      %654 = vmatprep.subr.bf16.mxu0 0
      %655 = vmatpush1.bf16.msra.mxu0 0
      %656 = vmatprep.subr.bf16.mxu0 0
      %657 = vmatpush1.bf16.msra.mxu0 0
      %658 = vmatprep.subr.bf16.mxu0 0
      %659 = vmatpush1.bf16.msra.mxu0 0
      %660 = vmatprep.subr.bf16.mxu0 0
      %661 = vmatpush1.bf16.msra.mxu0 0
      %662 = vmatprep.subr.bf16.mxu0 0
      %663 = vmatpush1.bf16.msra.mxu0 0
      %664 = vmatprep.subr.bf16.mxu0 0
      %665 = vmatpush1.bf16.msra.mxu0 0
      %666 = vmatprep.subr.bf16.mxu0 0
      %667 = vmatpush1.bf16.msra.mxu0 0
      %668 = vmatprep.subr.bf16.mxu0 0
      %669 = vmatpush1.bf16.msra.mxu0 0
      %670 = vmatprep.mubr.bf16.mxu0 0
      %671 = vmatmul.mubr.bf16.gmra.mrb[0].mxu0 %v633
      %v672 = vpop.f32.mrb[0].mxu0
      %v673 = vadd.f32 0.0, %v672
      %v674 = vpop.f32.mrb[0].mxu0
      %v675 = vpop.f32.mrb[0].mxu0
      %v676 = vpop.f32.mrb[0].mxu0
      %677 = vdwg.mxu0
      %679 = vrot.lane.b32.xlu0 %v453, 8
      %v680 = vpop.permute.xlu0 %679
      %683 = vrot.lane.b32.xlu0 %v563, 16
      %v684 = vpop.permute.xlu0 %683
      %687 = vrot.lane.b32.xlu0 %v673, 24
      %v688 = vpop.permute.xlu0 %687
      %v690 = vsel %vm238, %v342, %v680
      %vm691 = vcmask 130048
      %v692 = vsel %vm691, %v690, %v684
      %vm693 = vcmask 195584
      %v694 = vsel %vm693, %v692, %v688
      %vm695 = vcmask 261120
      %696 = vst.msk [vmem:[%s230] sm:$0xff] %vm695, %v694
      %p697 = scmp.lt.s32.totalorder %s18, 1
      %s698 = scalar_select %p697, %s18, 1
      %p699 = scmp.lt.s32.totalorder %s19, 0
      %s700 = scalar_select %p699, %s19, 0
      %s701 = sadd.s32 %s700, %s698
      %s702 = smul.addr %s701, 8
      %s703 = scalar_lea.vmem %s3, %s702
      // Predicated region
      $region33: #{transformer_forward.177} parent=31 // pred_check
        %p704 = pneg %p126
      $region34: #{transformer_forward.177} parent=31 // pred_check_branch
        %706 = sbr.rel (%p704) target = $region36
      $region35: #{transformer_forward.177} parent=31 // pred_region
        _
      $region36: #{transformer_forward.177} parent=31 // pred_fallthru
        _
    $region32: #{transformer_forward.177} parent=5 // pred_fallthru
      _
    %p707 = scmp.le.s32.totalorder 2, %s9
    // Predicated region
    $region37: #{transformer_forward.177} parent=5 // pred_check
      %p708 = pneg %p707
    $region38: #{transformer_forward.177} parent=5 // pred_check_branch
      %710 = sbr.rel (%p708) target = $region40
    $region39: #{transformer_forward.177} parent=5 // pred_region
      %s711 = ssub.s32 %s9, 2
      // Predicated region
      $region41: #{transformer_forward.177} parent=39 // pred_check
        %p712 = pneg %p132
      $region42: #{transformer_forward.177} parent=39 // pred_check_branch
        %714 = sbr.rel (%p712) target = $region44
      $region43: #{transformer_forward.177} parent=39 // pred_region
        %p715 = scmp.lt.s32.totalorder %s20, 1
        %s716 = scalar_select %p715, %s20, 1
        %p717 = scmp.lt.s32.totalorder %s21, 0
        %s718 = scalar_select %p717, %s21, 0
        %s719 = sadd.s32 %s718, %s716
        %s720 = smul.addr %s719, 8
        %s721 = scalar_lea.vmem %s3, %s720
      $region44: #{transformer_forward.177} parent=39 // pred_fallthru
        _
    $region40: #{transformer_forward.177} parent=5 // pred_fallthru
      _
  $region6: #{transformer_forward.177} parent=0 // loop_footer
    %s13 = sadd.s32 1, %s9
  $region7: #{transformer_forward.177} parent=0 // loop_footer_branch
    %8 = sbr.rel target = $region3
  $region8: #{transformer_forward.177} parent=0 // loop_exit
    _

</llo_original>
